<compile_context>
chip_gen: v5e
topology: v5e:2x2
jax: 0.10.0
libtpu: 0.0.40
codegen_flags: <defaults>
</compile_context>

<pallas_src>
import functools

import numpy as np
import jax
import jax.numpy as jnp
from jax.experimental import pallas as pl
from jax.experimental.pallas import tpu as pltpu

_BN_EPS = 1e-5  # nn.BatchNorm2d default eps


# ------------------------------ Pallas kernel --------------------------------

def _fused_matmul_kernel(*refs, residual_mode, apply_act):
    """K-packed conv-as-matmul + folded BN (+ residual) (+ swish).

    refs:
      [0] x_ref  : (TM, K)    bf16   im2col'd activation tile (K = 9*Cin)
      [1] w_ref  : (K, TN)    bf16   BN scale already folded in
      [2] b_ref  : (1, TN)    f32    folded BN bias
      residual_mode == "add":      [3] r_ref  : (TM, TN)      bf16
      residual_mode == "conv1x1":  [3] xs_ref : (TM, Cin_ds)  bf16
                                   [4] wd_ref : (Cin_ds, TN)  bf16
                                   [5] bd_ref : (1, TN)       f32
      [-1] o_ref : (TM, TN)   bf16 or f32
    """
    x_ref, w_ref, b_ref = refs[0], refs[1], refs[2]
    o_ref = refs[-1]

    y = jnp.dot(x_ref[...], w_ref[...], preferred_element_type=jnp.float32)
    y = y + b_ref[...]

    if residual_mode == "add":
        y = y + refs[3][...].astype(jnp.float32)
    elif residual_mode == "conv1x1":
        xs_ref, wd_ref, bd_ref = refs[3], refs[4], refs[5]
        y = y + jnp.dot(xs_ref[...], wd_ref[...],
                        preferred_element_type=jnp.float32) + bd_ref[...]

    if apply_act:
        y = y * jax.nn.sigmoid(y)  # swish

    o_ref[...] = y.astype(o_ref.dtype)


# ------------------------------ pallas_call wrapper ---------------------------

def _round_up(n, m):
    return ((n + m - 1) // m) * m


def _pad2d(x, rows, cols):
    r, c = rows - x.shape[0], cols - x.shape[1]
    if r == 0 and c == 0:
        return x
    return jnp.pad(x, ((0, r), (0, c)))


def _fused_matmul(x, w, b, *, apply_act, out_dtype,
                  residual_mode="none", residual_args=()):
    """out = act((x @ w) + b [+ residual]).  x:(M,K) bf16, w:(K,Cout) bf16."""
    m, k = x.shape
    cout = w.shape[1]

    # N tiling: full 256-wide MXU tile on v6e/v7x when Cout is large.
    if cout <= 256:
        tn, cout_pad = cout, cout
    else:
        tn, cout_pad = 256, _round_up(cout, 256)

    # M tiling: large tiles, batch already folded into M by the caller.
    m_pad = _round_up(m, 8)
    if m_pad >= 1024:
        tm = 512
    elif m_pad >= 512:
        tm = 256
    else:
        tm = m_pad
    m_pad = _round_up(m_pad, tm)
    grid_m, grid_n = m_pad // tm, cout_pad // tn

    # Keep both v7x TensorCores busy: ensure >=2 parallel grid steps if cheap.
    if grid_m * grid_n == 1 and m_pad >= 16 and m_pad % 16 == 0:
        tm = m_pad // 2
        grid_m = 2

    x_p = _pad2d(x.astype(jnp.bfloat16), m_pad, k)
    w_p = _pad2d(w.astype(jnp.bfloat16), k, cout_pad)
    b_p = _pad2d(b.astype(jnp.float32), 1, cout_pad)

    in_specs = [
        pl.BlockSpec((tm, k), lambda i, j: (i, 0)),
        pl.BlockSpec((k, tn), lambda i, j: (0, j)),
        pl.BlockSpec((1, tn), lambda i, j: (0, j)),
    ]
    args = [x_p, w_p, b_p]

    if residual_mode == "add":
        (r,) = residual_args
        r_p = _pad2d(r.astype(jnp.bfloat16), m_pad, cout_pad)
        in_specs.append(pl.BlockSpec((tm, tn), lambda i, j: (i, j)))
        args.append(r_p)
    elif residual_mode == "conv1x1":
        xs, wd, bd = residual_args
        cin_ds = xs.shape[1]
        xs_p = _pad2d(xs.astype(jnp.bfloat16), m_pad, cin_ds)
        wd_p = _pad2d(wd.astype(jnp.bfloat16), cin_ds, cout_pad)
        bd_p = _pad2d(bd.astype(jnp.float32), 1, cout_pad)
        in_specs += [
            pl.BlockSpec((tm, cin_ds), lambda i, j: (i, 0)),
            pl.BlockSpec((cin_ds, tn), lambda i, j: (0, j)),
            pl.BlockSpec((1, tn), lambda i, j: (0, j)),
        ]
        args += [xs_p, wd_p, bd_p]

    kernel = functools.partial(_fused_matmul_kernel,
                               residual_mode=residual_mode, apply_act=apply_act)

    out = pl.pallas_call(
        kernel,
        out_shape=jax.ShapeDtypeStruct((m_pad, cout_pad), out_dtype),
        grid=(grid_m, grid_n),
        in_specs=in_specs,
        out_specs=pl.BlockSpec((tm, tn), lambda i, j: (i, j)),
        compiler_params=pltpu.CompilerParams(
            dimension_semantics=("parallel", "parallel")),
    )(*args)
    return out[:m, :cout]


# -------------------------------- JAX glue -----------------------------------

def attach_udp_input_jax(x_nchw, udp_flat, pad=1):
    """JAX port of attach_udp_input (NCHW, used by the reference): pad by
    `pad`; padding ring filled with udp values in flattened CHW order."""
    B, C, H, W = x_nchw.shape
    Hp, Wp = H + 2 * pad, W + 2 * pad
    mask = np.ones((C, Hp, Wp), dtype=bool)
    mask[:, pad:H + pad, pad:W + pad] = False
    border_idx = np.flatnonzero(mask)
    meta = jnp.zeros((C * Hp * Wp,), x_nchw.dtype)
    meta = meta.at[border_idx].set(udp_flat.astype(x_nchw.dtype))
    meta = jnp.broadcast_to(meta.reshape(C, Hp, Wp)[None], (B, C, Hp, Wp))
    return meta.at[:, :, pad:H + pad, pad:W + pad].set(x_nchw)


def _attach_udp_nhwc(x_nhwc, udp_flat, out_dtype):
    """udp border attach directly in NHWC; udp ordering is CHW-flat (as in the
    PyTorch module); result is cast to out_dtype (bf16 for the kernels)."""
    B, H, W, C = x_nhwc.shape
    Hp, Wp = H + 2, W + 2
    mask = np.ones((C, Hp, Wp), dtype=bool)
    mask[:, 1:H + 1, 1:W + 1] = False
    border_idx = np.flatnonzero(mask)                # static trace-time indices
    meta = jnp.zeros((C * Hp * Wp,), out_dtype)
    meta = meta.at[border_idx].set(udp_flat.astype(out_dtype))
    meta = jnp.transpose(meta.reshape(C, Hp, Wp), (1, 2, 0))      # (Hp, Wp, C)
    xpad = jnp.broadcast_to(meta[None], (B, Hp, Wp, C))
    return xpad.at[:, 1:H + 1, 1:W + 1, :].set(x_nhwc.astype(out_dtype))


def _im2col_3x3(xpad, stride, Ho, Wo):
    """(B, Hp, Wp, C) padded bf16 -> (B*Ho*Wo, 9*C) K-packed im2col."""
    B, _, _, C = xpad.shape
    cols = []
    for kh in range(3):
        for kw in range(3):
            cols.append(xpad[:, kh:kh + stride * (Ho - 1) + 1:stride,
                             kw:kw + stride * (Wo - 1) + 1:stride, :])
    return jnp.concatenate(cols, axis=-1).reshape(B * Ho * Wo, 9 * C)


def _fold_bn(bn_params):
    gamma, beta, mean, var = bn_params
    scale = gamma * jax.lax.rsqrt(var + _BN_EPS)
    return scale, beta - mean * scale


def _fold_conv3x3_bn(w_oihw, bn_params):
    """-> (9*Cin, Cout) bf16 weights (BN scale folded), (1, Cout) f32 bias."""
    cout, cin = w_oihw.shape[0], w_oihw.shape[1]
    scale, bias = _fold_bn(bn_params)
    w = jnp.transpose(w_oihw, (2, 3, 1, 0)).reshape(9 * cin, cout)   # (kh,kw,Cin,Cout)
    w = (w * scale[None, :]).astype(jnp.bfloat16)
    return w, bias.reshape(1, cout).astype(jnp.float32)


def basic_block_udp_forward(x_nchw, udp1, udp2, params, stride):
    """BasicBlock_udp.forward (relu_type='swish')."""
    # TODO(synk): training-mode BatchNorm (batch statistics) is not implemented;
    # eval-mode (running-stats) BN is folded into the conv weights instead.
    B, Cin, H, W = x_nchw.shape
    planes = params["w1"].shape[0]
    Ho = (H - 1) // stride + 1
    Wo = (W - 1) // stride + 1

    x_nhwc = jnp.transpose(x_nchw, (0, 2, 3, 1))

    # ---- pallas_call #1: conv1(attach_udp(x, udp1)) -> bn1 -> swish ----------
    xpad1 = _attach_udp_nhwc(x_nhwc, udp1, jnp.bfloat16)           # (B,H+2,W+2,Cin)
    xcol1 = _im2col_3x3(xpad1, stride, Ho, Wo)                     # (B*Ho*Wo, 9*Cin)
    w1, b1 = _fold_conv3x3_bn(params["w1"], params["bn1"])
    out1 = _fused_matmul(xcol1, w1, b1, apply_act=True,
                         out_dtype=jnp.bfloat16)                   # (B*Ho*Wo, planes)

    # ---- pallas_call #2: conv2(attach_udp(out1, udp2)) -> bn2 (+res) -> swish
    out1_hwc = out1.reshape(B, Ho, Wo, planes)                     # bf16, channels-last
    xpad2 = _attach_udp_nhwc(out1_hwc, udp2, jnp.bfloat16)         # (B,Ho+2,Wo+2,planes)
    xcol2 = _im2col_3x3(xpad2, 1, Ho, Wo)                          # (B*Ho*Wo, 9*planes)
    w2, b2 = _fold_conv3x3_bn(params["w2"], params["bn2"])

    if "ds_w" in params:
        # downsample = conv1x1(stride) + BN, fused into conv2's epilogue
        sc, bd = _fold_bn(params["ds_bn"])
        wd = (params["ds_w"].reshape(planes, Cin).T * sc[None, :]).astype(jnp.bfloat16)
        bd = bd.reshape(1, planes).astype(jnp.float32)
        xs = x_nhwc[:, ::stride, ::stride, :].reshape(B * Ho * Wo, Cin)
        out2 = _fused_matmul(xcol2, w2, b2, apply_act=True, out_dtype=jnp.float32,
                             residual_mode="conv1x1", residual_args=(xs, wd, bd))
    else:
        # identity residual (stride == 1 and Cin == planes)
        r = x_nhwc.reshape(B * H * W, Cin)
        out2 = _fused_matmul(xcol2, w2, b2, apply_act=True, out_dtype=jnp.float32,
                             residual_mode="add", residual_args=(r,))

    return jnp.transpose(out2.reshape(B, Ho, Wo, planes), (0, 3, 1, 2))   # NCHW


# --------------------------- pure-JAX reference -------------------------------

def reference_forward(x_nchw, udp1, udp2, params, stride):
    def bn(y_nhwc, bnp):
        g, b, m, v = bnp
        return (y_nhwc - m) * (g * jax.lax.rsqrt(v + _BN_EPS)) + b

    def swish(y):
        return y * jax.nn.sigmoid(y)

    def conv3x3(xpad_nchw, w_oihw, s):
        xh = jnp.transpose(xpad_nchw, (0, 2, 3, 1))
        wh = jnp.transpose(w_oihw, (2, 3, 1, 0))
        return jax.lax.conv_general_dilated(
            xh, wh, (s, s), "VALID",
            dimension_numbers=("NHWC", "HWIO", "NHWC"),
            precision=jax.lax.Precision.HIGHEST)

    out = swish(bn(conv3x3(attach_udp_input_jax(x_nchw, udp1), params["w1"], stride),
                   params["bn1"]))
    out_nchw = jnp.transpose(out, (0, 3, 1, 2))
    out2 = bn(conv3x3(attach_udp_input_jax(out_nchw, udp2), params["w2"], 1),
              params["bn2"])
    x_nhwc = jnp.transpose(x_nchw, (0, 2, 3, 1))
    if "ds_w" in params:
        wd = jnp.transpose(params["ds_w"], (2, 3, 1, 0))
        res = jax.lax.conv_general_dilated(
            x_nhwc, wd, (stride, stride), "VALID",
            dimension_numbers=("NHWC", "HWIO", "NHWC"),
            precision=jax.lax.Precision.HIGHEST)
        res = bn(res, params["ds_bn"])
    else:
        res = x_nhwc
    return jnp.transpose(swish(out2 + res), (0, 3, 1, 2))


# ------------------------------- init / main ---------------------------------

def _init_bn(key, c):
    k1, k2, k3, k4 = jax.random.split(key, 4)
    gamma = 1.0 + 0.1 * jax.random.normal(k1, (c,), jnp.float32)
    beta = 0.1 * jax.random.normal(k2, (c,), jnp.float32)
    mean = 0.1 * jax.random.normal(k3, (c,), jnp.float32)
    var = jax.random.uniform(k4, (c,), jnp.float32, 0.5, 1.5)
    return (gamma, beta, mean, var)


def _init_conv(key, cout, cin, k):
    std = (k * k * cin) ** -0.5
    return std * jax.random.normal(key, (cout, cin, k, k), jnp.float32)


def init_block_params(key, inplanes, planes, stride):
    ks = jax.random.split(key, 6)
    p = {
        "w1": _init_conv(ks[0], planes, inplanes, 3),
        "bn1": _init_bn(ks[1], planes),
        "w2": _init_conv(ks[2], planes, planes, 3),
        "bn2": _init_bn(ks[3], planes),
    }
    if stride != 1 or inplanes != planes:
        p["ds_w"] = _init_conv(ks[4], planes, inplanes, 1)
        p["ds_bn"] = _init_bn(ks[5], planes)
    return p


if __name__ == "__main__":
    block_forward = jax.jit(basic_block_udp_forward, static_argnames=("stride",))

    key = jax.random.PRNGKey(0)
    configs = [
        dict(inplanes=32, planes=32, stride=1),   # identity residual
        dict(inplanes=32, planes=64, stride=2),   # conv1x1 + BN downsample
    ]
    B, H, W = 2, 16, 16

    for cfg in configs:
        key, kx, kp, ku1, ku2 = jax.random.split(key, 5)
        cin, planes, stride = cfg["inplanes"], cfg["planes"], cfg["stride"]
        x = jax.random.normal(kx, (B, cin, H, W), jnp.float32)
        params = init_block_params(kp, cin, planes, stride)

        ho = (H - 1) // stride + 1
        wo = (W - 1) // stride + 1
        border1 = (H + 2) * (W + 2) - H * W
        border2 = (ho + 2) * (wo + 2) - ho * wo
        udp1 = 0.1 * jax.random.normal(ku1, (cin * border1,), jnp.float32)
        udp2 = 0.1 * jax.random.normal(ku2, (planes * border2,), jnp.float32)

        out = block_forward(x, udp1, udp2, params, stride=stride)
        out = jax.block_until_ready(out)
        assert out.shape == (B, planes, ho, wo), out.shape
        assert bool(jnp.all(jnp.isfinite(out)))

        ref = jax.block_until_ready(reference_forward(x, udp1, udp2, params, stride))
        err = float(jnp.max(jnp.abs(out - ref)))
        scl = float(jnp.max(jnp.abs(ref)))
        assert err <= 0.06 * scl + 2e-2, (cfg, err, scl)

    print("KERNEL_OK")
</pallas_src>

<mosaic_0001>
module attributes {stable_mosaic.version = 11 : i64} {
  func.func @_fused_matmul_kernel(%arg0: i32, %arg1: i32, %arg2: memref<256x288xbf16, #tpu.memory_space<vmem>>, %arg3: memref<288x32xbf16, #tpu.memory_space<vmem>>, %arg4: memref<1x32xf32, #tpu.memory_space<vmem>>, %arg5: memref<256x32xbf16, #tpu.memory_space<vmem>>) attributes {dimension_semantics = [#tpu.dimension_semantics<parallel>, #tpu.dimension_semantics<parallel>], iteration_bounds = array<i64: 2, 1>, scalar_prefetch = 0 : i64, scratch_operands = 0 : i64, tpu.core_type = #tpu.core_type<tc>, window_params = [{transform_indices = @transform_0, window_bounds = array<i64: 256, 288>}, {transform_indices = @transform_1, window_bounds = array<i64: 288, 32>}, {transform_indices = @transform_2, window_bounds = array<i64: 1, 32>}, {transform_indices = @transform_3, window_bounds = array<i64: 256, 32>}]} {
    %c0 = arith.constant 0 : index
    %c0_0 = arith.constant 0 : index
    %0 = vector.load %arg2[%c0, %c0_0] : memref<256x288xbf16, #tpu.memory_space<vmem>>, vector<256x288xbf16>
    %c0_1 = arith.constant 0 : index
    %c0_2 = arith.constant 0 : index
    %1 = vector.load %arg3[%c0_1, %c0_2] : memref<288x32xbf16, #tpu.memory_space<vmem>>, vector<288x32xbf16>
    %cst = arith.constant dense<0.000000e+00> : vector<256x32xf32>
    %2 = tpu.matmul %0, %1, %cst {dimension_numbers = #tpu.dot_dimension_numbers<[1], [0], [0], [1], [0, 0, 1, 1], [], []>} : vector<256x288xbf16>, vector<288x32xbf16>, vector<256x32xf32> -> vector<256x32xf32>
    %c0_3 = arith.constant 0 : index
    %c0_4 = arith.constant 0 : index
    %3 = vector.load %arg4[%c0_3, %c0_4] : memref<1x32xf32, #tpu.memory_space<vmem>>, vector<1x32xf32>
    %4 = vector.broadcast %3 : vector<1x32xf32> to vector<256x32xf32>
    %5 = arith.addf %2, %4 : vector<256x32xf32>
    %6 = arith.negf %5 : vector<256x32xf32>
    %7 = math.exp %6 : vector<256x32xf32>
    %cst_5 = arith.constant 1.000000e+00 : f32
    %8 = vector.broadcast %cst_5 : f32 to vector<256x32xf32>
    %9 = arith.addf %8, %7 : vector<256x32xf32>
    %10 = arith.divf %8, %9 : vector<256x32xf32>
    %11 = arith.mulf %5, %10 : vector<256x32xf32>
    %12 = arith.truncf %11 : vector<256x32xf32> to vector<256x32xbf16>
    %c0_6 = arith.constant 0 : index
    %c0_7 = arith.constant 0 : index
    %13 = vector.load %arg5[%c0_6, %c0_7] : memref<256x32xbf16, #tpu.memory_space<vmem>>, vector<256x32xbf16>
    tpu.vector_store %arg5[%c0_6, %c0_7], %12 {strides = array<i32>} : memref<256x32xbf16, #tpu.memory_space<vmem>>, vector<256x32xbf16>,
    return
  }
  func.func @transform_0(%arg0: i32, %arg1: i32) -> (i32, i32) {
    %c0_i32 = arith.constant 0 : i32
    %c0_i32_0 = arith.constant 0 : i32
    return %arg0, %c0_i32 : i32, i32
  }
  func.func @transform_1(%arg0: i32, %arg1: i32) -> (i32, i32) {
    %c0_i32 = arith.constant 0 : i32
    %c0_i32_0 = arith.constant 0 : i32
    return %c0_i32, %arg1 : i32, i32
  }
  func.func @transform_2(%arg0: i32, %arg1: i32) -> (i32, i32) {
    %c0_i32 = arith.constant 0 : i32
    %c0_i32_0 = arith.constant 0 : i32
    return %c0_i32, %arg1 : i32, i32
  }
  func.func @transform_3(%arg0: i32, %arg1: i32) -> (i32, i32) {
    %c0_i32 = arith.constant 0 : i32
    return %arg0, %arg1 : i32, i32
  }
}

module attributes {stable_mosaic.version = 11 : i64} {
  func.func @_fused_matmul_kernel(%arg0: i32, %arg1: i32, %arg2: memref<256x288xbf16, #tpu.memory_space<vmem>>, %arg3: memref<288x32xbf16, #tpu.memory_space<vmem>>, %arg4: memref<1x32xf32, #tpu.memory_space<vmem>>, %arg5: memref<256x32xbf16, #tpu.memory_space<vmem>>, %arg6: memref<256x32xf32, #tpu.memory_space<vmem>>) attributes {dimension_semantics = [#tpu.dimension_semantics<parallel>, #tpu.dimension_semantics<parallel>], iteration_bounds = array<i64: 2, 1>, scalar_prefetch = 0 : i64, scratch_operands = 0 : i64, tpu.core_type = #tpu.core_type<tc>, window_params = [{transform_indices = @transform_0, window_bounds = array<i64: 256, 288>}, {transform_indices = @transform_1, window_bounds = array<i64: 288, 32>}, {transform_indices = @transform_2, window_bounds = array<i64: 1, 32>}, {transform_indices = @transform_3, window_bounds = array<i64: 256, 32>}, {transform_indices = @transform_4, window_bounds = array<i64: 256, 32>}]} {
    %c0 = arith.constant 0 : index
    %c0_0 = arith.constant 0 : index
    %0 = vector.load %arg2[%c0, %c0_0] : memref<256x288xbf16, #tpu.memory_space<vmem>>, vector<256x288xbf16>
    %c0_1 = arith.constant 0 : index
    %c0_2 = arith.constant 0 : index
    %1 = vector.load %arg3[%c0_1, %c0_2] : memref<288x32xbf16, #tpu.memory_space<vmem>>, vector<288x32xbf16>
    %cst = arith.constant dense<0.000000e+00> : vector<256x32xf32>
    %2 = tpu.matmul %0, %1, %cst {dimension_numbers = #tpu.dot_dimension_numbers<[1], [0], [0], [1], [0, 0, 1, 1], [], []>} : vector<256x288xbf16>, vector<288x32xbf16>, vector<256x32xf32> -> vector<256x32xf32>
    %c0_3 = arith.constant 0 : index
    %c0_4 = arith.constant 0 : index
    %3 = vector.load %arg4[%c0_3, %c0_4] : memref<1x32xf32, #tpu.memory_space<vmem>>, vector<1x32xf32>
    %4 = vector.broadcast %3 : vector<1x32xf32> to vector<256x32xf32>
    %5 = arith.addf %2, %4 : vector<256x32xf32>
    %c0_5 = arith.constant 0 : index
    %c0_6 = arith.constant 0 : index
    %6 = vector.load %arg5[%c0_5, %c0_6] : memref<256x32xbf16, #tpu.memory_space<vmem>>, vector<256x32xbf16>
    %7 = arith.extf %6 : vector<256x32xbf16> to vector<256x32xf32>
    %8 = arith.addf %5, %7 : vector<256x32xf32>
    %9 = arith.negf %8 : vector<256x32xf32>
    %10 = math.exp %9 : vector<256x32xf32>
    %cst_7 = arith.constant 1.000000e+00 : f32
    %11 = vector.broadcast %cst_7 : f32 to vector<256x32xf32>
    %12 = arith.addf %11, %10 : vector<256x32xf32>
    %13 = arith.divf %11, %12 : vector<256x32xf32>
    %14 = arith.mulf %8, %13 : vector<256x32xf32>
    %c0_8 = arith.constant 0 : index
    %c0_9 = arith.constant 0 : index
    %15 = vector.load %arg6[%c0_8, %c0_9] : memref<256x32xf32, #tpu.memory_space<vmem>>, vector<256x32xf32>
    tpu.vector_store %arg6[%c0_8, %c0_9], %14 {strides = array<i32>} : memref<256x32xf32, #tpu.memory_space<vmem>>, vector<256x32xf32>,
    return
  }
  func.func @transform_0(%arg0: i32, %arg1: i32) -> (i32, i32) {
    %c0_i32 = arith.constant 0 : i32
    %c0_i32_0 = arith.constant 0 : i32
    return %arg0, %c0_i32 : i32, i32
  }
  func.func @transform_1(%arg0: i32, %arg1: i32) -> (i32, i32) {
    %c0_i32 = arith.constant 0 : i32
    %c0_i32_0 = arith.constant 0 : i32
    return %c0_i32, %arg1 : i32, i32
  }
  func.func @transform_2(%arg0: i32, %arg1: i32) -> (i32, i32) {
    %c0_i32 = arith.constant 0 : i32
    %c0_i32_0 = arith.constant 0 : i32
    return %c0_i32, %arg1 : i32, i32
  }
  func.func @transform_3(%arg0: i32, %arg1: i32) -> (i32, i32) {
    %c0_i32 = arith.constant 0 : i32
    return %arg0, %arg1 : i32, i32
  }
  func.func @transform_4(%arg0: i32, %arg1: i32) -> (i32, i32) {
    %c0_i32 = arith.constant 0 : i32
    return %arg0, %arg1 : i32, i32
  }
}

</mosaic_0001>

<llo_original>
// kernel: basic_block_udp_forward.2
$region0: #{basic_block_udp_forward.2}
  #allocation0 [shape = 'u32[]', space=smem, size = 0x4, offset = 0x4, fixed_abs, tag = 'smem constant byte address 0x4 - core index']
  #allocation1 [shape = 'u32[72,128]{1,0:T(1,128)}', space=vmem, size = 0x9000, scoped, tag = 'internal scratch']
  %s0 = inlined_call_operand.vmem [shape: bf16[512,288], index: 0, kind: input, shape index: {}]
  %s1 = inlined_call_operand.vmem [shape: bf16[288,32], index: 1, kind: input, shape index: {}]
  %s2 = inlined_call_operand.vmem [shape: f32[1,32], index: 2, kind: input, shape index: {}]
  %s3 = inlined_call_operand.vmem [shape: bf16[512,32], index: 3, kind: output, shape index: {}]
  %s4 = sld [smem:[#allocation0]]
  $region45: #{basic_block_udp_forward.2} parent=0
    _
  %s6 = ssub.s32 1, %s4
  %s7 = scalar_select 0, %s6, %s4
  loop: start=0, step=1, limit=4
  $region2: #{basic_block_udp_forward.2} parent=0 // loop_pre_header
    _
  $region3: #{basic_block_udp_forward.2} parent=0 // loop_header
    %s9 = sphi 0, %s13
    %p10 = scmp.ge.s32.totalorder %s9, 4
    %s16 = sphi 0, %s28
    %s17 = sphi 0, %s24
    %s18 = sphi 0, %s16
    %s19 = sphi 0, %s17
    %s20 = sphi 0, %s18
    %s21 = sphi 0, %s19
    %s31 = sphi 0, %s33
    %s34 = sphi 0, %s31
    %s35 = sphi 0, %s34
    %s51 = sphi 0, %s35
    %s57 = sphi 0, %s59
    %s60 = sphi 0, %s57
    %s61 = sphi 0, %s60
    %s77 = sphi 0, %s61
    %s83 = sphi 0, %s85
    %s86 = sphi 0, %s83
    %s87 = sphi 0, %s86
    %s103 = sphi 0, %s87
    %s111 = sphi 0, %s113
    %s114 = sphi 0, %s111
    %s115 = sphi 0, %s114
    %s131 = sphi 0, %s115
  $region4: #{basic_block_udp_forward.2} parent=0 // loop_header_branch
    %12 = sbr.rel (%p10) target = $region8
  $region5: #{basic_block_udp_forward.2} parent=0 // loop_body
    %s14 = ssub.s32 %s9, 1
    %s15 = ssub.s32 %s9, 2
    %s22 = sadd.s32 1, %s17
    %p23 = scmp.ge.s32.totalorder %s22, 1
    %s24 = scalar_select %p23, 0, %s22
    %s25 = sadd.s32 1, %s16
    %s26 = scalar_select %p23, %s25, %s16
    %p27 = scmp.ge.s32.totalorder %s26, 2
    %s28 = scalar_select %p27, 0, %s26
    %s29 = ssub.s32 %s16, %s28
    %p30 = scmp.eq.s32.totalorder %s29, 0
    %s32 = sadd.s32 %s31, 1
    %s33 = scalar_select %p30, %s31, %s32
    %p36 = pneg %p30
    %p37 = scmp.eq.s32.totalorder %s9, 1
    %p38 = por %p36, %p37
    %p39 = scmp.ne.s32.totalorder %s31, %s34
    %p40 = scmp.eq.s32.totalorder %s9, 0
    %p41 = por %p39, %p40
    %p42 = scmp.ne.s32.totalorder %s31, %s34
    %p43 = scmp.eq.s32.totalorder %s14, 1
    %p44 = por %p42, %p43
    %p45 = scmp.ne.s32.totalorder %s34, %s35
    %p46 = scmp.eq.s32.totalorder %s14, 0
    %p47 = por %p45, %p46
    %p48 = scmp.ne.s32.totalorder %s34, %s35
    %p49 = scmp.eq.s32.totalorder %s15, 1
    %p50 = por %p48, %p49
    %p52 = scmp.ne.s32.totalorder %s35, %s51
    %p53 = scmp.eq.s32.totalorder %s15, 0
    %p54 = por %p52, %p53
    %s55 = ssub.s32 %s17, %s24
    %p56 = scmp.eq.s32.totalorder %s55, 0
    %s58 = sadd.s32 %s57, 1
    %s59 = scalar_select %p56, %s57, %s58
    %p62 = pneg %p56
    %p63 = scmp.eq.s32.totalorder %s9, 1
    %p64 = por %p62, %p63
    %p65 = scmp.ne.s32.totalorder %s57, %s60
    %p66 = scmp.eq.s32.totalorder %s9, 0
    %p67 = por %p65, %p66
    %p68 = scmp.ne.s32.totalorder %s57, %s60
    %p69 = scmp.eq.s32.totalorder %s14, 1
    %p70 = por %p68, %p69
    %p71 = scmp.ne.s32.totalorder %s60, %s61
    %p72 = scmp.eq.s32.totalorder %s14, 0
    %p73 = por %p71, %p72
    %p74 = scmp.ne.s32.totalorder %s60, %s61
    %p75 = scmp.eq.s32.totalorder %s15, 1
    %p76 = por %p74, %p75
    %p78 = scmp.ne.s32.totalorder %s61, %s77
    %p79 = scmp.eq.s32.totalorder %s15, 0
    %p80 = por %p78, %p79
    %s81 = ssub.s32 %s17, %s24
    %p82 = scmp.eq.s32.totalorder %s81, 0
    %s84 = sadd.s32 %s83, 1
    %s85 = scalar_select %p82, %s83, %s84
    %p88 = pneg %p82
    %p89 = scmp.eq.s32.totalorder %s9, 1
    %p90 = por %p88, %p89
    %p91 = scmp.ne.s32.totalorder %s83, %s86
    %p92 = scmp.eq.s32.totalorder %s9, 0
    %p93 = por %p91, %p92
    %p94 = scmp.ne.s32.totalorder %s83, %s86
    %p95 = scmp.eq.s32.totalorder %s14, 1
    %p96 = por %p94, %p95
    %p97 = scmp.ne.s32.totalorder %s86, %s87
    %p98 = scmp.eq.s32.totalorder %s14, 0
    %p99 = por %p97, %p98
    %p100 = scmp.ne.s32.totalorder %s86, %s87
    %p101 = scmp.eq.s32.totalorder %s15, 1
    %p102 = por %p100, %p101
    %p104 = scmp.ne.s32.totalorder %s87, %s103
    %p105 = scmp.eq.s32.totalorder %s15, 0
    %p106 = por %p104, %p105
    %s107 = ssub.s32 %s16, %s28
    %s108 = ssub.s32 %s17, %s24
    %s109 = sor.u32 %s107, %s108
    %p110 = scmp.eq.s32.totalorder %s109, 0
    %s112 = sadd.s32 %s111, 1
    %s113 = scalar_select %p110, %s111, %s112
    %p116 = pneg %p110
    %p117 = scmp.eq.s32.totalorder %s9, 1
    %p118 = por %p116, %p117
    %p119 = scmp.ne.s32.totalorder %s111, %s114
    %p120 = scmp.eq.s32.totalorder %s9, 0
    %p121 = por %p119, %p120
    %p122 = scmp.ne.s32.totalorder %s111, %s114
    %p123 = scmp.eq.s32.totalorder %s14, 1
    %p124 = por %p122, %p123
    %p125 = scmp.ne.s32.totalorder %s114, %s115
    %p126 = scmp.eq.s32.totalorder %s14, 0
    %p127 = por %p125, %p126
    %p128 = scmp.ne.s32.totalorder %s114, %s115
    %p129 = scmp.eq.s32.totalorder %s15, 1
    %p130 = por %p128, %p129
    %p132 = scmp.ne.s32.totalorder %s115, %s131
    %p133 = scmp.eq.s32.totalorder %s15, 0
    %p134 = por %p132, %p133
    %p135 = scmp.le.s32.totalorder 1, %s9
    %p136 = scmp.lt.s32.totalorder %s9, 3
    %p137 = pnand %p135, %p136
    %p138 = pneg %p137
    // Predicated region
    $region9: #{basic_block_udp_forward.2} parent=5 // pred_check
      _
    $region10: #{basic_block_udp_forward.2} parent=5 // pred_check_branch
      %140 = sbr.rel (%p137) target = $region12
    $region11: #{basic_block_udp_forward.2} parent=5 // pred_region
      %s141 = ssub.s32 %s9, 1
      // Predicated region
      $region13: #{basic_block_udp_forward.2} parent=11 // pred_check
        %p142 = pneg %p73
      $region14: #{basic_block_udp_forward.2} parent=11 // pred_check_branch
        %144 = sbr.rel (%p142) target = $region16
      $region15: #{basic_block_udp_forward.2} parent=11 // pred_region
        %p145 = scmp.lt.s32.totalorder %s19, 0
        %s146 = scalar_select %p145, %s19, 0
        %s147 = smul.addr %s146, 4
        %s148 = scalar_lea.vmem %s1, %s147
      $region16: #{basic_block_udp_forward.2} parent=11 // pred_fallthru
        _
      // Predicated region
      $region17: #{basic_block_udp_forward.2} parent=11 // pred_check
        %p149 = pneg %p99
      $region18: #{basic_block_udp_forward.2} parent=11 // pred_check_branch
        %151 = sbr.rel (%p149) target = $region20
      $region19: #{basic_block_udp_forward.2} parent=11 // pred_region
        %p152 = scmp.lt.s32.totalorder %s19, 0
        %s153 = scalar_select %p152, %s19, 0
        %s154 = scalar_lea.vmem %s2, %s153
      $region20: #{basic_block_udp_forward.2} parent=11 // pred_fallthru
        _
    $region12: #{basic_block_udp_forward.2} parent=5 // pred_fallthru
      _
    %p155 = scmp.lt.s32.totalorder %s9, 2
    // Predicated region
    $region21: #{basic_block_udp_forward.2} parent=5 // pred_check
      %p156 = pneg %p155
    $region22: #{basic_block_udp_forward.2} parent=5 // pred_check_branch
      %158 = sbr.rel (%p156) target = $region24
    $region23: #{basic_block_udp_forward.2} parent=5 // pred_region
      // Predicated region
      $region25: #{basic_block_udp_forward.2} parent=23 // pred_check
        %p159 = pneg %p41
      $region26: #{basic_block_udp_forward.2} parent=23 // pred_check_branch
        %161 = sbr.rel (%p159) target = $region28
      $region27: #{basic_block_udp_forward.2} parent=23 // pred_region
        %s162 = smul.u32 32, %s16
        %p163 = scmp.lt.s32.totalorder %s162, 63
        %s164 = scalar_select %p163, %s162, 63
        %s165 = smul.addr %s164, 3
        %s166 = smul.addr %s165, 4
        %s167 = scalar_lea.vmem %s0, %s166
        %s168 = smul.u32 32, %s16
      $region28: #{basic_block_udp_forward.2} parent=23 // pred_fallthru
        _
    $region24: #{basic_block_udp_forward.2} parent=5 // pred_fallthru
      _
    %p169 = scmp.le.s32.totalorder 1, %s9
    %p170 = scmp.lt.s32.totalorder %s9, 3
    %p171 = pnand %p169, %p170
    %p172 = pneg %p171
    // Predicated region
    $region29: #{basic_block_udp_forward.2} parent=5 // pred_check
      _
    $region30: #{basic_block_udp_forward.2} parent=5 // pred_check_branch
      %174 = sbr.rel (%p171) target = $region32
    $region31: #{basic_block_udp_forward.2} parent=5 // pred_region
      %s175 = ssub.s32 %s9, 1
      %s176 = smul.u32 32, %s18
      %p177 = scmp.lt.s32.totalorder %s176, 63
      %s178 = scalar_select %p177, %s176, 63
      %s179 = smul.addr %s178, 3
      %s180 = smul.addr %s179, 4
      %s181 = scalar_lea.vmem %s0, %s180
      %p182 = pneg %p47
      %p183 = pneg %p44
      %p184 = scmp.lt.s32.totalorder %s19, 0
      %s185 = scalar_select %p184, %s19, 0
      %s186 = smul.addr %s185, 4
      %s187 = scalar_lea.vmem %s1, %s186
      %p188 = pneg %p73
      %p189 = pneg %p70
      %p190 = scmp.lt.s32.totalorder %s19, 0
      %s191 = scalar_select %p190, %s19, 0
      %s192 = scalar_lea.vmem %s2, %s191
      %p193 = pneg %p99
      %p194 = pneg %p96
      %p195 = pneg %p127
      %p196 = pneg %p124
      %s197 = smul.u32 32, %s18
      %p198 = scmp.lt.s32.totalorder %s197, 63
      %s199 = scalar_select %p198, %s197, 63
      %p200 = scmp.lt.s32.totalorder %s19, 0
      %s201 = scalar_select %p200, %s19, 0
      %s202 = sadd.s32 %s201, %s199
      %s203 = smul.addr %s202, 4
      %s204 = scalar_lea.vmem %s3, %s203
      %s205 = smul.u32 32, %s18
      %p206 = scmp.lt.s32.totalorder %s205, 63
      %s207 = scalar_select %p206, %s205, 63
      %s208 = smul.addr %s207, 3
      %s209 = smul.addr %s208, 4
      %s210 = scalar_lea.vmem %s0, %s209
      %s211 = smul.u32 32, %s18
      %p212 = scmp.lt.s32.totalorder %s19, 0
      %s213 = scalar_select %p212, %s19, 0
      %s214 = smul.addr %s213, 4
      %s215 = scalar_lea.vmem %s1, %s214
      %p216 = scmp.lt.s32.totalorder %s19, 0
      %s217 = scalar_select %p216, %s19, 0
      %s218 = scalar_lea.vmem %s2, %s217
      %s219 = smul.u32 32, %s18
      %p220 = scmp.lt.s32.totalorder %s219, 63
      %s221 = scalar_select %p220, %s219, 63
      %p222 = scmp.lt.s32.totalorder %s19, 0
      %s223 = scalar_select %p222, %s19, 0
      %s224 = sadd.s32 %s223, %s221
      %s225 = smul.addr %s224, 4
      %s226 = scalar_lea.vmem %s3, %s225
      %s227 = smul.u32 32, %s18
      %v229 = vld [vmem:[%s210] sm:$0xff]
      %v230 = vld [vmem:[%s210 + $0x8] sm:$0xf]
      %v231 = vld [vmem:[%s210 + $0xc] sm:$0xff]
      %v232 = vld [vmem:[%s210 + $0x14] sm:$0xf]
      %v233 = vld [vmem:[%s210 + $0x18] sm:$0xff]
      %v234 = vld [vmem:[%s210 + $0x20] sm:$0xf]
      %v235 = vld [vmem:[%s210 + $0x24] sm:$0xff]
      %v236 = vld [vmem:[%s210 + $0x2c] sm:$0xf]
      %v237 = vld [vmem:[%s210 + $0x30] sm:$0xff]
      %v238 = vld [vmem:[%s210 + $0x38] sm:$0xf]
      %v239 = vld [vmem:[%s210 + $0x3c] sm:$0xff]
      %v240 = vld [vmem:[%s210 + $0x44] sm:$0xf]
      %v241 = vld [vmem:[%s210 + $0x48] sm:$0xff]
      %v242 = vld [vmem:[%s210 + $0x50] sm:$0xf]
      %v243 = vld [vmem:[%s210 + $0x54] sm:$0xff]
      %v244 = vld [vmem:[%s210 + $0x5c] sm:$0xf]
      %v245 = vld [vmem:[%s210 + $0x60] sm:$0xff]
      %v246 = vld [vmem:[%s210 + $0x68] sm:$0xf]
      %v247 = vld [vmem:[%s210 + $0x6c] sm:$0xff]
      %v248 = vld [vmem:[%s210 + $0x74] sm:$0xf]
      %v249 = vld [vmem:[%s210 + $0x78] sm:$0xff]
      %v250 = vld [vmem:[%s210 + $0x80] sm:$0xf]
      %v251 = vld [vmem:[%s210 + $0x84] sm:$0xff]
      %v252 = vld [vmem:[%s210 + $0x8c] sm:$0xf]
      %v253 = vld [vmem:[%s210 + $0x90] sm:$0xff]
      %v254 = vld [vmem:[%s210 + $0x98] sm:$0xf]
      %v255 = vld [vmem:[%s210 + $0x9c] sm:$0xff]
      %v256 = vld [vmem:[%s210 + $0xa4] sm:$0xf]
      %v257 = vld [vmem:[%s210 + $0xa8] sm:$0xff]
      %v258 = vld [vmem:[%s210 + $0xb0] sm:$0xf]
      %v259 = vld [vmem:[%s210 + $0xb4] sm:$0xff]
      %v260 = vld [vmem:[%s210 + $0xbc] sm:$0xf]
      %v261 = vld [vmem:[%s210 + $0xc0] sm:$0xff]
      %v262 = vld [vmem:[%s210 + $0xc8] sm:$0xf]
      %v263 = vld [vmem:[%s210 + $0xcc] sm:$0xff]
      %v264 = vld [vmem:[%s210 + $0xd4] sm:$0xf]
      %v265 = vld [vmem:[%s210 + $0xd8] sm:$0xff]
      %v266 = vld [vmem:[%s210 + $0xe0] sm:$0xf]
      %v267 = vld [vmem:[%s210 + $0xe4] sm:$0xff]
      %v268 = vld [vmem:[%s210 + $0xec] sm:$0xf]
      %v269 = vld [vmem:[%s210 + $0xf0] sm:$0xff]
      %v270 = vld [vmem:[%s210 + $0xf8] sm:$0xf]
      %v271 = vld [vmem:[%s210 + $0xfc] sm:$0xff]
      %v272 = vld [vmem:[%s210 + $0x104] sm:$0xf]
      %v273 = vld [vmem:[%s210 + $0x108] sm:$0xff]
      %v274 = vld [vmem:[%s210 + $0x110] sm:$0xf]
      %v275 = vld [vmem:[%s210 + $0x114] sm:$0xff]
      %v276 = vld [vmem:[%s210 + $0x11c] sm:$0xf]
      %v277 = vld [vmem:[%s210 + $0x120] sm:$0xff]
      %v278 = vld [vmem:[%s210 + $0x128] sm:$0xf]
      %v279 = vld [vmem:[%s210 + $0x12c] sm:$0xff]
      %v280 = vld [vmem:[%s210 + $0x134] sm:$0xf]
      %v281 = vld [vmem:[%s210 + $0x138] sm:$0xff]
      %v282 = vld [vmem:[%s210 + $0x140] sm:$0xf]
      %v283 = vld [vmem:[%s210 + $0x144] sm:$0xff]
      %v284 = vld [vmem:[%s210 + $0x14c] sm:$0xf]
      %v285 = vld [vmem:[%s210 + $0x150] sm:$0xff]
      %v286 = vld [vmem:[%s210 + $0x158] sm:$0xf]
      %v287 = vld [vmem:[%s210 + $0x15c] sm:$0xff]
      %v288 = vld [vmem:[%s210 + $0x164] sm:$0xf]
      %v289 = vld [vmem:[%s210 + $0x168] sm:$0xff]
      %v290 = vld [vmem:[%s210 + $0x170] sm:$0xf]
      %v291 = vld [vmem:[%s210 + $0x174] sm:$0xff]
      %v292 = vld [vmem:[%s210 + $0x17c] sm:$0xf]
      %v293 = vld [vmem:[%s215] sm:$0xf]
      %v294 = vld [vmem:[%s215 + $0x4] sm:$0xf]
      %v295 = vld [vmem:[%s215 + $0x8] sm:$0xf]
      %v296 = vld [vmem:[%s215 + $0xc] sm:$0xf]
      %v297 = vld [vmem:[%s215 + $0x10] sm:$0xf]
      %v298 = vld [vmem:[%s215 + $0x14] sm:$0xf]
      %v299 = vld [vmem:[%s215 + $0x18] sm:$0xf]
      %v300 = vld [vmem:[%s215 + $0x1c] sm:$0xf]
      %v301 = vld [vmem:[%s215 + $0x20] sm:$0xf]
      %v302 = vld [vmem:[%s215 + $0x24] sm:$0xf]
      %v303 = vld [vmem:[%s215 + $0x28] sm:$0xf]
      %v304 = vld [vmem:[%s215 + $0x2c] sm:$0xf]
      %v305 = vld [vmem:[%s215 + $0x30] sm:$0xf]
      %v306 = vld [vmem:[%s215 + $0x34] sm:$0xf]
      %v307 = vld [vmem:[%s215 + $0x38] sm:$0xf]
      %v308 = vld [vmem:[%s215 + $0x3c] sm:$0xf]
      %v309 = vld [vmem:[%s215 + $0x40] sm:$0xf]
      %v310 = vld [vmem:[%s215 + $0x44] sm:$0xf]
      %v311 = vld [vmem:[%s215 + $0x48] sm:$0xf]
      %v312 = vld [vmem:[%s215 + $0x4c] sm:$0xf]
      %v313 = vld [vmem:[%s215 + $0x50] sm:$0xf]
      %v314 = vld [vmem:[%s215 + $0x54] sm:$0xf]
      %v315 = vld [vmem:[%s215 + $0x58] sm:$0xf]
      %v316 = vld [vmem:[%s215 + $0x5c] sm:$0xf]
      %v317 = vld [vmem:[%s215 + $0x60] sm:$0xf]
      %v318 = vld [vmem:[%s215 + $0x64] sm:$0xf]
      %v319 = vld [vmem:[%s215 + $0x68] sm:$0xf]
      %v320 = vld [vmem:[%s215 + $0x6c] sm:$0xf]
      %v321 = vld [vmem:[%s215 + $0x70] sm:$0xf]
      %v322 = vld [vmem:[%s215 + $0x74] sm:$0xf]
      %v323 = vld [vmem:[%s215 + $0x78] sm:$0xf]
      %v324 = vld [vmem:[%s215 + $0x7c] sm:$0xf]
      %v325 = vld [vmem:[%s215 + $0x80] sm:$0xf]
      %v326 = vld [vmem:[%s215 + $0x84] sm:$0xf]
      %v327 = vld [vmem:[%s215 + $0x88] sm:$0xf]
      %v328 = vld [vmem:[%s215 + $0x8c] sm:$0xf]
      %v329 = vld [vmem:[%s218] sm:$0x1]
      %v331 = vperm.slane %v329, 0
      %v397 = vunpack.c.l.b16 %v229
      %v398 = vunpack.c.h.b16 %v229
      %v399 = vunpack.c.l.b16 %v230
      %v400 = vunpack.c.l.b16 %v231
      %v401 = vunpack.c.h.b16 %v231
      %v402 = vunpack.c.l.b16 %v232
      %v403 = vunpack.c.l.b16 %v233
      %v404 = vunpack.c.h.b16 %v233
      %v405 = vunpack.c.l.b16 %v234
      %v406 = vunpack.c.l.b16 %v235
      %v407 = vunpack.c.h.b16 %v235
      %v408 = vunpack.c.l.b16 %v236
      %v409 = vunpack.c.l.b16 %v237
      %v410 = vunpack.c.h.b16 %v237
      %v411 = vunpack.c.l.b16 %v238
      %v412 = vunpack.c.l.b16 %v239
      %v413 = vunpack.c.h.b16 %v239
      %v414 = vunpack.c.l.b16 %v240
      %v415 = vunpack.c.l.b16 %v241
      %v416 = vunpack.c.h.b16 %v241
      %v417 = vunpack.c.l.b16 %v242
      %v418 = vunpack.c.l.b16 %v243
      %v419 = vunpack.c.h.b16 %v243
      %v420 = vunpack.c.l.b16 %v244
      %v421 = vunpack.c.l.b16 %v245
      %v422 = vunpack.c.h.b16 %v245
      %v423 = vunpack.c.l.b16 %v246
      %v424 = vunpack.c.l.b16 %v247
      %v425 = vunpack.c.h.b16 %v247
      %v426 = vunpack.c.l.b16 %v248
      %v427 = vunpack.c.l.b16 %v249
      %v428 = vunpack.c.h.b16 %v249
      %v429 = vunpack.c.l.b16 %v250
      %v430 = vunpack.c.l.b16 %v251
      %v431 = vunpack.c.h.b16 %v251
      %v432 = vunpack.c.l.b16 %v252
      %v433 = vunpack.c.l.b16 %v253
      %v434 = vunpack.c.h.b16 %v253
      %v435 = vunpack.c.l.b16 %v254
      %v436 = vunpack.c.l.b16 %v255
      %v437 = vunpack.c.h.b16 %v255
      %v438 = vunpack.c.l.b16 %v256
      %v439 = vunpack.c.l.b16 %v257
      %v440 = vunpack.c.h.b16 %v257
      %v441 = vunpack.c.l.b16 %v258
      %v442 = vunpack.c.l.b16 %v259
      %v443 = vunpack.c.h.b16 %v259
      %v444 = vunpack.c.l.b16 %v260
      %v445 = vunpack.c.l.b16 %v261
      %v446 = vunpack.c.h.b16 %v261
      %v447 = vunpack.c.l.b16 %v262
      %v448 = vunpack.c.l.b16 %v263
      %v449 = vunpack.c.h.b16 %v263
      %v450 = vunpack.c.l.b16 %v264
      %v451 = vunpack.c.l.b16 %v265
      %v452 = vunpack.c.h.b16 %v265
      %v453 = vunpack.c.l.b16 %v266
      %v454 = vunpack.c.l.b16 %v267
      %v455 = vunpack.c.h.b16 %v267
      %v456 = vunpack.c.l.b16 %v268
      %v457 = vunpack.c.l.b16 %v269
      %v458 = vunpack.c.h.b16 %v269
      %v459 = vunpack.c.l.b16 %v270
      %v460 = vunpack.c.l.b16 %v271
      %v461 = vunpack.c.h.b16 %v271
      %v462 = vunpack.c.l.b16 %v272
      %v463 = vunpack.c.l.b16 %v273
      %v464 = vunpack.c.h.b16 %v273
      %v465 = vunpack.c.l.b16 %v274
      %v466 = vunpack.c.l.b16 %v275
      %v467 = vunpack.c.h.b16 %v275
      %v468 = vunpack.c.l.b16 %v276
      %v469 = vunpack.c.l.b16 %v277
      %v470 = vunpack.c.h.b16 %v277
      %v471 = vunpack.c.l.b16 %v278
      %v472 = vunpack.c.l.b16 %v279
      %v473 = vunpack.c.h.b16 %v279
      %v474 = vunpack.c.l.b16 %v280
      %v475 = vunpack.c.l.b16 %v281
      %v476 = vunpack.c.h.b16 %v281
      %v477 = vunpack.c.l.b16 %v282
      %v478 = vunpack.c.l.b16 %v283
      %v479 = vunpack.c.h.b16 %v283
      %v480 = vunpack.c.l.b16 %v284
      %v481 = vunpack.c.l.b16 %v285
      %v482 = vunpack.c.h.b16 %v285
      %v483 = vunpack.c.l.b16 %v286
      %v484 = vunpack.c.l.b16 %v287
      %v485 = vunpack.c.h.b16 %v287
      %v486 = vunpack.c.l.b16 %v288
      %v487 = vunpack.c.l.b16 %v289
      %v488 = vunpack.c.h.b16 %v289
      %v489 = vunpack.c.l.b16 %v290
      %v490 = vunpack.c.l.b16 %v291
      %v491 = vunpack.c.h.b16 %v291
      %v492 = vunpack.c.l.b16 %v292
      %v493 = vpack.c.b16 %v400, %v397
      %v494 = vpack.c.b16 %v401, %v398
      %v495 = vpack.c.b16 %v402, %v399
      %v496 = vpack.c.b16 %v406, %v403
      %v497 = vpack.c.b16 %v407, %v404
      %v498 = vpack.c.b16 %v408, %v405
      %v499 = vpack.c.b16 %v412, %v409
      %v500 = vpack.c.b16 %v413, %v410
      %v501 = vpack.c.b16 %v414, %v411
      %v502 = vpack.c.b16 %v418, %v415
      %v503 = vpack.c.b16 %v419, %v416
      %v504 = vpack.c.b16 %v420, %v417
      %v505 = vpack.c.b16 %v424, %v421
      %v506 = vpack.c.b16 %v425, %v422
      %v507 = vpack.c.b16 %v426, %v423
      %v508 = vpack.c.b16 %v430, %v427
      %v509 = vpack.c.b16 %v431, %v428
      %v510 = vpack.c.b16 %v432, %v429
      %v511 = vpack.c.b16 %v436, %v433
      %v512 = vpack.c.b16 %v437, %v434
      %v513 = vpack.c.b16 %v438, %v435
      %v514 = vpack.c.b16 %v442, %v439
      %v515 = vpack.c.b16 %v443, %v440
      %v516 = vpack.c.b16 %v444, %v441
      %v517 = vpack.c.b16 %v448, %v445
      %v518 = vpack.c.b16 %v449, %v446
      %v519 = vpack.c.b16 %v450, %v447
      %v520 = vpack.c.b16 %v454, %v451
      %v521 = vpack.c.b16 %v455, %v452
      %v522 = vpack.c.b16 %v456, %v453
      %v523 = vpack.c.b16 %v460, %v457
      %v524 = vpack.c.b16 %v461, %v458
      %v525 = vpack.c.b16 %v462, %v459
      %v526 = vpack.c.b16 %v466, %v463
      %v527 = vpack.c.b16 %v467, %v464
      %v528 = vpack.c.b16 %v468, %v465
      %v529 = vpack.c.b16 %v472, %v469
      %v530 = vpack.c.b16 %v473, %v470
      %v531 = vpack.c.b16 %v474, %v471
      %v532 = vpack.c.b16 %v478, %v475
      %v533 = vpack.c.b16 %v479, %v476
      %v534 = vpack.c.b16 %v480, %v477
      %v535 = vpack.c.b16 %v484, %v481
      %v536 = vpack.c.b16 %v485, %v482
      %v537 = vpack.c.b16 %v486, %v483
      %v538 = vpack.c.b16 %v490, %v487
      %v539 = vpack.c.b16 %v491, %v488
      %v540 = vpack.c.b16 %v492, %v489
      %v609 = vunpack.c.l.b16 %v293
      %v610 = vunpack.c.l.b16 %v294
      %v611 = vunpack.c.l.b16 %v295
      %v612 = vunpack.c.l.b16 %v296
      %v613 = vunpack.c.l.b16 %v297
      %v614 = vunpack.c.l.b16 %v298
      %v615 = vunpack.c.l.b16 %v299
      %v616 = vunpack.c.l.b16 %v300
      %v617 = vunpack.c.l.b16 %v301
      %v618 = vunpack.c.l.b16 %v302
      %v619 = vunpack.c.l.b16 %v303
      %v620 = vunpack.c.l.b16 %v304
      %v621 = vunpack.c.l.b16 %v305
      %v622 = vunpack.c.l.b16 %v306
      %v623 = vunpack.c.l.b16 %v307
      %v624 = vunpack.c.l.b16 %v308
      %v625 = vunpack.c.l.b16 %v309
      %v626 = vunpack.c.l.b16 %v310
      %v627 = vunpack.c.l.b16 %v311
      %v628 = vunpack.c.l.b16 %v312
      %v629 = vunpack.c.l.b16 %v313
      %v630 = vunpack.c.l.b16 %v314
      %v631 = vunpack.c.l.b16 %v315
      %v632 = vunpack.c.l.b16 %v316
      %v633 = vunpack.c.l.b16 %v317
      %v634 = vunpack.c.l.b16 %v318
      %v635 = vunpack.c.l.b16 %v319
      %v636 = vunpack.c.l.b16 %v320
      %v637 = vunpack.c.l.b16 %v321
      %v638 = vunpack.c.l.b16 %v322
      %v639 = vunpack.c.l.b16 %v323
      %v640 = vunpack.c.l.b16 %v324
      %v641 = vunpack.c.l.b16 %v325
      %v642 = vunpack.c.l.b16 %v326
      %v643 = vunpack.c.l.b16 %v327
      %v644 = vunpack.c.l.b16 %v328
      %v645 = vpack.c.b16 %v610, %v609
      %v646 = vpack.c.b16 %v612, %v611
      %v647 = vpack.c.b16 %v614, %v613
      %v648 = vpack.c.b16 %v616, %v615
      %v649 = vpack.c.b16 %v618, %v617
      %v650 = vpack.c.b16 %v620, %v619
      %v651 = vpack.c.b16 %v622, %v621
      %v652 = vpack.c.b16 %v624, %v623
      %v653 = vpack.c.b16 %v626, %v625
      %v654 = vpack.c.b16 %v628, %v627
      %v655 = vpack.c.b16 %v630, %v629
      %v656 = vpack.c.b16 %v632, %v631
      %v657 = vpack.c.b16 %v634, %v633
      %v658 = vpack.c.b16 %v636, %v635
      %v659 = vpack.c.b16 %v638, %v637
      %v660 = vpack.c.b16 %v640, %v639
      %v661 = vpack.c.b16 %v642, %v641
      %v662 = vpack.c.b16 %v644, %v643
      %vm681 = vcmask 261120
      %v683 = vsel %vm681, %v495, 0
      %v686 = vsel %vm681, %v498, 0
      %v689 = vsel %vm681, %v501, 0
      %v692 = vsel %vm681, %v504, 0
      %v695 = vsel %vm681, %v507, 0
      %v698 = vsel %vm681, %v510, 0
      %v701 = vsel %vm681, %v513, 0
      %v704 = vsel %vm681, %v516, 0
      %v707 = vsel %vm681, %v519, 0
      %v710 = vsel %vm681, %v522, 0
      %v713 = vsel %vm681, %v525, 0
      %v716 = vsel %vm681, %v528, 0
      %v719 = vsel %vm681, %v531, 0
      %v722 = vsel %vm681, %v534, 0
      %v725 = vsel %vm681, %v537, 0
      %v728 = vsel %vm681, %v540, 0
      %730 = vmatpush.bf16.msra.mxu0 %v652
      %731 = vmatpush.bf16.msra.mxu0 %v651
      %732 = vmatpush.bf16.msra.mxu0 %v650
      %733 = vmatpush.bf16.msra.mxu0 %v649
      %734 = vmatpush.bf16.msra.mxu0 %v648
      %735 = vmatpush.bf16.msra.mxu0 %v647
      %736 = vmatpush.bf16.msra.mxu0 %v646
      %737 = vmatpush.bf16.msra.mxu0 %v645
      %738 = vmatmul.bf16.gmra.mxu0 %v493
      %v739 = vpop.f32.mrf.mxu0
      %v740 = vadd.f32 %v331, %v739
      %v741 = vpop.f32.mrf.mxu0
      %v742 = vadd.f32 %v331, %v741
      %743 = vmatmul.bf16.gmra.mxu0 %v496
      %v744 = vpop.f32.mrf.mxu0
      %v745 = vadd.f32 %v331, %v744
      %v746 = vpop.f32.mrf.mxu0
      %v747 = vadd.f32 %v331, %v746
      %748 = vmatmul.bf16.gmra.mxu0 %v499
      %v749 = vpop.f32.mrf.mxu0
      %v750 = vadd.f32 %v331, %v749
      %v751 = vpop.f32.mrf.mxu0
      %v752 = vadd.f32 %v331, %v751
      %753 = vmatmul.bf16.gmra.mxu0 %v502
      %v754 = vpop.f32.mrf.mxu0
      %v755 = vadd.f32 %v331, %v754
      %v756 = vpop.f32.mrf.mxu0
      %v757 = vadd.f32 %v331, %v756
      %758 = vmatmul.bf16.gmra.mxu0 %v505
      %v759 = vpop.f32.mrf.mxu0
      %v760 = vadd.f32 %v331, %v759
      %v761 = vpop.f32.mrf.mxu0
      %v762 = vadd.f32 %v331, %v761
      %763 = vmatmul.bf16.gmra.mxu0 %v508
      %v764 = vpop.f32.mrf.mxu0
      %v765 = vadd.f32 %v331, %v764
      %v766 = vpop.f32.mrf.mxu0
      %v767 = vadd.f32 %v331, %v766
      %768 = vmatmul.bf16.gmra.mxu0 %v511
      %v769 = vpop.f32.mrf.mxu0
      %v770 = vadd.f32 %v331, %v769
      %v771 = vpop.f32.mrf.mxu0
      %v772 = vadd.f32 %v331, %v771
      %773 = vmatmul.bf16.gmra.mxu0 %v514
      %v774 = vpop.f32.mrf.mxu0
      %v775 = vadd.f32 %v331, %v774
      %v776 = vpop.f32.mrf.mxu0
      %v777 = vadd.f32 %v331, %v776
      %778 = vmatmul.bf16.gmra.mxu0 %v517
      %v779 = vpop.f32.mrf.mxu0
      %v780 = vadd.f32 %v331, %v779
      %v781 = vpop.f32.mrf.mxu0
      %v782 = vadd.f32 %v331, %v781
      %783 = vmatmul.bf16.gmra.mxu0 %v520
      %v784 = vpop.f32.mrf.mxu0
      %v785 = vadd.f32 %v331, %v784
      %v786 = vpop.f32.mrf.mxu0
      %v787 = vadd.f32 %v331, %v786
      %788 = vmatmul.bf16.gmra.mxu0 %v523
      %v789 = vpop.f32.mrf.mxu0
      %v790 = vadd.f32 %v331, %v789
      %v791 = vpop.f32.mrf.mxu0
      %v792 = vadd.f32 %v331, %v791
      %793 = vmatmul.bf16.gmra.mxu0 %v526
      %v794 = vpop.f32.mrf.mxu0
      %v795 = vadd.f32 %v331, %v794
      %v796 = vpop.f32.mrf.mxu0
      %v797 = vadd.f32 %v331, %v796
      %798 = vmatmul.bf16.gmra.mxu0 %v529
      %v799 = vpop.f32.mrf.mxu0
      %v800 = vadd.f32 %v331, %v799
      %v801 = vpop.f32.mrf.mxu0
      %v802 = vadd.f32 %v331, %v801
      %803 = vmatmul.bf16.gmra.mxu0 %v532
      %v804 = vpop.f32.mrf.mxu0
      %v805 = vadd.f32 %v331, %v804
      %v806 = vpop.f32.mrf.mxu0
      %v807 = vadd.f32 %v331, %v806
      %808 = vmatmul.bf16.gmra.mxu0 %v535
      %v809 = vpop.f32.mrf.mxu0
      %v810 = vadd.f32 %v331, %v809
      %v811 = vpop.f32.mrf.mxu0
      %v812 = vadd.f32 %v331, %v811
      %813 = vmatmul.bf16.gmra.mxu0 %v538
      %v814 = vpop.f32.mrf.mxu0
      %v815 = vadd.f32 %v331, %v814
      %v816 = vpop.f32.mrf.mxu0
      %v817 = vadd.f32 %v331, %v816
      %818 = vdwg.mxu0
      %819 = vmatpush.bf16.msra.mxu0 %v660
      %820 = vmatpush.bf16.msra.mxu0 %v659
      %821 = vmatpush.bf16.msra.mxu0 %v658
      %822 = vmatpush.bf16.msra.mxu0 %v657
      %823 = vmatpush.bf16.msra.mxu0 %v656
      %824 = vmatpush.bf16.msra.mxu0 %v655
      %825 = vmatpush.bf16.msra.mxu0 %v654
      %826 = vmatpush.bf16.msra.mxu0 %v653
      %827 = vmatmul.bf16.gmra.mxu0 %v494
      %v828 = vpop.f32.mrf.mxu0
      %v829 = vadd.f32 %v740, %v828
      %v830 = vpop.f32.mrf.mxu0
      %v831 = vadd.f32 %v742, %v830
      %832 = vmatmul.bf16.gmra.mxu0 %v497
      %v833 = vpop.f32.mrf.mxu0
      %v834 = vadd.f32 %v745, %v833
      %v835 = vpop.f32.mrf.mxu0
      %v836 = vadd.f32 %v747, %v835
      %837 = vmatmul.bf16.gmra.mxu0 %v500
      %v838 = vpop.f32.mrf.mxu0
      %v839 = vadd.f32 %v750, %v838
      %v840 = vpop.f32.mrf.mxu0
      %v841 = vadd.f32 %v752, %v840
      %842 = vmatmul.bf16.gmra.mxu0 %v503
      %v843 = vpop.f32.mrf.mxu0
      %v844 = vadd.f32 %v755, %v843
      %v845 = vpop.f32.mrf.mxu0
      %v846 = vadd.f32 %v757, %v845
      %847 = vmatmul.bf16.gmra.mxu0 %v506
      %v848 = vpop.f32.mrf.mxu0
      %v849 = vadd.f32 %v760, %v848
      %v850 = vpop.f32.mrf.mxu0
      %v851 = vadd.f32 %v762, %v850
      %852 = vmatmul.bf16.gmra.mxu0 %v509
      %v853 = vpop.f32.mrf.mxu0
      %v854 = vadd.f32 %v765, %v853
      %v855 = vpop.f32.mrf.mxu0
      %v856 = vadd.f32 %v767, %v855
      %857 = vmatmul.bf16.gmra.mxu0 %v512
      %v858 = vpop.f32.mrf.mxu0
      %v859 = vadd.f32 %v770, %v858
      %v860 = vpop.f32.mrf.mxu0
      %v861 = vadd.f32 %v772, %v860
      %862 = vmatmul.bf16.gmra.mxu0 %v515
      %v863 = vpop.f32.mrf.mxu0
      %v864 = vadd.f32 %v775, %v863
      %v865 = vpop.f32.mrf.mxu0
      %v866 = vadd.f32 %v777, %v865
      %867 = vmatmul.bf16.gmra.mxu0 %v518
      %v868 = vpop.f32.mrf.mxu0
      %v869 = vadd.f32 %v780, %v868
      %v870 = vpop.f32.mrf.mxu0
      %v871 = vadd.f32 %v782, %v870
      %872 = vmatmul.bf16.gmra.mxu0 %v521
      %v873 = vpop.f32.mrf.mxu0
      %v874 = vadd.f32 %v785, %v873
      %v875 = vpop.f32.mrf.mxu0
      %v876 = vadd.f32 %v787, %v875
      %877 = vmatmul.bf16.gmra.mxu0 %v524
      %v878 = vpop.f32.mrf.mxu0
      %v879 = vadd.f32 %v790, %v878
      %v880 = vpop.f32.mrf.mxu0
      %v881 = vadd.f32 %v792, %v880
      %882 = vmatmul.bf16.gmra.mxu0 %v527
      %v883 = vpop.f32.mrf.mxu0
      %v884 = vadd.f32 %v795, %v883
      %v885 = vpop.f32.mrf.mxu0
      %v886 = vadd.f32 %v797, %v885
      %887 = vmatmul.bf16.gmra.mxu0 %v530
      %v888 = vpop.f32.mrf.mxu0
      %v889 = vadd.f32 %v800, %v888
      %v890 = vpop.f32.mrf.mxu0
      %v891 = vadd.f32 %v802, %v890
      %892 = vmatmul.bf16.gmra.mxu0 %v533
      %v893 = vpop.f32.mrf.mxu0
      %v894 = vadd.f32 %v805, %v893
      %v895 = vpop.f32.mrf.mxu0
      %v896 = vadd.f32 %v807, %v895
      %897 = vmatmul.bf16.gmra.mxu0 %v536
      %v898 = vpop.f32.mrf.mxu0
      %v899 = vadd.f32 %v810, %v898
      %v900 = vpop.f32.mrf.mxu0
      %v901 = vadd.f32 %v812, %v900
      %902 = vmatmul.bf16.gmra.mxu0 %v539
      %v903 = vpop.f32.mrf.mxu0
      %v904 = vadd.f32 %v815, %v903
      %v905 = vpop.f32.mrf.mxu0
      %v906 = vadd.f32 %v817, %v905
      %907 = vdwg.mxu0
      %908 = vmatpush.bf16.msra.mxu0 0
      %909 = vmatpush.bf16.msra.mxu0 0
      %910 = vmatpush.bf16.msra.mxu0 0
      %911 = vmatpush.bf16.msra.mxu0 0
      %912 = vmatpush.bf16.msra.mxu0 0
      %913 = vmatpush.bf16.msra.mxu0 0
      %914 = vmatpush.bf16.msra.mxu0 %v662
      %915 = vmatpush.bf16.msra.mxu0 %v661
      %916 = vmatmul.bf16.gmra.mxu0 %v683
      %v917 = vpop.f32.mrf.mxu0
      %v918 = vadd.f32 %v829, %v917
      %v919 = vpop.f32.mrf.mxu0
      %v920 = vadd.f32 %v831, %v919
      %921 = vmatmul.bf16.gmra.mxu0 %v686
      %v922 = vpop.f32.mrf.mxu0
      %v923 = vadd.f32 %v834, %v922
      %v924 = vpop.f32.mrf.mxu0
      %v925 = vadd.f32 %v836, %v924
      %926 = vmatmul.bf16.gmra.mxu0 %v689
      %v927 = vpop.f32.mrf.mxu0
      %v928 = vadd.f32 %v839, %v927
      %v929 = vpop.f32.mrf.mxu0
      %v930 = vadd.f32 %v841, %v929
      %931 = vmatmul.bf16.gmra.mxu0 %v692
      %v932 = vpop.f32.mrf.mxu0
      %v933 = vadd.f32 %v844, %v932
      %v934 = vpop.f32.mrf.mxu0
      %v935 = vadd.f32 %v846, %v934
      %936 = vmatmul.bf16.gmra.mxu0 %v695
      %v937 = vpop.f32.mrf.mxu0
      %v938 = vadd.f32 %v849, %v937
      %v939 = vpop.f32.mrf.mxu0
      %v940 = vadd.f32 %v851, %v939
      %941 = vmatmul.bf16.gmra.mxu0 %v698
      %v942 = vpop.f32.mrf.mxu0
      %v943 = vadd.f32 %v854, %v942
      %v944 = vpop.f32.mrf.mxu0
      %v945 = vadd.f32 %v856, %v944
      %946 = vmatmul.bf16.gmra.mxu0 %v701
      %v947 = vpop.f32.mrf.mxu0
      %v948 = vadd.f32 %v859, %v947
      %v949 = vpop.f32.mrf.mxu0
      %v950 = vadd.f32 %v861, %v949
      %951 = vmatmul.bf16.gmra.mxu0 %v704
      %v952 = vpop.f32.mrf.mxu0
      %v953 = vadd.f32 %v864, %v952
      %v954 = vpop.f32.mrf.mxu0
      %v955 = vadd.f32 %v866, %v954
      %956 = vmatmul.bf16.gmra.mxu0 %v707
      %v957 = vpop.f32.mrf.mxu0
      %v958 = vadd.f32 %v869, %v957
      %v959 = vpop.f32.mrf.mxu0
      %v960 = vadd.f32 %v871, %v959
      %961 = vmatmul.bf16.gmra.mxu0 %v710
      %v962 = vpop.f32.mrf.mxu0
      %v963 = vadd.f32 %v874, %v962
      %v964 = vpop.f32.mrf.mxu0
      %v965 = vadd.f32 %v876, %v964
      %966 = vmatmul.bf16.gmra.mxu0 %v713
      %v967 = vpop.f32.mrf.mxu0
      %v968 = vadd.f32 %v879, %v967
      %v969 = vpop.f32.mrf.mxu0
      %v970 = vadd.f32 %v881, %v969
      %971 = vmatmul.bf16.gmra.mxu0 %v716
      %v972 = vpop.f32.mrf.mxu0
      %v973 = vadd.f32 %v884, %v972
      %v974 = vpop.f32.mrf.mxu0
      %v975 = vadd.f32 %v886, %v974
      %976 = vmatmul.bf16.gmra.mxu0 %v719
      %v977 = vpop.f32.mrf.mxu0
      %v978 = vadd.f32 %v889, %v977
      %v979 = vpop.f32.mrf.mxu0
      %v980 = vadd.f32 %v891, %v979
      %981 = vmatmul.bf16.gmra.mxu0 %v722
      %v982 = vpop.f32.mrf.mxu0
      %v983 = vadd.f32 %v894, %v982
      %v984 = vpop.f32.mrf.mxu0
      %v985 = vadd.f32 %v896, %v984
      %986 = vmatmul.bf16.gmra.mxu0 %v725
      %v987 = vpop.f32.mrf.mxu0
      %v988 = vadd.f32 %v899, %v987
      %v989 = vpop.f32.mrf.mxu0
      %v990 = vadd.f32 %v901, %v989
      %991 = vmatmul.bf16.gmra.mxu0 %v728
      %v992 = vpop.f32.mrf.mxu0
      %v993 = vadd.f32 %v904, %v992
      %v994 = vpop.f32.mrf.mxu0
      %v995 = vadd.f32 %v906, %v994
      %996 = vdwg.mxu0
      %v997 = vxor.u32 %v918, 2147483648
      %v998 = vxor.u32 %v920, 2147483648
      %v999 = vxor.u32 %v923, 2147483648
      %v1000 = vxor.u32 %v925, 2147483648
      %v1001 = vxor.u32 %v928, 2147483648
      %v1002 = vxor.u32 %v930, 2147483648
      %v1003 = vxor.u32 %v933, 2147483648
      %v1004 = vxor.u32 %v935, 2147483648
      %v1005 = vxor.u32 %v938, 2147483648
      %v1006 = vxor.u32 %v940, 2147483648
      %v1007 = vxor.u32 %v943, 2147483648
      %v1008 = vxor.u32 %v945, 2147483648
      %v1009 = vxor.u32 %v948, 2147483648
      %v1010 = vxor.u32 %v950, 2147483648
      %v1011 = vxor.u32 %v953, 2147483648
      %v1012 = vxor.u32 %v955, 2147483648
      %v1013 = vxor.u32 %v958, 2147483648
      %v1014 = vxor.u32 %v960, 2147483648
      %v1015 = vxor.u32 %v963, 2147483648
      %v1016 = vxor.u32 %v965, 2147483648
      %v1017 = vxor.u32 %v968, 2147483648
      %v1018 = vxor.u32 %v970, 2147483648
      %v1019 = vxor.u32 %v973, 2147483648
      %v1020 = vxor.u32 %v975, 2147483648
      %v1021 = vxor.u32 %v978, 2147483648
      %v1022 = vxor.u32 %v980, 2147483648
      %v1023 = vxor.u32 %v983, 2147483648
      %v1024 = vxor.u32 %v985, 2147483648
      %v1025 = vxor.u32 %v988, 2147483648
      %v1026 = vxor.u32 %v990, 2147483648
      %v1027 = vxor.u32 %v993, 2147483648
      %v1028 = vxor.u32 %v995, 2147483648
      %v1029 = vmul.f32 %v997, 1.442695
      %v1030 = vpow.pop %v1029
      %v1031 = vmul.f32 %v998, 1.442695
      %v1032 = vpow.pop %v1031
      %v1033 = vmul.f32 %v999, 1.442695
      %v1034 = vpow.pop %v1033
      %v1035 = vmul.f32 %v1000, 1.442695
      %v1036 = vpow.pop %v1035
      %v1037 = vmul.f32 %v1001, 1.442695
      %v1038 = vpow.pop %v1037
      %v1039 = vmul.f32 %v1002, 1.442695
      %v1040 = vpow.pop %v1039
      %v1041 = vmul.f32 %v1003, 1.442695
      %v1042 = vpow.pop %v1041
      %v1043 = vmul.f32 %v1004, 1.442695
      %v1044 = vpow.pop %v1043
      %v1045 = vmul.f32 %v1005, 1.442695
      %v1046 = vpow.pop %v1045
      %v1047 = vmul.f32 %v1006, 1.442695
      %v1048 = vpow.pop %v1047
      %v1049 = vmul.f32 %v1007, 1.442695
      %v1050 = vpow.pop %v1049
      %v1051 = vmul.f32 %v1008, 1.442695
      %v1052 = vpow.pop %v1051
      %v1053 = vmul.f32 %v1009, 1.442695
      %v1054 = vpow.pop %v1053
      %v1055 = vmul.f32 %v1010, 1.442695
      %v1056 = vpow.pop %v1055
      %v1057 = vmul.f32 %v1011, 1.442695
      %v1058 = vpow.pop %v1057
      %v1059 = vmul.f32 %v1012, 1.442695
      %v1060 = vpow.pop %v1059
      %v1061 = vmul.f32 %v1013, 1.442695
      %v1062 = vpow.pop %v1061
      %v1063 = vmul.f32 %v1014, 1.442695
      %v1064 = vpow.pop %v1063
      %v1065 = vmul.f32 %v1015, 1.442695
      %v1066 = vpow.pop %v1065
      %v1067 = vmul.f32 %v1016, 1.442695
      %v1068 = vpow.pop %v1067
      %v1069 = vmul.f32 %v1017, 1.442695
      %v1070 = vpow.pop %v1069
      %v1071 = vmul.f32 %v1018, 1.442695
      %v1072 = vpow.pop %v1071
      %v1073 = vmul.f32 %v1019, 1.442695
      %v1074 = vpow.pop %v1073
      %v1075 = vmul.f32 %v1020, 1.442695
      %v1076 = vpow.pop %v1075
      %v1077 = vmul.f32 %v1021, 1.442695
      %v1078 = vpow.pop %v1077
      %v1079 = vmul.f32 %v1022, 1.442695
      %v1080 = vpow.pop %v1079
      %v1081 = vmul.f32 %v1023, 1.442695
      %v1082 = vpow.pop %v1081
      %v1083 = vmul.f32 %v1024, 1.442695
      %v1084 = vpow.pop %v1083
      %v1085 = vmul.f32 %v1025, 1.442695
      %v1086 = vpow.pop %v1085
      %v1087 = vmul.f32 %v1026, 1.442695
      %v1088 = vpow.pop %v1087
      %v1089 = vmul.f32 %v1027, 1.442695
      %v1090 = vpow.pop %v1089
      %v1091 = vmul.f32 %v1028, 1.442695
      %v1092 = vpow.pop %v1091
      %v1093 = vadd.f32 %v1030, 1.0
      %v1094 = vadd.f32 %v1032, 1.0
      %v1095 = vadd.f32 %v1034, 1.0
      %v1096 = vadd.f32 %v1036, 1.0
      %v1097 = vadd.f32 %v1038, 1.0
      %v1098 = vadd.f32 %v1040, 1.0
      %v1099 = vadd.f32 %v1042, 1.0
      %v1100 = vadd.f32 %v1044, 1.0
      %v1101 = vadd.f32 %v1046, 1.0
      %v1102 = vadd.f32 %v1048, 1.0
      %v1103 = vadd.f32 %v1050, 1.0
      %v1104 = vadd.f32 %v1052, 1.0
      %v1105 = vadd.f32 %v1054, 1.0
      %v1106 = vadd.f32 %v1056, 1.0
      %v1107 = vadd.f32 %v1058, 1.0
      %v1108 = vadd.f32 %v1060, 1.0
      %v1109 = vadd.f32 %v1062, 1.0
      %v1110 = vadd.f32 %v1064, 1.0
      %v1111 = vadd.f32 %v1066, 1.0
      %v1112 = vadd.f32 %v1068, 1.0
      %v1113 = vadd.f32 %v1070, 1.0
      %v1114 = vadd.f32 %v1072, 1.0
      %v1115 = vadd.f32 %v1074, 1.0
      %v1116 = vadd.f32 %v1076, 1.0
      %v1117 = vadd.f32 %v1078, 1.0
      %v1118 = vadd.f32 %v1080, 1.0
      %v1119 = vadd.f32 %v1082, 1.0
      %v1120 = vadd.f32 %v1084, 1.0
      %v1121 = vadd.f32 %v1086, 1.0
      %v1122 = vadd.f32 %v1088, 1.0
      %v1123 = vadd.f32 %v1090, 1.0
      %v1124 = vadd.f32 %v1092, 1.0
      %v1125 = vrcp.pop %v1093
      %v1126 = vmul.f32 %v1093, %v1125
      %v1127 = vsub.f32 1.0, %v1126
      %v1128 = vmul.f32 %v1125, %v1127
      %v1129 = vadd.f32 %v1125, %v1128
      %vm1130 = vweird.f32 %v1093
      %vm1131 = vweird.f32 %v1125
      %vm1132 = vmor %vm1130, %vm1131
      %v1133 = vsel %vm1132, %v1125, %v1129
      %v1134 = vand.u32 2147483647, %v1093
      %vm1135 = vcmp.eq.f32.partialorder %v1134, 8.507059e+37
      %v1136 = vand.u32 %v1093, 2147483648
      %v1137 = vor.u32 1.1754944e-38, %v1136
      %v1138 = vsel %vm1135, %v1137, %v1133
      %v1139 = vmul.f32 1.0, %v1138
      %v1140 = vrcp.pop %v1094
      %v1141 = vmul.f32 %v1094, %v1140
      %v1142 = vsub.f32 1.0, %v1141
      %v1143 = vmul.f32 %v1140, %v1142
      %v1144 = vadd.f32 %v1140, %v1143
      %vm1145 = vweird.f32 %v1094
      %vm1146 = vweird.f32 %v1140
      %vm1147 = vmor %vm1145, %vm1146
      %v1148 = vsel %vm1147, %v1140, %v1144
      %v1149 = vand.u32 2147483647, %v1094
      %vm1150 = vcmp.eq.f32.partialorder %v1149, 8.507059e+37
      %v1151 = vand.u32 %v1094, 2147483648
      %v1152 = vor.u32 1.1754944e-38, %v1151
      %v1153 = vsel %vm1150, %v1152, %v1148
      %v1154 = vmul.f32 1.0, %v1153
      %v1155 = vrcp.pop %v1095
      %v1156 = vmul.f32 %v1095, %v1155
      %v1157 = vsub.f32 1.0, %v1156
      %v1158 = vmul.f32 %v1155, %v1157
      %v1159 = vadd.f32 %v1155, %v1158
      %vm1160 = vweird.f32 %v1095
      %vm1161 = vweird.f32 %v1155
      %vm1162 = vmor %vm1160, %vm1161
      %v1163 = vsel %vm1162, %v1155, %v1159
      %v1164 = vand.u32 2147483647, %v1095
      %vm1165 = vcmp.eq.f32.partialorder %v1164, 8.507059e+37
      %v1166 = vand.u32 %v1095, 2147483648
      %v1167 = vor.u32 1.1754944e-38, %v1166
      %v1168 = vsel %vm1165, %v1167, %v1163
      %v1169 = vmul.f32 1.0, %v1168
      %v1170 = vrcp.pop %v1096
      %v1171 = vmul.f32 %v1096, %v1170
      %v1172 = vsub.f32 1.0, %v1171
      %v1173 = vmul.f32 %v1170, %v1172
      %v1174 = vadd.f32 %v1170, %v1173
      %vm1175 = vweird.f32 %v1096
      %vm1176 = vweird.f32 %v1170
      %vm1177 = vmor %vm1175, %vm1176
      %v1178 = vsel %vm1177, %v1170, %v1174
      %v1179 = vand.u32 2147483647, %v1096
      %vm1180 = vcmp.eq.f32.partialorder %v1179, 8.507059e+37
      %v1181 = vand.u32 %v1096, 2147483648
      %v1182 = vor.u32 1.1754944e-38, %v1181
      %v1183 = vsel %vm1180, %v1182, %v1178
      %v1184 = vmul.f32 1.0, %v1183
      %v1185 = vrcp.pop %v1097
      %v1186 = vmul.f32 %v1097, %v1185
      %v1187 = vsub.f32 1.0, %v1186
      %v1188 = vmul.f32 %v1185, %v1187
      %v1189 = vadd.f32 %v1185, %v1188
      %vm1190 = vweird.f32 %v1097
      %vm1191 = vweird.f32 %v1185
      %vm1192 = vmor %vm1190, %vm1191
      %v1193 = vsel %vm1192, %v1185, %v1189
      %v1194 = vand.u32 2147483647, %v1097
      %vm1195 = vcmp.eq.f32.partialorder %v1194, 8.507059e+37
      %v1196 = vand.u32 %v1097, 2147483648
      %v1197 = vor.u32 1.1754944e-38, %v1196
      %v1198 = vsel %vm1195, %v1197, %v1193
      %v1199 = vmul.f32 1.0, %v1198
      %v1200 = vrcp.pop %v1098
      %v1201 = vmul.f32 %v1098, %v1200
      %v1202 = vsub.f32 1.0, %v1201
      %v1203 = vmul.f32 %v1200, %v1202
      %v1204 = vadd.f32 %v1200, %v1203
      %vm1205 = vweird.f32 %v1098
      %vm1206 = vweird.f32 %v1200
      %vm1207 = vmor %vm1205, %vm1206
      %v1208 = vsel %vm1207, %v1200, %v1204
      %v1209 = vand.u32 2147483647, %v1098
      %vm1210 = vcmp.eq.f32.partialorder %v1209, 8.507059e+37
      %v1211 = vand.u32 %v1098, 2147483648
      %v1212 = vor.u32 1.1754944e-38, %v1211
      %v1213 = vsel %vm1210, %v1212, %v1208
      %v1214 = vmul.f32 1.0, %v1213
      %v1215 = vrcp.pop %v1099
      %v1216 = vmul.f32 %v1099, %v1215
      %v1217 = vsub.f32 1.0, %v1216
      %v1218 = vmul.f32 %v1215, %v1217
      %v1219 = vadd.f32 %v1215, %v1218
      %vm1220 = vweird.f32 %v1099
      %vm1221 = vweird.f32 %v1215
      %vm1222 = vmor %vm1220, %vm1221
      %v1223 = vsel %vm1222, %v1215, %v1219
      %v1224 = vand.u32 2147483647, %v1099
      %vm1225 = vcmp.eq.f32.partialorder %v1224, 8.507059e+37
      %v1226 = vand.u32 %v1099, 2147483648
      %v1227 = vor.u32 1.1754944e-38, %v1226
      %v1228 = vsel %vm1225, %v1227, %v1223
      %v1229 = vmul.f32 1.0, %v1228
      %v1230 = vrcp.pop %v1100
      %v1231 = vmul.f32 %v1100, %v1230
      %v1232 = vsub.f32 1.0, %v1231
      %v1233 = vmul.f32 %v1230, %v1232
      %v1234 = vadd.f32 %v1230, %v1233
      %vm1235 = vweird.f32 %v1100
      %vm1236 = vweird.f32 %v1230
      %vm1237 = vmor %vm1235, %vm1236
      %v1238 = vsel %vm1237, %v1230, %v1234
      %v1239 = vand.u32 2147483647, %v1100
      %vm1240 = vcmp.eq.f32.partialorder %v1239, 8.507059e+37
      %v1241 = vand.u32 %v1100, 2147483648
      %v1242 = vor.u32 1.1754944e-38, %v1241
      %v1243 = vsel %vm1240, %v1242, %v1238
      %v1244 = vmul.f32 1.0, %v1243
      %v1245 = vrcp.pop %v1101
      %v1246 = vmul.f32 %v1101, %v1245
      %v1247 = vsub.f32 1.0, %v1246
      %v1248 = vmul.f32 %v1245, %v1247
      %v1249 = vadd.f32 %v1245, %v1248
      %vm1250 = vweird.f32 %v1101
      %vm1251 = vweird.f32 %v1245
      %vm1252 = vmor %vm1250, %vm1251
      %v1253 = vsel %vm1252, %v1245, %v1249
      %v1254 = vand.u32 2147483647, %v1101
      %vm1255 = vcmp.eq.f32.partialorder %v1254, 8.507059e+37
      %v1256 = vand.u32 %v1101, 2147483648
      %v1257 = vor.u32 1.1754944e-38, %v1256
      %v1258 = vsel %vm1255, %v1257, %v1253
      %v1259 = vmul.f32 1.0, %v1258
      %v1260 = vrcp.pop %v1102
      %v1261 = vmul.f32 %v1102, %v1260
      %v1262 = vsub.f32 1.0, %v1261
      %v1263 = vmul.f32 %v1260, %v1262
      %v1264 = vadd.f32 %v1260, %v1263
      %vm1265 = vweird.f32 %v1102
      %vm1266 = vweird.f32 %v1260
      %vm1267 = vmor %vm1265, %vm1266
      %v1268 = vsel %vm1267, %v1260, %v1264
      %v1269 = vand.u32 2147483647, %v1102
      %vm1270 = vcmp.eq.f32.partialorder %v1269, 8.507059e+37
      %v1271 = vand.u32 %v1102, 2147483648
      %v1272 = vor.u32 1.1754944e-38, %v1271
      %v1273 = vsel %vm1270, %v1272, %v1268
      %v1274 = vmul.f32 1.0, %v1273
      %v1275 = vrcp.pop %v1103
      %v1276 = vmul.f32 %v1103, %v1275
      %v1277 = vsub.f32 1.0, %v1276
      %v1278 = vmul.f32 %v1275, %v1277
      %v1279 = vadd.f32 %v1275, %v1278
      %vm1280 = vweird.f32 %v1103
      %vm1281 = vweird.f32 %v1275
      %vm1282 = vmor %vm1280, %vm1281
      %v1283 = vsel %vm1282, %v1275, %v1279
      %v1284 = vand.u32 2147483647, %v1103
      %vm1285 = vcmp.eq.f32.partialorder %v1284, 8.507059e+37
      %v1286 = vand.u32 %v1103, 2147483648
      %v1287 = vor.u32 1.1754944e-38, %v1286
      %v1288 = vsel %vm1285, %v1287, %v1283
      %v1289 = vmul.f32 1.0, %v1288
      %v1290 = vrcp.pop %v1104
      %v1291 = vmul.f32 %v1104, %v1290
      %v1292 = vsub.f32 1.0, %v1291
      %v1293 = vmul.f32 %v1290, %v1292
      %v1294 = vadd.f32 %v1290, %v1293
      %vm1295 = vweird.f32 %v1104
      %vm1296 = vweird.f32 %v1290
      %vm1297 = vmor %vm1295, %vm1296
      %v1298 = vsel %vm1297, %v1290, %v1294
      %v1299 = vand.u32 2147483647, %v1104
      %vm1300 = vcmp.eq.f32.partialorder %v1299, 8.507059e+37
      %v1301 = vand.u32 %v1104, 2147483648
      %v1302 = vor.u32 1.1754944e-38, %v1301
      %v1303 = vsel %vm1300, %v1302, %v1298
      %v1304 = vmul.f32 1.0, %v1303
      %v1305 = vrcp.pop %v1105
      %v1306 = vmul.f32 %v1105, %v1305
      %v1307 = vsub.f32 1.0, %v1306
      %v1308 = vmul.f32 %v1305, %v1307
      %v1309 = vadd.f32 %v1305, %v1308
      %vm1310 = vweird.f32 %v1105
      %vm1311 = vweird.f32 %v1305
      %vm1312 = vmor %vm1310, %vm1311
      %v1313 = vsel %vm1312, %v1305, %v1309
      %v1314 = vand.u32 2147483647, %v1105
      %vm1315 = vcmp.eq.f32.partialorder %v1314, 8.507059e+37
      %v1316 = vand.u32 %v1105, 2147483648
      %v1317 = vor.u32 1.1754944e-38, %v1316
      %v1318 = vsel %vm1315, %v1317, %v1313
      %v1319 = vmul.f32 1.0, %v1318
      %v1320 = vrcp.pop %v1106
      %v1321 = vmul.f32 %v1106, %v1320
      %v1322 = vsub.f32 1.0, %v1321
      %v1323 = vmul.f32 %v1320, %v1322
      %v1324 = vadd.f32 %v1320, %v1323
      %vm1325 = vweird.f32 %v1106
      %vm1326 = vweird.f32 %v1320
      %vm1327 = vmor %vm1325, %vm1326
      %v1328 = vsel %vm1327, %v1320, %v1324
      %v1329 = vand.u32 2147483647, %v1106
      %vm1330 = vcmp.eq.f32.partialorder %v1329, 8.507059e+37
      %v1331 = vand.u32 %v1106, 2147483648
      %v1332 = vor.u32 1.1754944e-38, %v1331
      %v1333 = vsel %vm1330, %v1332, %v1328
      %v1334 = vmul.f32 1.0, %v1333
      %v1335 = vrcp.pop %v1107
      %v1336 = vmul.f32 %v1107, %v1335
      %v1337 = vsub.f32 1.0, %v1336
      %v1338 = vmul.f32 %v1335, %v1337
      %v1339 = vadd.f32 %v1335, %v1338
      %vm1340 = vweird.f32 %v1107
      %vm1341 = vweird.f32 %v1335
      %vm1342 = vmor %vm1340, %vm1341
      %v1343 = vsel %vm1342, %v1335, %v1339
      %v1344 = vand.u32 2147483647, %v1107
      %vm1345 = vcmp.eq.f32.partialorder %v1344, 8.507059e+37
      %v1346 = vand.u32 %v1107, 2147483648
      %v1347 = vor.u32 1.1754944e-38, %v1346
      %v1348 = vsel %vm1345, %v1347, %v1343
      %v1349 = vmul.f32 1.0, %v1348
      %v1350 = vrcp.pop %v1108
      %v1351 = vmul.f32 %v1108, %v1350
      %v1352 = vsub.f32 1.0, %v1351
      %v1353 = vmul.f32 %v1350, %v1352
      %v1354 = vadd.f32 %v1350, %v1353
      %vm1355 = vweird.f32 %v1108
      %vm1356 = vweird.f32 %v1350
      %vm1357 = vmor %vm1355, %vm1356
      %v1358 = vsel %vm1357, %v1350, %v1354
      %v1359 = vand.u32 2147483647, %v1108
      %vm1360 = vcmp.eq.f32.partialorder %v1359, 8.507059e+37
      %v1361 = vand.u32 %v1108, 2147483648
      %v1362 = vor.u32 1.1754944e-38, %v1361
      %v1363 = vsel %vm1360, %v1362, %v1358
      %v1364 = vmul.f32 1.0, %v1363
      %v1365 = vrcp.pop %v1109
      %v1366 = vmul.f32 %v1109, %v1365
      %v1367 = vsub.f32 1.0, %v1366
      %v1368 = vmul.f32 %v1365, %v1367
      %v1369 = vadd.f32 %v1365, %v1368
      %vm1370 = vweird.f32 %v1109
      %vm1371 = vweird.f32 %v1365
      %vm1372 = vmor %vm1370, %vm1371
      %v1373 = vsel %vm1372, %v1365, %v1369
      %v1374 = vand.u32 2147483647, %v1109
      %vm1375 = vcmp.eq.f32.partialorder %v1374, 8.507059e+37
      %v1376 = vand.u32 %v1109, 2147483648
      %v1377 = vor.u32 1.1754944e-38, %v1376
      %v1378 = vsel %vm1375, %v1377, %v1373
      %v1379 = vmul.f32 1.0, %v1378
      %v1380 = vrcp.pop %v1110
      %v1381 = vmul.f32 %v1110, %v1380
      %v1382 = vsub.f32 1.0, %v1381
      %v1383 = vmul.f32 %v1380, %v1382
      %v1384 = vadd.f32 %v1380, %v1383
      %vm1385 = vweird.f32 %v1110
      %vm1386 = vweird.f32 %v1380
      %vm1387 = vmor %vm1385, %vm1386
      %v1388 = vsel %vm1387, %v1380, %v1384
      %v1389 = vand.u32 2147483647, %v1110
      %vm1390 = vcmp.eq.f32.partialorder %v1389, 8.507059e+37
      %v1391 = vand.u32 %v1110, 2147483648
      %v1392 = vor.u32 1.1754944e-38, %v1391
      %v1393 = vsel %vm1390, %v1392, %v1388
      %v1394 = vmul.f32 1.0, %v1393
      %v1395 = vrcp.pop %v1111
      %v1396 = vmul.f32 %v1111, %v1395
      %v1397 = vsub.f32 1.0, %v1396
      %v1398 = vmul.f32 %v1395, %v1397
      %v1399 = vadd.f32 %v1395, %v1398
      %vm1400 = vweird.f32 %v1111
      %vm1401 = vweird.f32 %v1395
      %vm1402 = vmor %vm1400, %vm1401
      %v1403 = vsel %vm1402, %v1395, %v1399
      %v1404 = vand.u32 2147483647, %v1111
      %vm1405 = vcmp.eq.f32.partialorder %v1404, 8.507059e+37
      %v1406 = vand.u32 %v1111, 2147483648
      %v1407 = vor.u32 1.1754944e-38, %v1406
      %v1408 = vsel %vm1405, %v1407, %v1403
      %v1409 = vmul.f32 1.0, %v1408
      %v1410 = vrcp.pop %v1112
      %v1411 = vmul.f32 %v1112, %v1410
      %v1412 = vsub.f32 1.0, %v1411
      %v1413 = vmul.f32 %v1410, %v1412
      %v1414 = vadd.f32 %v1410, %v1413
      %vm1415 = vweird.f32 %v1112
      %vm1416 = vweird.f32 %v1410
      %vm1417 = vmor %vm1415, %vm1416
      %v1418 = vsel %vm1417, %v1410, %v1414
      %v1419 = vand.u32 2147483647, %v1112
      %vm1420 = vcmp.eq.f32.partialorder %v1419, 8.507059e+37
      %v1421 = vand.u32 %v1112, 2147483648
      %v1422 = vor.u32 1.1754944e-38, %v1421
      %v1423 = vsel %vm1420, %v1422, %v1418
      %v1424 = vmul.f32 1.0, %v1423
      %v1425 = vrcp.pop %v1113
      %v1426 = vmul.f32 %v1113, %v1425
      %v1427 = vsub.f32 1.0, %v1426
      %v1428 = vmul.f32 %v1425, %v1427
      %v1429 = vadd.f32 %v1425, %v1428
      %vm1430 = vweird.f32 %v1113
      %vm1431 = vweird.f32 %v1425
      %vm1432 = vmor %vm1430, %vm1431
      %v1433 = vsel %vm1432, %v1425, %v1429
      %v1434 = vand.u32 2147483647, %v1113
      %vm1435 = vcmp.eq.f32.partialorder %v1434, 8.507059e+37
      %v1436 = vand.u32 %v1113, 2147483648
      %v1437 = vor.u32 1.1754944e-38, %v1436
      %v1438 = vsel %vm1435, %v1437, %v1433
      %v1439 = vmul.f32 1.0, %v1438
      %v1440 = vrcp.pop %v1114
      %v1441 = vmul.f32 %v1114, %v1440
      %v1442 = vsub.f32 1.0, %v1441
      %v1443 = vmul.f32 %v1440, %v1442
      %v1444 = vadd.f32 %v1440, %v1443
      %vm1445 = vweird.f32 %v1114
      %vm1446 = vweird.f32 %v1440
      %vm1447 = vmor %vm1445, %vm1446
      %v1448 = vsel %vm1447, %v1440, %v1444
      %v1449 = vand.u32 2147483647, %v1114
      %vm1450 = vcmp.eq.f32.partialorder %v1449, 8.507059e+37
      %v1451 = vand.u32 %v1114, 2147483648
      %v1452 = vor.u32 1.1754944e-38, %v1451
      %v1453 = vsel %vm1450, %v1452, %v1448
      %v1454 = vmul.f32 1.0, %v1453
      %v1455 = vrcp.pop %v1115
      %v1456 = vmul.f32 %v1115, %v1455
      %v1457 = vsub.f32 1.0, %v1456
      %v1458 = vmul.f32 %v1455, %v1457
      %v1459 = vadd.f32 %v1455, %v1458
      %vm1460 = vweird.f32 %v1115
      %vm1461 = vweird.f32 %v1455
      %vm1462 = vmor %vm1460, %vm1461
      %v1463 = vsel %vm1462, %v1455, %v1459
      %v1464 = vand.u32 2147483647, %v1115
      %vm1465 = vcmp.eq.f32.partialorder %v1464, 8.507059e+37
      %v1466 = vand.u32 %v1115, 2147483648
      %v1467 = vor.u32 1.1754944e-38, %v1466
      %v1468 = vsel %vm1465, %v1467, %v1463
      %v1469 = vmul.f32 1.0, %v1468
      %v1470 = vrcp.pop %v1116
      %v1471 = vmul.f32 %v1116, %v1470
      %v1472 = vsub.f32 1.0, %v1471
      %v1473 = vmul.f32 %v1470, %v1472
      %v1474 = vadd.f32 %v1470, %v1473
      %vm1475 = vweird.f32 %v1116
      %vm1476 = vweird.f32 %v1470
      %vm1477 = vmor %vm1475, %vm1476
      %v1478 = vsel %vm1477, %v1470, %v1474
      %v1479 = vand.u32 2147483647, %v1116
      %vm1480 = vcmp.eq.f32.partialorder %v1479, 8.507059e+37
      %v1481 = vand.u32 %v1116, 2147483648
      %v1482 = vor.u32 1.1754944e-38, %v1481
      %v1483 = vsel %vm1480, %v1482, %v1478
      %v1484 = vmul.f32 1.0, %v1483
      %v1485 = vrcp.pop %v1117
      %v1486 = vmul.f32 %v1117, %v1485
      %v1487 = vsub.f32 1.0, %v1486
      %v1488 = vmul.f32 %v1485, %v1487
      %v1489 = vadd.f32 %v1485, %v1488
      %vm1490 = vweird.f32 %v1117
      %vm1491 = vweird.f32 %v1485
      %vm1492 = vmor %vm1490, %vm1491
      %v1493 = vsel %vm1492, %v1485, %v1489
      %v1494 = vand.u32 2147483647, %v1117
      %vm1495 = vcmp.eq.f32.partialorder %v1494, 8.507059e+37
      %v1496 = vand.u32 %v1117, 2147483648
      %v1497 = vor.u32 1.1754944e-38, %v1496
      %v1498 = vsel %vm1495, %v1497, %v1493
      %v1499 = vmul.f32 1.0, %v1498
      %v1500 = vrcp.pop %v1118
      %v1501 = vmul.f32 %v1118, %v1500
      %v1502 = vsub.f32 1.0, %v1501
      %v1503 = vmul.f32 %v1500, %v1502
      %v1504 = vadd.f32 %v1500, %v1503
      %vm1505 = vweird.f32 %v1118
      %vm1506 = vweird.f32 %v1500
      %vm1507 = vmor %vm1505, %vm1506
      %v1508 = vsel %vm1507, %v1500, %v1504
      %v1509 = vand.u32 2147483647, %v1118
      %vm1510 = vcmp.eq.f32.partialorder %v1509, 8.507059e+37
      %v1511 = vand.u32 %v1118, 2147483648
      %v1512 = vor.u32 1.1754944e-38, %v1511
      %v1513 = vsel %vm1510, %v1512, %v1508
      %v1514 = vmul.f32 1.0, %v1513
      %v1515 = vrcp.pop %v1119
      %v1516 = vmul.f32 %v1119, %v1515
      %v1517 = vsub.f32 1.0, %v1516
      %v1518 = vmul.f32 %v1515, %v1517
      %v1519 = vadd.f32 %v1515, %v1518
      %vm1520 = vweird.f32 %v1119
      %vm1521 = vweird.f32 %v1515
      %vm1522 = vmor %vm1520, %vm1521
      %v1523 = vsel %vm1522, %v1515, %v1519
      %v1524 = vand.u32 2147483647, %v1119
      %vm1525 = vcmp.eq.f32.partialorder %v1524, 8.507059e+37
      %v1526 = vand.u32 %v1119, 2147483648
      %v1527 = vor.u32 1.1754944e-38, %v1526
      %v1528 = vsel %vm1525, %v1527, %v1523
      %v1529 = vmul.f32 1.0, %v1528
      %v1530 = vrcp.pop %v1120
      %v1531 = vmul.f32 %v1120, %v1530
      %v1532 = vsub.f32 1.0, %v1531
      %v1533 = vmul.f32 %v1530, %v1532
      %v1534 = vadd.f32 %v1530, %v1533
      %vm1535 = vweird.f32 %v1120
      %vm1536 = vweird.f32 %v1530
      %vm1537 = vmor %vm1535, %vm1536
      %v1538 = vsel %vm1537, %v1530, %v1534
      %v1539 = vand.u32 2147483647, %v1120
      %vm1540 = vcmp.eq.f32.partialorder %v1539, 8.507059e+37
      %v1541 = vand.u32 %v1120, 2147483648
      %v1542 = vor.u32 1.1754944e-38, %v1541
      %v1543 = vsel %vm1540, %v1542, %v1538
      %v1544 = vmul.f32 1.0, %v1543
      %v1545 = vrcp.pop %v1121
      %v1546 = vmul.f32 %v1121, %v1545
      %v1547 = vsub.f32 1.0, %v1546
      %v1548 = vmul.f32 %v1545, %v1547
      %v1549 = vadd.f32 %v1545, %v1548
      %vm1550 = vweird.f32 %v1121
      %vm1551 = vweird.f32 %v1545
      %vm1552 = vmor %vm1550, %vm1551
      %v1553 = vsel %vm1552, %v1545, %v1549
      %v1554 = vand.u32 2147483647, %v1121
      %vm1555 = vcmp.eq.f32.partialorder %v1554, 8.507059e+37
      %v1556 = vand.u32 %v1121, 2147483648
      %v1557 = vor.u32 1.1754944e-38, %v1556
      %v1558 = vsel %vm1555, %v1557, %v1553
      %v1559 = vmul.f32 1.0, %v1558
      %v1560 = vrcp.pop %v1122
      %v1561 = vmul.f32 %v1122, %v1560
      %v1562 = vsub.f32 1.0, %v1561
      %v1563 = vmul.f32 %v1560, %v1562
      %v1564 = vadd.f32 %v1560, %v1563
      %vm1565 = vweird.f32 %v1122
      %vm1566 = vweird.f32 %v1560
      %vm1567 = vmor %vm1565, %vm1566
      %v1568 = vsel %vm1567, %v1560, %v1564
      %v1569 = vand.u32 2147483647, %v1122
      %vm1570 = vcmp.eq.f32.partialorder %v1569, 8.507059e+37
      %v1571 = vand.u32 %v1122, 2147483648
      %v1572 = vor.u32 1.1754944e-38, %v1571
      %v1573 = vsel %vm1570, %v1572, %v1568
      %v1574 = vmul.f32 1.0, %v1573
      %v1575 = vrcp.pop %v1123
      %v1576 = vmul.f32 %v1123, %v1575
      %v1577 = vsub.f32 1.0, %v1576
      %v1578 = vmul.f32 %v1575, %v1577
      %v1579 = vadd.f32 %v1575, %v1578
      %vm1580 = vweird.f32 %v1123
      %vm1581 = vweird.f32 %v1575
      %vm1582 = vmor %vm1580, %vm1581
      %v1583 = vsel %vm1582, %v1575, %v1579
      %v1584 = vand.u32 2147483647, %v1123
      %vm1585 = vcmp.eq.f32.partialorder %v1584, 8.507059e+37
      %v1586 = vand.u32 %v1123, 2147483648
      %v1587 = vor.u32 1.1754944e-38, %v1586
      %v1588 = vsel %vm1585, %v1587, %v1583
      %v1589 = vmul.f32 1.0, %v1588
      %v1590 = vrcp.pop %v1124
      %v1591 = vmul.f32 %v1124, %v1590
      %v1592 = vsub.f32 1.0, %v1591
      %v1593 = vmul.f32 %v1590, %v1592
      %v1594 = vadd.f32 %v1590, %v1593
      %vm1595 = vweird.f32 %v1124
      %vm1596 = vweird.f32 %v1590
      %vm1597 = vmor %vm1595, %vm1596
      %v1598 = vsel %vm1597, %v1590, %v1594
      %v1599 = vand.u32 2147483647, %v1124
      %vm1600 = vcmp.eq.f32.partialorder %v1599, 8.507059e+37
      %v1601 = vand.u32 %v1124, 2147483648
      %v1602 = vor.u32 1.1754944e-38, %v1601
      %v1603 = vsel %vm1600, %v1602, %v1598
      %v1604 = vmul.f32 1.0, %v1603
      %v1605 = vmul.f32 %v918, %v1139
      %v1606 = vmul.f32 %v920, %v1154
      %v1607 = vmul.f32 %v923, %v1169
      %v1608 = vmul.f32 %v925, %v1184
      %v1609 = vmul.f32 %v928, %v1199
      %v1610 = vmul.f32 %v930, %v1214
      %v1611 = vmul.f32 %v933, %v1229
      %v1612 = vmul.f32 %v935, %v1244
      %v1613 = vmul.f32 %v938, %v1259
      %v1614 = vmul.f32 %v940, %v1274
      %v1615 = vmul.f32 %v943, %v1289
      %v1616 = vmul.f32 %v945, %v1304
      %v1617 = vmul.f32 %v948, %v1319
      %v1618 = vmul.f32 %v950, %v1334
      %v1619 = vmul.f32 %v953, %v1349
      %v1620 = vmul.f32 %v955, %v1364
      %v1621 = vmul.f32 %v958, %v1379
      %v1622 = vmul.f32 %v960, %v1394
      %v1623 = vmul.f32 %v963, %v1409
      %v1624 = vmul.f32 %v965, %v1424
      %v1625 = vmul.f32 %v968, %v1439
      %v1626 = vmul.f32 %v970, %v1454
      %v1627 = vmul.f32 %v973, %v1469
      %v1628 = vmul.f32 %v975, %v1484
      %v1629 = vmul.f32 %v978, %v1499
      %v1630 = vmul.f32 %v980, %v1514
      %v1631 = vmul.f32 %v983, %v1529
      %v1632 = vmul.f32 %v985, %v1544
      %v1633 = vmul.f32 %v988, %v1559
      %v1634 = vmul.f32 %v990, %v1574
      %v1635 = vmul.f32 %v993, %v1589
      %v1636 = vmul.f32 %v995, %v1604
      %v1637 = vpack.c.bf16 %v1605, %v1605
      %v1638 = vpack.c.bf16 %v1606, %v1606
      %v1639 = vpack.c.bf16 %v1607, %v1607
      %v1640 = vpack.c.bf16 %v1608, %v1608
      %v1641 = vpack.c.bf16 %v1609, %v1609
      %v1642 = vpack.c.bf16 %v1610, %v1610
      %v1643 = vpack.c.bf16 %v1611, %v1611
      %v1644 = vpack.c.bf16 %v1612, %v1612
      %v1645 = vpack.c.bf16 %v1613, %v1613
      %v1646 = vpack.c.bf16 %v1614, %v1614
      %v1647 = vpack.c.bf16 %v1615, %v1615
      %v1648 = vpack.c.bf16 %v1616, %v1616
      %v1649 = vpack.c.bf16 %v1617, %v1617
      %v1650 = vpack.c.bf16 %v1618, %v1618
      %v1651 = vpack.c.bf16 %v1619, %v1619
      %v1652 = vpack.c.bf16 %v1620, %v1620
      %v1653 = vpack.c.bf16 %v1621, %v1621
      %v1654 = vpack.c.bf16 %v1622, %v1622
      %v1655 = vpack.c.bf16 %v1623, %v1623
      %v1656 = vpack.c.bf16 %v1624, %v1624
      %v1657 = vpack.c.bf16 %v1625, %v1625
      %v1658 = vpack.c.bf16 %v1626, %v1626
      %v1659 = vpack.c.bf16 %v1627, %v1627
      %v1660 = vpack.c.bf16 %v1628, %v1628
      %v1661 = vpack.c.bf16 %v1629, %v1629
      %v1662 = vpack.c.bf16 %v1630, %v1630
      %v1663 = vpack.c.bf16 %v1631, %v1631
      %v1664 = vpack.c.bf16 %v1632, %v1632
      %v1665 = vpack.c.bf16 %v1633, %v1633
      %v1666 = vpack.c.bf16 %v1634, %v1634
      %v1667 = vpack.c.bf16 %v1635, %v1635
      %v1668 = vpack.c.bf16 %v1636, %v1636
      %vm1669 = vcmask 257024
      %1670 = vst.msk [vmem:[%s226] sm:$0xf] %vm1669, %v1637
      %1671 = vst.msk [vmem:[%s226 + $0x4] sm:$0xf] %vm1669, %v1638
      %1672 = vst.msk [vmem:[%s226 + $0x8] sm:$0xf] %vm1669, %v1639
      %1673 = vst.msk [vmem:[%s226 + $0xc] sm:$0xf] %vm1669, %v1640
      %1674 = vst.msk [vmem:[%s226 + $0x10] sm:$0xf] %vm1669, %v1641
      %1675 = vst.msk [vmem:[%s226 + $0x14] sm:$0xf] %vm1669, %v1642
      %1676 = vst.msk [vmem:[%s226 + $0x18] sm:$0xf] %vm1669, %v1643
      %1677 = vst.msk [vmem:[%s226 + $0x1c] sm:$0xf] %vm1669, %v1644
      %1678 = vst.msk [vmem:[%s226 + $0x20] sm:$0xf] %vm1669, %v1645
      %1679 = vst.msk [vmem:[%s226 + $0x24] sm:$0xf] %vm1669, %v1646
      %1680 = vst.msk [vmem:[%s226 + $0x28] sm:$0xf] %vm1669, %v1647
      %1681 = vst.msk [vmem:[%s226 + $0x2c] sm:$0xf] %vm1669, %v1648
      %1682 = vst.msk [vmem:[%s226 + $0x30] sm:$0xf] %vm1669, %v1649
      %1683 = vst.msk [vmem:[%s226 + $0x34] sm:$0xf] %vm1669, %v1650
      %1684 = vst.msk [vmem:[%s226 + $0x38] sm:$0xf] %vm1669, %v1651
      %1685 = vst.msk [vmem:[%s226 + $0x3c] sm:$0xf] %vm1669, %v1652
      %1686 = vst.msk [vmem:[%s226 + $0x40] sm:$0xf] %vm1669, %v1653
      %1687 = vst.msk [vmem:[%s226 + $0x44] sm:$0xf] %vm1669, %v1654
      %1688 = vst.msk [vmem:[%s226 + $0x48] sm:$0xf] %vm1669, %v1655
      %1689 = vst.msk [vmem:[%s226 + $0x4c] sm:$0xf] %vm1669, %v1656
      %1690 = vst.msk [vmem:[%s226 + $0x50] sm:$0xf] %vm1669, %v1657
      %1691 = vst.msk [vmem:[%s226 + $0x54] sm:$0xf] %vm1669, %v1658
      %1692 = vst.msk [vmem:[%s226 + $0x58] sm:$0xf] %vm1669, %v1659
      %1693 = vst.msk [vmem:[%s226 + $0x5c] sm:$0xf] %vm1669, %v1660
      %1694 = vst.msk [vmem:[%s226 + $0x60] sm:$0xf] %vm1669, %v1661
      %1695 = vst.msk [vmem:[%s226 + $0x64] sm:$0xf] %vm1669, %v1662
      %1696 = vst.msk [vmem:[%s226 + $0x68] sm:$0xf] %vm1669, %v1663
      %1697 = vst.msk [vmem:[%s226 + $0x6c] sm:$0xf] %vm1669, %v1664
      %1698 = vst.msk [vmem:[%s226 + $0x70] sm:$0xf] %vm1669, %v1665
      %1699 = vst.msk [vmem:[%s226 + $0x74] sm:$0xf] %vm1669, %v1666
      %1700 = vst.msk [vmem:[%s226 + $0x78] sm:$0xf] %vm1669, %v1667
      %1701 = vst.msk [vmem:[%s226 + $0x7c] sm:$0xf] %vm1669, %v1668
      %s1702 = smul.u32 32, %s18
      %p1703 = scmp.lt.s32.totalorder %s1702, 63
      %s1704 = scalar_select %p1703, %s1702, 63
      %p1705 = scmp.lt.s32.totalorder %s19, 0
      %s1706 = scalar_select %p1705, %s19, 0
      %s1707 = sadd.s32 %s1706, %s1704
      %s1708 = smul.addr %s1707, 4
      %s1709 = scalar_lea.vmem %s3, %s1708
      // Predicated region
      $region33: #{basic_block_udp_forward.2} parent=31 // pred_check
        %p1710 = pneg %p124
      $region34: #{basic_block_udp_forward.2} parent=31 // pred_check_branch
        %1712 = sbr.rel (%p1710) target = $region36
      $region35: #{basic_block_udp_forward.2} parent=31 // pred_region
        %s1713 = smul.u32 32, %s18
      $region36: #{basic_block_udp_forward.2} parent=31 // pred_fallthru
        _
    $region32: #{basic_block_udp_forward.2} parent=5 // pred_fallthru
      _
    %p1714 = scmp.le.s32.totalorder 2, %s9
    // Predicated region
    $region37: #{basic_block_udp_forward.2} parent=5 // pred_check
      %p1715 = pneg %p1714
    $region38: #{basic_block_udp_forward.2} parent=5 // pred_check_branch
      %1717 = sbr.rel (%p1715) target = $region40
    $region39: #{basic_block_udp_forward.2} parent=5 // pred_region
      %s1718 = ssub.s32 %s9, 2
      // Predicated region
      $region41: #{basic_block_udp_forward.2} parent=39 // pred_check
        %p1719 = pneg %p130
      $region42: #{basic_block_udp_forward.2} parent=39 // pred_check_branch
        %1721 = sbr.rel (%p1719) target = $region44
      $region43: #{basic_block_udp_forward.2} parent=39 // pred_region
        %s1722 = smul.u32 32, %s20
        %p1723 = scmp.lt.s32.totalorder %s1722, 63
        %s1724 = scalar_select %p1723, %s1722, 63
        %p1725 = scmp.lt.s32.totalorder %s21, 0
        %s1726 = scalar_select %p1725, %s21, 0
        %s1727 = sadd.s32 %s1726, %s1724
        %s1728 = smul.addr %s1727, 4
        %s1729 = scalar_lea.vmem %s3, %s1728
      $region44: #{basic_block_udp_forward.2} parent=39 // pred_fallthru
        _
    $region40: #{basic_block_udp_forward.2} parent=5 // pred_fallthru
      _
  $region6: #{basic_block_udp_forward.2} parent=0 // loop_footer
    %s13 = sadd.s32 1, %s9
  $region7: #{basic_block_udp_forward.2} parent=0 // loop_footer_branch
    %8 = sbr.rel target = $region3
  $region8: #{basic_block_udp_forward.2} parent=0 // loop_exit
    _

// kernel: basic_block_udp_forward.3
$region0: #{basic_block_udp_forward.3}
  #allocation0 [shape = 'u32[]', space=smem, size = 0x4, offset = 0x4, fixed_abs, tag = 'smem constant byte address 0x4 - core index']
  #allocation1 [shape = 'u32[72,128]{1,0:T(1,128)}', space=vmem, size = 0x9000, scoped, tag = 'internal scratch']
  %s0 = inlined_call_operand.vmem [shape: bf16[512,288], index: 0, kind: input, shape index: {}]
  %s1 = inlined_call_operand.vmem [shape: bf16[288,32], index: 1, kind: input, shape index: {}]
  %s2 = inlined_call_operand.vmem [shape: f32[1,32], index: 2, kind: input, shape index: {}]
  %s3 = inlined_call_operand.vmem [shape: bf16[512,32], index: 3, kind: input, shape index: {}]
  %s4 = inlined_call_operand.hbm [shape: f32[512,32], index: 4, kind: output, shape index: {}]
  %s5 = sld [smem:[#allocation0]]
  $region49: #{basic_block_udp_forward.3} parent=0
    _
  %s7 = ssub.s32 1, %s5
  %s8 = scalar_select 0, %s7, %s5
  $region1: #{basic_block_udp_forward.3} parent=0
    #allocation2 [shape = 'u8[262144]{0}', space=vmem, size = 0x40000, scoped, tag = 'output window, operand 0']
    #allocation3 [shape = 's32[2]{0}', space=sflag, size = 0x8, scoped, tag = 'scoped memory for basic_block_udp_forward.3']
    %9 = vsyncpa [#allocation3], 0
    %s10 = scalar_lea.sflag [#allocation3], 1
    %11 = vsyncpa %s10, 0
    loop: start=0, step=1, limit=4
    $region2: #{basic_block_udp_forward.3} parent=1 // loop_pre_header
      _
    $region3: #{basic_block_udp_forward.3} parent=1 // loop_header
      %s13 = sphi 0, %s17
      %p14 = scmp.ge.s32.totalorder %s13, 4
      %s20 = sphi 0, %s32
      %s21 = sphi 0, %s28
      %s22 = sphi 0, %s20
      %s23 = sphi 0, %s21
      %s24 = sphi 0, %s22
      %s25 = sphi 0, %s23
      %s35 = sphi 0, %s37
      %s38 = sphi 0, %s35
      %s39 = sphi 0, %s38
      %s55 = sphi 0, %s39
      %s61 = sphi 0, %s63
      %s64 = sphi 0, %s61
      %s65 = sphi 0, %s64
      %s81 = sphi 0, %s65
      %s87 = sphi 0, %s89
      %s90 = sphi 0, %s87
      %s91 = sphi 0, %s90
      %s107 = sphi 0, %s91
      %s115 = sphi 0, %s117
      %s118 = sphi 0, %s115
      %s119 = sphi 0, %s118
      %s135 = sphi 0, %s119
      %s143 = sphi 0, %s145
      %s146 = sphi 0, %s143
      %s147 = sphi 0, %s146
      %s163 = sphi 0, %s147
    $region4: #{basic_block_udp_forward.3} parent=1 // loop_header_branch
      %16 = sbr.rel (%p14) target = $region8
    $region5: #{basic_block_udp_forward.3} parent=1 // loop_body
      %s18 = ssub.s32 %s13, 1
      %s19 = ssub.s32 %s13, 2
      %s26 = sadd.s32 1, %s21
      %p27 = scmp.ge.s32.totalorder %s26, 1
      %s28 = scalar_select %p27, 0, %s26
      %s29 = sadd.s32 1, %s20
      %s30 = scalar_select %p27, %s29, %s20
      %p31 = scmp.ge.s32.totalorder %s30, 2
      %s32 = scalar_select %p31, 0, %s30
      %s33 = ssub.s32 %s20, %s32
      %p34 = scmp.eq.s32.totalorder %s33, 0
      %s36 = sadd.s32 %s35, 1
      %s37 = scalar_select %p34, %s35, %s36
      %p40 = pneg %p34
      %p41 = scmp.eq.s32.totalorder %s13, 1
      %p42 = por %p40, %p41
      %p43 = scmp.ne.s32.totalorder %s35, %s38
      %p44 = scmp.eq.s32.totalorder %s13, 0
      %p45 = por %p43, %p44
      %p46 = scmp.ne.s32.totalorder %s35, %s38
      %p47 = scmp.eq.s32.totalorder %s18, 1
      %p48 = por %p46, %p47
      %p49 = scmp.ne.s32.totalorder %s38, %s39
      %p50 = scmp.eq.s32.totalorder %s18, 0
      %p51 = por %p49, %p50
      %p52 = scmp.ne.s32.totalorder %s38, %s39
      %p53 = scmp.eq.s32.totalorder %s19, 1
      %p54 = por %p52, %p53
      %p56 = scmp.ne.s32.totalorder %s39, %s55
      %p57 = scmp.eq.s32.totalorder %s19, 0
      %p58 = por %p56, %p57
      %s59 = ssub.s32 %s21, %s28
      %p60 = scmp.eq.s32.totalorder %s59, 0
      %s62 = sadd.s32 %s61, 1
      %s63 = scalar_select %p60, %s61, %s62
      %p66 = pneg %p60
      %p67 = scmp.eq.s32.totalorder %s13, 1
      %p68 = por %p66, %p67
      %p69 = scmp.ne.s32.totalorder %s61, %s64
      %p70 = scmp.eq.s32.totalorder %s13, 0
      %p71 = por %p69, %p70
      %p72 = scmp.ne.s32.totalorder %s61, %s64
      %p73 = scmp.eq.s32.totalorder %s18, 1
      %p74 = por %p72, %p73
      %p75 = scmp.ne.s32.totalorder %s64, %s65
      %p76 = scmp.eq.s32.totalorder %s18, 0
      %p77 = por %p75, %p76
      %p78 = scmp.ne.s32.totalorder %s64, %s65
      %p79 = scmp.eq.s32.totalorder %s19, 1
      %p80 = por %p78, %p79
      %p82 = scmp.ne.s32.totalorder %s65, %s81
      %p83 = scmp.eq.s32.totalorder %s19, 0
      %p84 = por %p82, %p83
      %s85 = ssub.s32 %s21, %s28
      %p86 = scmp.eq.s32.totalorder %s85, 0
      %s88 = sadd.s32 %s87, 1
      %s89 = scalar_select %p86, %s87, %s88
      %p92 = pneg %p86
      %p93 = scmp.eq.s32.totalorder %s13, 1
      %p94 = por %p92, %p93
      %p95 = scmp.ne.s32.totalorder %s87, %s90
      %p96 = scmp.eq.s32.totalorder %s13, 0
      %p97 = por %p95, %p96
      %p98 = scmp.ne.s32.totalorder %s87, %s90
      %p99 = scmp.eq.s32.totalorder %s18, 1
      %p100 = por %p98, %p99
      %p101 = scmp.ne.s32.totalorder %s90, %s91
      %p102 = scmp.eq.s32.totalorder %s18, 0
      %p103 = por %p101, %p102
      %p104 = scmp.ne.s32.totalorder %s90, %s91
      %p105 = scmp.eq.s32.totalorder %s19, 1
      %p106 = por %p104, %p105
      %p108 = scmp.ne.s32.totalorder %s91, %s107
      %p109 = scmp.eq.s32.totalorder %s19, 0
      %p110 = por %p108, %p109
      %s111 = ssub.s32 %s20, %s32
      %s112 = ssub.s32 %s21, %s28
      %s113 = sor.u32 %s111, %s112
      %p114 = scmp.eq.s32.totalorder %s113, 0
      %s116 = sadd.s32 %s115, 1
      %s117 = scalar_select %p114, %s115, %s116
      %p120 = pneg %p114
      %p121 = scmp.eq.s32.totalorder %s13, 1
      %p122 = por %p120, %p121
      %p123 = scmp.ne.s32.totalorder %s115, %s118
      %p124 = scmp.eq.s32.totalorder %s13, 0
      %p125 = por %p123, %p124
      %p126 = scmp.ne.s32.totalorder %s115, %s118
      %p127 = scmp.eq.s32.totalorder %s18, 1
      %p128 = por %p126, %p127
      %p129 = scmp.ne.s32.totalorder %s118, %s119
      %p130 = scmp.eq.s32.totalorder %s18, 0
      %p131 = por %p129, %p130
      %p132 = scmp.ne.s32.totalorder %s118, %s119
      %p133 = scmp.eq.s32.totalorder %s19, 1
      %p134 = por %p132, %p133
      %p136 = scmp.ne.s32.totalorder %s119, %s135
      %p137 = scmp.eq.s32.totalorder %s19, 0
      %p138 = por %p136, %p137
      %s139 = ssub.s32 %s20, %s32
      %s140 = ssub.s32 %s21, %s28
      %s141 = sor.u32 %s139, %s140
      %p142 = scmp.eq.s32.totalorder %s141, 0
      %s144 = sadd.s32 %s143, 1
      %s145 = scalar_select %p142, %s143, %s144
      %p148 = pneg %p142
      %p149 = scmp.eq.s32.totalorder %s13, 1
      %p150 = por %p148, %p149
      %p151 = scmp.ne.s32.totalorder %s143, %s146
      %p152 = scmp.eq.s32.totalorder %s13, 0
      %p153 = por %p151, %p152
      %p154 = scmp.ne.s32.totalorder %s143, %s146
      %p155 = scmp.eq.s32.totalorder %s18, 1
      %p156 = por %p154, %p155
      %p157 = scmp.ne.s32.totalorder %s146, %s147
      %p158 = scmp.eq.s32.totalorder %s18, 0
      %p159 = por %p157, %p158
      %p160 = scmp.ne.s32.totalorder %s146, %s147
      %p161 = scmp.eq.s32.totalorder %s19, 1
      %p162 = por %p160, %p161
      %p164 = scmp.ne.s32.totalorder %s147, %s163
      %p165 = scmp.eq.s32.totalorder %s19, 0
      %p166 = por %p164, %p165
      %p167 = scmp.le.s32.totalorder 1, %s13
      %p168 = scmp.lt.s32.totalorder %s13, 3
      %p169 = pnand %p167, %p168
      %p170 = pneg %p169
      // Predicated region
      $region9: #{basic_block_udp_forward.3} parent=5 // pred_check
        _
      $region10: #{basic_block_udp_forward.3} parent=5 // pred_check_branch
        %172 = sbr.rel (%p169) target = $region12
      $region11: #{basic_block_udp_forward.3} parent=5 // pred_region
        %s173 = ssub.s32 %s13, 1
        // Predicated region
        $region13: #{basic_block_udp_forward.3} parent=11 // pred_check
          %p174 = pneg %p77
        $region14: #{basic_block_udp_forward.3} parent=11 // pred_check_branch
          %176 = sbr.rel (%p174) target = $region16
        $region15: #{basic_block_udp_forward.3} parent=11 // pred_region
          %p177 = scmp.lt.s32.totalorder %s23, 0
          %s178 = scalar_select %p177, %s23, 0
          %s179 = smul.addr %s178, 4
          %s180 = scalar_lea.vmem %s1, %s179
        $region16: #{basic_block_udp_forward.3} parent=11 // pred_fallthru
          _
        // Predicated region
        $region17: #{basic_block_udp_forward.3} parent=11 // pred_check
          %p181 = pneg %p103
        $region18: #{basic_block_udp_forward.3} parent=11 // pred_check_branch
          %183 = sbr.rel (%p181) target = $region20
        $region19: #{basic_block_udp_forward.3} parent=11 // pred_region
          %p184 = scmp.lt.s32.totalorder %s23, 0
          %s185 = scalar_select %p184, %s23, 0
          %s186 = scalar_lea.vmem %s2, %s185
        $region20: #{basic_block_udp_forward.3} parent=11 // pred_fallthru
          _
      $region12: #{basic_block_udp_forward.3} parent=5 // pred_fallthru
        _
      %p187 = scmp.lt.s32.totalorder %s13, 2
      // Predicated region
      $region21: #{basic_block_udp_forward.3} parent=5 // pred_check
        %p188 = pneg %p187
      $region22: #{basic_block_udp_forward.3} parent=5 // pred_check_branch
        %190 = sbr.rel (%p188) target = $region24
      $region23: #{basic_block_udp_forward.3} parent=5 // pred_region
        // Predicated region
        $region25: #{basic_block_udp_forward.3} parent=23 // pred_check
          %p191 = pneg %p45
        $region26: #{basic_block_udp_forward.3} parent=23 // pred_check_branch
          %193 = sbr.rel (%p191) target = $region28
        $region27: #{basic_block_udp_forward.3} parent=23 // pred_region
          %s194 = smul.u32 32, %s20
          %p195 = scmp.lt.s32.totalorder %s194, 63
          %s196 = scalar_select %p195, %s194, 63
          %s197 = smul.addr %s196, 3
          %s198 = smul.addr %s197, 4
          %s199 = scalar_lea.vmem %s0, %s198
          %s200 = smul.u32 32, %s20
        $region28: #{basic_block_udp_forward.3} parent=23 // pred_fallthru
          _
        // Predicated region
        $region29: #{basic_block_udp_forward.3} parent=23 // pred_check
          %p201 = pneg %p125
        $region30: #{basic_block_udp_forward.3} parent=23 // pred_check_branch
          %203 = sbr.rel (%p201) target = $region32
        $region31: #{basic_block_udp_forward.3} parent=23 // pred_region
          %s204 = smul.u32 32, %s20
          %p205 = scmp.lt.s32.totalorder %s204, 63
          %s206 = scalar_select %p205, %s204, 63
          %p207 = scmp.lt.s32.totalorder %s21, 0
          %s208 = scalar_select %p207, %s21, 0
          %s209 = sadd.s32 %s208, %s206
          %s210 = smul.addr %s209, 4
          %s211 = scalar_lea.vmem %s3, %s210
          %s212 = smul.u32 32, %s20
        $region32: #{basic_block_udp_forward.3} parent=23 // pred_fallthru
          _
      $region24: #{basic_block_udp_forward.3} parent=5 // pred_fallthru
        _
      %p213 = scmp.le.s32.totalorder 1, %s13
      %p214 = scmp.lt.s32.totalorder %s13, 3
      %p215 = pnand %p213, %p214
      %p216 = pneg %p215
      // Predicated region
      $region33: #{basic_block_udp_forward.3} parent=5 // pred_check
        _
      $region34: #{basic_block_udp_forward.3} parent=5 // pred_check_branch
        %218 = sbr.rel (%p215) target = $region36
      $region35: #{basic_block_udp_forward.3} parent=5 // pred_region
        %s219 = ssub.s32 %s13, 1
        %s220 = smul.u32 32, %s22
        %p221 = scmp.lt.s32.totalorder %s220, 63
        %s222 = scalar_select %p221, %s220, 63
        %s223 = smul.addr %s222, 3
        %s224 = smul.addr %s223, 4
        %s225 = scalar_lea.vmem %s0, %s224
        %p226 = pneg %p51
        %p227 = pneg %p48
        %p228 = scmp.lt.s32.totalorder %s23, 0
        %s229 = scalar_select %p228, %s23, 0
        %s230 = smul.addr %s229, 4
        %s231 = scalar_lea.vmem %s1, %s230
        %p232 = pneg %p77
        %p233 = pneg %p74
        %p234 = scmp.lt.s32.totalorder %s23, 0
        %s235 = scalar_select %p234, %s23, 0
        %s236 = scalar_lea.vmem %s2, %s235
        %p237 = pneg %p103
        %p238 = pneg %p100
        %s239 = smul.u32 32, %s22
        %p240 = scmp.lt.s32.totalorder %s239, 63
        %s241 = scalar_select %p240, %s239, 63
        %p242 = scmp.lt.s32.totalorder %s23, 0
        %s243 = scalar_select %p242, %s23, 0
        %s244 = sadd.s32 %s243, %s241
        %s245 = smul.addr %s244, 4
        %s246 = scalar_lea.vmem %s3, %s245
        %p247 = pneg %p131
        %p248 = pneg %p128
        %p249 = pneg %p159
        %p250 = pneg %p156
        %s251 = sand.u32 %s146, 1
        %s252 = scalar_lea.sflag [#allocation3], %s251
        %s253 = sand.u32 %s146, 1
        %s254 = smul.addr %s253, 256
        %s255 = scalar_lea.vmem [#allocation2], %s254
        %s256 = smul.u32 32, %s22
        %p257 = scmp.lt.s32.totalorder %s256, 63
        %s258 = scalar_select %p257, %s256, 63
        %s259 = smul.addr %s258, 3
        %s260 = smul.addr %s259, 4
        %s261 = scalar_lea.vmem %s0, %s260
        %s262 = smul.u32 32, %s22
        %p263 = scmp.lt.s32.totalorder %s23, 0
        %s264 = scalar_select %p263, %s23, 0
        %s265 = smul.addr %s264, 4
        %s266 = scalar_lea.vmem %s1, %s265
        %p267 = scmp.lt.s32.totalorder %s23, 0
        %s268 = scalar_select %p267, %s23, 0
        %s269 = scalar_lea.vmem %s2, %s268
        %s270 = smul.u32 32, %s22
        %p271 = scmp.lt.s32.totalorder %s270, 63
        %s272 = scalar_select %p271, %s270, 63
        %p273 = scmp.lt.s32.totalorder %s23, 0
        %s274 = scalar_select %p273, %s23, 0
        %s275 = sadd.s32 %s274, %s272
        %s276 = smul.addr %s275, 4
        %s277 = scalar_lea.vmem %s3, %s276
        %s278 = smul.u32 32, %s22
        %s279 = smul.u32 32, %s22
        %v281 = vld [vmem:[%s261] sm:$0xff]
        %v282 = vld [vmem:[%s261 + $0x8] sm:$0xf]
        %v283 = vld [vmem:[%s261 + $0xc] sm:$0xff]
        %v284 = vld [vmem:[%s261 + $0x14] sm:$0xf]
        %v285 = vld [vmem:[%s261 + $0x18] sm:$0xff]
        %v286 = vld [vmem:[%s261 + $0x20] sm:$0xf]
        %v287 = vld [vmem:[%s261 + $0x24] sm:$0xff]
        %v288 = vld [vmem:[%s261 + $0x2c] sm:$0xf]
        %v289 = vld [vmem:[%s261 + $0x30] sm:$0xff]
        %v290 = vld [vmem:[%s261 + $0x38] sm:$0xf]
        %v291 = vld [vmem:[%s261 + $0x3c] sm:$0xff]
        %v292 = vld [vmem:[%s261 + $0x44] sm:$0xf]
        %v293 = vld [vmem:[%s261 + $0x48] sm:$0xff]
        %v294 = vld [vmem:[%s261 + $0x50] sm:$0xf]
        %v295 = vld [vmem:[%s261 + $0x54] sm:$0xff]
        %v296 = vld [vmem:[%s261 + $0x5c] sm:$0xf]
        %v297 = vld [vmem:[%s261 + $0x60] sm:$0xff]
        %v298 = vld [vmem:[%s261 + $0x68] sm:$0xf]
        %v299 = vld [vmem:[%s261 + $0x6c] sm:$0xff]
        %v300 = vld [vmem:[%s261 + $0x74] sm:$0xf]
        %v301 = vld [vmem:[%s261 + $0x78] sm:$0xff]
        %v302 = vld [vmem:[%s261 + $0x80] sm:$0xf]
        %v303 = vld [vmem:[%s261 + $0x84] sm:$0xff]
        %v304 = vld [vmem:[%s261 + $0x8c] sm:$0xf]
        %v305 = vld [vmem:[%s261 + $0x90] sm:$0xff]
        %v306 = vld [vmem:[%s261 + $0x98] sm:$0xf]
        %v307 = vld [vmem:[%s261 + $0x9c] sm:$0xff]
        %v308 = vld [vmem:[%s261 + $0xa4] sm:$0xf]
        %v309 = vld [vmem:[%s261 + $0xa8] sm:$0xff]
        %v310 = vld [vmem:[%s261 + $0xb0] sm:$0xf]
        %v311 = vld [vmem:[%s261 + $0xb4] sm:$0xff]
        %v312 = vld [vmem:[%s261 + $0xbc] sm:$0xf]
        %v313 = vld [vmem:[%s261 + $0xc0] sm:$0xff]
        %v314 = vld [vmem:[%s261 + $0xc8] sm:$0xf]
        %v315 = vld [vmem:[%s261 + $0xcc] sm:$0xff]
        %v316 = vld [vmem:[%s261 + $0xd4] sm:$0xf]
        %v317 = vld [vmem:[%s261 + $0xd8] sm:$0xff]
        %v318 = vld [vmem:[%s261 + $0xe0] sm:$0xf]
        %v319 = vld [vmem:[%s261 + $0xe4] sm:$0xff]
        %v320 = vld [vmem:[%s261 + $0xec] sm:$0xf]
        %v321 = vld [vmem:[%s261 + $0xf0] sm:$0xff]
        %v322 = vld [vmem:[%s261 + $0xf8] sm:$0xf]
        %v323 = vld [vmem:[%s261 + $0xfc] sm:$0xff]
        %v324 = vld [vmem:[%s261 + $0x104] sm:$0xf]
        %v325 = vld [vmem:[%s261 + $0x108] sm:$0xff]
        %v326 = vld [vmem:[%s261 + $0x110] sm:$0xf]
        %v327 = vld [vmem:[%s261 + $0x114] sm:$0xff]
        %v328 = vld [vmem:[%s261 + $0x11c] sm:$0xf]
        %v329 = vld [vmem:[%s261 + $0x120] sm:$0xff]
        %v330 = vld [vmem:[%s261 + $0x128] sm:$0xf]
        %v331 = vld [vmem:[%s261 + $0x12c] sm:$0xff]
        %v332 = vld [vmem:[%s261 + $0x134] sm:$0xf]
        %v333 = vld [vmem:[%s261 + $0x138] sm:$0xff]
        %v334 = vld [vmem:[%s261 + $0x140] sm:$0xf]
        %v335 = vld [vmem:[%s261 + $0x144] sm:$0xff]
        %v336 = vld [vmem:[%s261 + $0x14c] sm:$0xf]
        %v337 = vld [vmem:[%s261 + $0x150] sm:$0xff]
        %v338 = vld [vmem:[%s261 + $0x158] sm:$0xf]
        %v339 = vld [vmem:[%s261 + $0x15c] sm:$0xff]
        %v340 = vld [vmem:[%s261 + $0x164] sm:$0xf]
        %v341 = vld [vmem:[%s261 + $0x168] sm:$0xff]
        %v342 = vld [vmem:[%s261 + $0x170] sm:$0xf]
        %v343 = vld [vmem:[%s261 + $0x174] sm:$0xff]
        %v344 = vld [vmem:[%s261 + $0x17c] sm:$0xf]
        %v345 = vld [vmem:[%s266] sm:$0xf]
        %v346 = vld [vmem:[%s266 + $0x4] sm:$0xf]
        %v347 = vld [vmem:[%s266 + $0x8] sm:$0xf]
        %v348 = vld [vmem:[%s266 + $0xc] sm:$0xf]
        %v349 = vld [vmem:[%s266 + $0x10] sm:$0xf]
        %v350 = vld [vmem:[%s266 + $0x14] sm:$0xf]
        %v351 = vld [vmem:[%s266 + $0x18] sm:$0xf]
        %v352 = vld [vmem:[%s266 + $0x1c] sm:$0xf]
        %v353 = vld [vmem:[%s266 + $0x20] sm:$0xf]
        %v354 = vld [vmem:[%s266 + $0x24] sm:$0xf]
        %v355 = vld [vmem:[%s266 + $0x28] sm:$0xf]
        %v356 = vld [vmem:[%s266 + $0x2c] sm:$0xf]
        %v357 = vld [vmem:[%s266 + $0x30] sm:$0xf]
        %v358 = vld [vmem:[%s266 + $0x34] sm:$0xf]
        %v359 = vld [vmem:[%s266 + $0x38] sm:$0xf]
        %v360 = vld [vmem:[%s266 + $0x3c] sm:$0xf]
        %v361 = vld [vmem:[%s266 + $0x40] sm:$0xf]
        %v362 = vld [vmem:[%s266 + $0x44] sm:$0xf]
        %v363 = vld [vmem:[%s266 + $0x48] sm:$0xf]
        %v364 = vld [vmem:[%s266 + $0x4c] sm:$0xf]
        %v365 = vld [vmem:[%s266 + $0x50] sm:$0xf]
        %v366 = vld [vmem:[%s266 + $0x54] sm:$0xf]
        %v367 = vld [vmem:[%s266 + $0x58] sm:$0xf]
        %v368 = vld [vmem:[%s266 + $0x5c] sm:$0xf]
        %v369 = vld [vmem:[%s266 + $0x60] sm:$0xf]
        %v370 = vld [vmem:[%s266 + $0x64] sm:$0xf]
        %v371 = vld [vmem:[%s266 + $0x68] sm:$0xf]
        %v372 = vld [vmem:[%s266 + $0x6c] sm:$0xf]
        %v373 = vld [vmem:[%s266 + $0x70] sm:$0xf]
        %v374 = vld [vmem:[%s266 + $0x74] sm:$0xf]
        %v375 = vld [vmem:[%s266 + $0x78] sm:$0xf]
        %v376 = vld [vmem:[%s266 + $0x7c] sm:$0xf]
        %v377 = vld [vmem:[%s266 + $0x80] sm:$0xf]
        %v378 = vld [vmem:[%s266 + $0x84] sm:$0xf]
        %v379 = vld [vmem:[%s266 + $0x88] sm:$0xf]
        %v380 = vld [vmem:[%s266 + $0x8c] sm:$0xf]
        %v381 = vld [vmem:[%s269] sm:$0x1]
        %v383 = vperm.slane %v381, 0
        %v449 = vunpack.c.l.b16 %v281
        %v450 = vunpack.c.h.b16 %v281
        %v451 = vunpack.c.l.b16 %v282
        %v452 = vunpack.c.l.b16 %v283
        %v453 = vunpack.c.h.b16 %v283
        %v454 = vunpack.c.l.b16 %v284
        %v455 = vunpack.c.l.b16 %v285
        %v456 = vunpack.c.h.b16 %v285
        %v457 = vunpack.c.l.b16 %v286
        %v458 = vunpack.c.l.b16 %v287
        %v459 = vunpack.c.h.b16 %v287
        %v460 = vunpack.c.l.b16 %v288
        %v461 = vunpack.c.l.b16 %v289
        %v462 = vunpack.c.h.b16 %v289
        %v463 = vunpack.c.l.b16 %v290
        %v464 = vunpack.c.l.b16 %v291
        %v465 = vunpack.c.h.b16 %v291
        %v466 = vunpack.c.l.b16 %v292
        %v467 = vunpack.c.l.b16 %v293
        %v468 = vunpack.c.h.b16 %v293
        %v469 = vunpack.c.l.b16 %v294
        %v470 = vunpack.c.l.b16 %v295
        %v471 = vunpack.c.h.b16 %v295
        %v472 = vunpack.c.l.b16 %v296
        %v473 = vunpack.c.l.b16 %v297
        %v474 = vunpack.c.h.b16 %v297
        %v475 = vunpack.c.l.b16 %v298
        %v476 = vunpack.c.l.b16 %v299
        %v477 = vunpack.c.h.b16 %v299
        %v478 = vunpack.c.l.b16 %v300
        %v479 = vunpack.c.l.b16 %v301
        %v480 = vunpack.c.h.b16 %v301
        %v481 = vunpack.c.l.b16 %v302
        %v482 = vunpack.c.l.b16 %v303
        %v483 = vunpack.c.h.b16 %v303
        %v484 = vunpack.c.l.b16 %v304
        %v485 = vunpack.c.l.b16 %v305
        %v486 = vunpack.c.h.b16 %v305
        %v487 = vunpack.c.l.b16 %v306
        %v488 = vunpack.c.l.b16 %v307
        %v489 = vunpack.c.h.b16 %v307
        %v490 = vunpack.c.l.b16 %v308
        %v491 = vunpack.c.l.b16 %v309
        %v492 = vunpack.c.h.b16 %v309
        %v493 = vunpack.c.l.b16 %v310
        %v494 = vunpack.c.l.b16 %v311
        %v495 = vunpack.c.h.b16 %v311
        %v496 = vunpack.c.l.b16 %v312
        %v497 = vunpack.c.l.b16 %v313
        %v498 = vunpack.c.h.b16 %v313
        %v499 = vunpack.c.l.b16 %v314
        %v500 = vunpack.c.l.b16 %v315
        %v501 = vunpack.c.h.b16 %v315
        %v502 = vunpack.c.l.b16 %v316
        %v503 = vunpack.c.l.b16 %v317
        %v504 = vunpack.c.h.b16 %v317
        %v505 = vunpack.c.l.b16 %v318
        %v506 = vunpack.c.l.b16 %v319
        %v507 = vunpack.c.h.b16 %v319
        %v508 = vunpack.c.l.b16 %v320
        %v509 = vunpack.c.l.b16 %v321
        %v510 = vunpack.c.h.b16 %v321
        %v511 = vunpack.c.l.b16 %v322
        %v512 = vunpack.c.l.b16 %v323
        %v513 = vunpack.c.h.b16 %v323
        %v514 = vunpack.c.l.b16 %v324
        %v515 = vunpack.c.l.b16 %v325
        %v516 = vunpack.c.h.b16 %v325
        %v517 = vunpack.c.l.b16 %v326
        %v518 = vunpack.c.l.b16 %v327
        %v519 = vunpack.c.h.b16 %v327
        %v520 = vunpack.c.l.b16 %v328
        %v521 = vunpack.c.l.b16 %v329
        %v522 = vunpack.c.h.b16 %v329
        %v523 = vunpack.c.l.b16 %v330
        %v524 = vunpack.c.l.b16 %v331
        %v525 = vunpack.c.h.b16 %v331
        %v526 = vunpack.c.l.b16 %v332
        %v527 = vunpack.c.l.b16 %v333
        %v528 = vunpack.c.h.b16 %v333
        %v529 = vunpack.c.l.b16 %v334
        %v530 = vunpack.c.l.b16 %v335
        %v531 = vunpack.c.h.b16 %v335
        %v532 = vunpack.c.l.b16 %v336
        %v533 = vunpack.c.l.b16 %v337
        %v534 = vunpack.c.h.b16 %v337
        %v535 = vunpack.c.l.b16 %v338
        %v536 = vunpack.c.l.b16 %v339
        %v537 = vunpack.c.h.b16 %v339
        %v538 = vunpack.c.l.b16 %v340
        %v539 = vunpack.c.l.b16 %v341
        %v540 = vunpack.c.h.b16 %v341
        %v541 = vunpack.c.l.b16 %v342
        %v542 = vunpack.c.l.b16 %v343
        %v543 = vunpack.c.h.b16 %v343
        %v544 = vunpack.c.l.b16 %v344
        %v545 = vpack.c.b16 %v452, %v449
        %v546 = vpack.c.b16 %v453, %v450
        %v547 = vpack.c.b16 %v454, %v451
        %v548 = vpack.c.b16 %v458, %v455
        %v549 = vpack.c.b16 %v459, %v456
        %v550 = vpack.c.b16 %v460, %v457
        %v551 = vpack.c.b16 %v464, %v461
        %v552 = vpack.c.b16 %v465, %v462
        %v553 = vpack.c.b16 %v466, %v463
        %v554 = vpack.c.b16 %v470, %v467
        %v555 = vpack.c.b16 %v471, %v468
        %v556 = vpack.c.b16 %v472, %v469
        %v557 = vpack.c.b16 %v476, %v473
        %v558 = vpack.c.b16 %v477, %v474
        %v559 = vpack.c.b16 %v478, %v475
        %v560 = vpack.c.b16 %v482, %v479
        %v561 = vpack.c.b16 %v483, %v480
        %v562 = vpack.c.b16 %v484, %v481
        %v563 = vpack.c.b16 %v488, %v485
        %v564 = vpack.c.b16 %v489, %v486
        %v565 = vpack.c.b16 %v490, %v487
        %v566 = vpack.c.b16 %v494, %v491
        %v567 = vpack.c.b16 %v495, %v492
        %v568 = vpack.c.b16 %v496, %v493
        %v569 = vpack.c.b16 %v500, %v497
        %v570 = vpack.c.b16 %v501, %v498
        %v571 = vpack.c.b16 %v502, %v499
        %v572 = vpack.c.b16 %v506, %v503
        %v573 = vpack.c.b16 %v507, %v504
        %v574 = vpack.c.b16 %v508, %v505
        %v575 = vpack.c.b16 %v512, %v509
        %v576 = vpack.c.b16 %v513, %v510
        %v577 = vpack.c.b16 %v514, %v511
        %v578 = vpack.c.b16 %v518, %v515
        %v579 = vpack.c.b16 %v519, %v516
        %v580 = vpack.c.b16 %v520, %v517
        %v581 = vpack.c.b16 %v524, %v521
        %v582 = vpack.c.b16 %v525, %v522
        %v583 = vpack.c.b16 %v526, %v523
        %v584 = vpack.c.b16 %v530, %v527
        %v585 = vpack.c.b16 %v531, %v528
        %v586 = vpack.c.b16 %v532, %v529
        %v587 = vpack.c.b16 %v536, %v533
        %v588 = vpack.c.b16 %v537, %v534
        %v589 = vpack.c.b16 %v538, %v535
        %v590 = vpack.c.b16 %v542, %v539
        %v591 = vpack.c.b16 %v543, %v540
        %v592 = vpack.c.b16 %v544, %v541
        %v661 = vunpack.c.l.b16 %v345
        %v662 = vunpack.c.l.b16 %v346
        %v663 = vunpack.c.l.b16 %v347
        %v664 = vunpack.c.l.b16 %v348
        %v665 = vunpack.c.l.b16 %v349
        %v666 = vunpack.c.l.b16 %v350
        %v667 = vunpack.c.l.b16 %v351
        %v668 = vunpack.c.l.b16 %v352
        %v669 = vunpack.c.l.b16 %v353
        %v670 = vunpack.c.l.b16 %v354
        %v671 = vunpack.c.l.b16 %v355
        %v672 = vunpack.c.l.b16 %v356
        %v673 = vunpack.c.l.b16 %v357
        %v674 = vunpack.c.l.b16 %v358
        %v675 = vunpack.c.l.b16 %v359
        %v676 = vunpack.c.l.b16 %v360
        %v677 = vunpack.c.l.b16 %v361
        %v678 = vunpack.c.l.b16 %v362
        %v679 = vunpack.c.l.b16 %v363
        %v680 = vunpack.c.l.b16 %v364
        %v681 = vunpack.c.l.b16 %v365
        %v682 = vunpack.c.l.b16 %v366
        %v683 = vunpack.c.l.b16 %v367
        %v684 = vunpack.c.l.b16 %v368
        %v685 = vunpack.c.l.b16 %v369
        %v686 = vunpack.c.l.b16 %v370
        %v687 = vunpack.c.l.b16 %v371
        %v688 = vunpack.c.l.b16 %v372
        %v689 = vunpack.c.l.b16 %v373
        %v690 = vunpack.c.l.b16 %v374
        %v691 = vunpack.c.l.b16 %v375
        %v692 = vunpack.c.l.b16 %v376
        %v693 = vunpack.c.l.b16 %v377
        %v694 = vunpack.c.l.b16 %v378
        %v695 = vunpack.c.l.b16 %v379
        %v696 = vunpack.c.l.b16 %v380
        %v697 = vpack.c.b16 %v662, %v661
        %v698 = vpack.c.b16 %v664, %v663
        %v699 = vpack.c.b16 %v666, %v665
        %v700 = vpack.c.b16 %v668, %v667
        %v701 = vpack.c.b16 %v670, %v669
        %v702 = vpack.c.b16 %v672, %v671
        %v703 = vpack.c.b16 %v674, %v673
        %v704 = vpack.c.b16 %v676, %v675
        %v705 = vpack.c.b16 %v678, %v677
        %v706 = vpack.c.b16 %v680, %v679
        %v707 = vpack.c.b16 %v682, %v681
        %v708 = vpack.c.b16 %v684, %v683
        %v709 = vpack.c.b16 %v686, %v685
        %v710 = vpack.c.b16 %v688, %v687
        %v711 = vpack.c.b16 %v690, %v689
        %v712 = vpack.c.b16 %v692, %v691
        %v713 = vpack.c.b16 %v694, %v693
        %v714 = vpack.c.b16 %v696, %v695
        %vm733 = vcmask 261120
        %v735 = vsel %vm733, %v547, 0
        %v738 = vsel %vm733, %v550, 0
        %v741 = vsel %vm733, %v553, 0
        %v744 = vsel %vm733, %v556, 0
        %v747 = vsel %vm733, %v559, 0
        %v750 = vsel %vm733, %v562, 0
        %v753 = vsel %vm733, %v565, 0
        %v756 = vsel %vm733, %v568, 0
        %v759 = vsel %vm733, %v571, 0
        %v762 = vsel %vm733, %v574, 0
        %v765 = vsel %vm733, %v577, 0
        %v768 = vsel %vm733, %v580, 0
        %v771 = vsel %vm733, %v583, 0
        %v774 = vsel %vm733, %v586, 0
        %v777 = vsel %vm733, %v589, 0
        %v780 = vsel %vm733, %v592, 0
        %782 = vmatpush.bf16.msra.mxu0 %v704
        %783 = vmatpush.bf16.msra.mxu0 %v703
        %784 = vmatpush.bf16.msra.mxu0 %v702
        %785 = vmatpush.bf16.msra.mxu0 %v701
        %786 = vmatpush.bf16.msra.mxu0 %v700
        %787 = vmatpush.bf16.msra.mxu0 %v699
        %788 = vmatpush.bf16.msra.mxu0 %v698
        %789 = vmatpush.bf16.msra.mxu0 %v697
        %790 = vmatmul.bf16.gmra.mxu0 %v545
        %v791 = vpop.f32.mrf.mxu0
        %v792 = vadd.f32 %v383, %v791
        %v793 = vpop.f32.mrf.mxu0
        %v794 = vadd.f32 %v383, %v793
        %795 = vmatmul.bf16.gmra.mxu0 %v548
        %v796 = vpop.f32.mrf.mxu0
        %v797 = vadd.f32 %v383, %v796
        %v798 = vpop.f32.mrf.mxu0
        %v799 = vadd.f32 %v383, %v798
        %800 = vmatmul.bf16.gmra.mxu0 %v551
        %v801 = vpop.f32.mrf.mxu0
        %v802 = vadd.f32 %v383, %v801
        %v803 = vpop.f32.mrf.mxu0
        %v804 = vadd.f32 %v383, %v803
        %805 = vmatmul.bf16.gmra.mxu0 %v554
        %v806 = vpop.f32.mrf.mxu0
        %v807 = vadd.f32 %v383, %v806
        %v808 = vpop.f32.mrf.mxu0
        %v809 = vadd.f32 %v383, %v808
        %810 = vmatmul.bf16.gmra.mxu0 %v557
        %v811 = vpop.f32.mrf.mxu0
        %v812 = vadd.f32 %v383, %v811
        %v813 = vpop.f32.mrf.mxu0
        %v814 = vadd.f32 %v383, %v813
        %815 = vmatmul.bf16.gmra.mxu0 %v560
        %v816 = vpop.f32.mrf.mxu0
        %v817 = vadd.f32 %v383, %v816
        %v818 = vpop.f32.mrf.mxu0
        %v819 = vadd.f32 %v383, %v818
        %820 = vmatmul.bf16.gmra.mxu0 %v563
        %v821 = vpop.f32.mrf.mxu0
        %v822 = vadd.f32 %v383, %v821
        %v823 = vpop.f32.mrf.mxu0
        %v824 = vadd.f32 %v383, %v823
        %825 = vmatmul.bf16.gmra.mxu0 %v566
        %v826 = vpop.f32.mrf.mxu0
        %v827 = vadd.f32 %v383, %v826
        %v828 = vpop.f32.mrf.mxu0
        %v829 = vadd.f32 %v383, %v828
        %830 = vmatmul.bf16.gmra.mxu0 %v569
        %v831 = vpop.f32.mrf.mxu0
        %v832 = vadd.f32 %v383, %v831
        %v833 = vpop.f32.mrf.mxu0
        %v834 = vadd.f32 %v383, %v833
        %835 = vmatmul.bf16.gmra.mxu0 %v572
        %v836 = vpop.f32.mrf.mxu0
        %v837 = vadd.f32 %v383, %v836
        %v838 = vpop.f32.mrf.mxu0
        %v839 = vadd.f32 %v383, %v838
        %840 = vmatmul.bf16.gmra.mxu0 %v575
        %v841 = vpop.f32.mrf.mxu0
        %v842 = vadd.f32 %v383, %v841
        %v843 = vpop.f32.mrf.mxu0
        %v844 = vadd.f32 %v383, %v843
        %845 = vmatmul.bf16.gmra.mxu0 %v578
        %v846 = vpop.f32.mrf.mxu0
        %v847 = vadd.f32 %v383, %v846
        %v848 = vpop.f32.mrf.mxu0
        %v849 = vadd.f32 %v383, %v848
        %850 = vmatmul.bf16.gmra.mxu0 %v581
        %v851 = vpop.f32.mrf.mxu0
        %v852 = vadd.f32 %v383, %v851
        %v853 = vpop.f32.mrf.mxu0
        %v854 = vadd.f32 %v383, %v853
        %855 = vmatmul.bf16.gmra.mxu0 %v584
        %v856 = vpop.f32.mrf.mxu0
        %v857 = vadd.f32 %v383, %v856
        %v858 = vpop.f32.mrf.mxu0
        %v859 = vadd.f32 %v383, %v858
        %860 = vmatmul.bf16.gmra.mxu0 %v587
        %v861 = vpop.f32.mrf.mxu0
        %v862 = vadd.f32 %v383, %v861
        %v863 = vpop.f32.mrf.mxu0
        %v864 = vadd.f32 %v383, %v863
        %865 = vmatmul.bf16.gmra.mxu0 %v590
        %v866 = vpop.f32.mrf.mxu0
        %v867 = vadd.f32 %v383, %v866
        %v868 = vpop.f32.mrf.mxu0
        %v869 = vadd.f32 %v383, %v868
        %870 = vdwg.mxu0
        %871 = vmatpush.bf16.msra.mxu0 %v712
        %872 = vmatpush.bf16.msra.mxu0 %v711
        %873 = vmatpush.bf16.msra.mxu0 %v710
        %874 = vmatpush.bf16.msra.mxu0 %v709
        %875 = vmatpush.bf16.msra.mxu0 %v708
        %876 = vmatpush.bf16.msra.mxu0 %v707
        %877 = vmatpush.bf16.msra.mxu0 %v706
        %878 = vmatpush.bf16.msra.mxu0 %v705
        %879 = vmatmul.bf16.gmra.mxu0 %v546
        %v880 = vpop.f32.mrf.mxu0
        %v881 = vadd.f32 %v792, %v880
        %v882 = vpop.f32.mrf.mxu0
        %v883 = vadd.f32 %v794, %v882
        %884 = vmatmul.bf16.gmra.mxu0 %v549
        %v885 = vpop.f32.mrf.mxu0
        %v886 = vadd.f32 %v797, %v885
        %v887 = vpop.f32.mrf.mxu0
        %v888 = vadd.f32 %v799, %v887
        %889 = vmatmul.bf16.gmra.mxu0 %v552
        %v890 = vpop.f32.mrf.mxu0
        %v891 = vadd.f32 %v802, %v890
        %v892 = vpop.f32.mrf.mxu0
        %v893 = vadd.f32 %v804, %v892
        %894 = vmatmul.bf16.gmra.mxu0 %v555
        %v895 = vpop.f32.mrf.mxu0
        %v896 = vadd.f32 %v807, %v895
        %v897 = vpop.f32.mrf.mxu0
        %v898 = vadd.f32 %v809, %v897
        %899 = vmatmul.bf16.gmra.mxu0 %v558
        %v900 = vpop.f32.mrf.mxu0
        %v901 = vadd.f32 %v812, %v900
        %v902 = vpop.f32.mrf.mxu0
        %v903 = vadd.f32 %v814, %v902
        %904 = vmatmul.bf16.gmra.mxu0 %v561
        %v905 = vpop.f32.mrf.mxu0
        %v906 = vadd.f32 %v817, %v905
        %v907 = vpop.f32.mrf.mxu0
        %v908 = vadd.f32 %v819, %v907
        %909 = vmatmul.bf16.gmra.mxu0 %v564
        %v910 = vpop.f32.mrf.mxu0
        %v911 = vadd.f32 %v822, %v910
        %v912 = vpop.f32.mrf.mxu0
        %v913 = vadd.f32 %v824, %v912
        %914 = vmatmul.bf16.gmra.mxu0 %v567
        %v915 = vpop.f32.mrf.mxu0
        %v916 = vadd.f32 %v827, %v915
        %v917 = vpop.f32.mrf.mxu0
        %v918 = vadd.f32 %v829, %v917
        %919 = vmatmul.bf16.gmra.mxu0 %v570
        %v920 = vpop.f32.mrf.mxu0
        %v921 = vadd.f32 %v832, %v920
        %v922 = vpop.f32.mrf.mxu0
        %v923 = vadd.f32 %v834, %v922
        %924 = vmatmul.bf16.gmra.mxu0 %v573
        %v925 = vpop.f32.mrf.mxu0
        %v926 = vadd.f32 %v837, %v925
        %v927 = vpop.f32.mrf.mxu0
        %v928 = vadd.f32 %v839, %v927
        %929 = vmatmul.bf16.gmra.mxu0 %v576
        %v930 = vpop.f32.mrf.mxu0
        %v931 = vadd.f32 %v842, %v930
        %v932 = vpop.f32.mrf.mxu0
        %v933 = vadd.f32 %v844, %v932
        %934 = vmatmul.bf16.gmra.mxu0 %v579
        %v935 = vpop.f32.mrf.mxu0
        %v936 = vadd.f32 %v847, %v935
        %v937 = vpop.f32.mrf.mxu0
        %v938 = vadd.f32 %v849, %v937
        %939 = vmatmul.bf16.gmra.mxu0 %v582
        %v940 = vpop.f32.mrf.mxu0
        %v941 = vadd.f32 %v852, %v940
        %v942 = vpop.f32.mrf.mxu0
        %v943 = vadd.f32 %v854, %v942
        %944 = vmatmul.bf16.gmra.mxu0 %v585
        %v945 = vpop.f32.mrf.mxu0
        %v946 = vadd.f32 %v857, %v945
        %v947 = vpop.f32.mrf.mxu0
        %v948 = vadd.f32 %v859, %v947
        %949 = vmatmul.bf16.gmra.mxu0 %v588
        %v950 = vpop.f32.mrf.mxu0
        %v951 = vadd.f32 %v862, %v950
        %v952 = vpop.f32.mrf.mxu0
        %v953 = vadd.f32 %v864, %v952
        %954 = vmatmul.bf16.gmra.mxu0 %v591
        %v955 = vpop.f32.mrf.mxu0
        %v956 = vadd.f32 %v867, %v955
        %v957 = vpop.f32.mrf.mxu0
        %v958 = vadd.f32 %v869, %v957
        %959 = vdwg.mxu0
        %960 = vmatpush.bf16.msra.mxu0 0
        %961 = vmatpush.bf16.msra.mxu0 0
        %962 = vmatpush.bf16.msra.mxu0 0
        %963 = vmatpush.bf16.msra.mxu0 0
        %964 = vmatpush.bf16.msra.mxu0 0
        %965 = vmatpush.bf16.msra.mxu0 0
        %966 = vmatpush.bf16.msra.mxu0 %v714
        %967 = vmatpush.bf16.msra.mxu0 %v713
        %968 = vmatmul.bf16.gmra.mxu0 %v735
        %v969 = vpop.f32.mrf.mxu0
        %v970 = vadd.f32 %v881, %v969
        %v971 = vpop.f32.mrf.mxu0
        %v972 = vadd.f32 %v883, %v971
        %973 = vmatmul.bf16.gmra.mxu0 %v738
        %v974 = vpop.f32.mrf.mxu0
        %v975 = vadd.f32 %v886, %v974
        %v976 = vpop.f32.mrf.mxu0
        %v977 = vadd.f32 %v888, %v976
        %978 = vmatmul.bf16.gmra.mxu0 %v741
        %v979 = vpop.f32.mrf.mxu0
        %v980 = vadd.f32 %v891, %v979
        %v981 = vpop.f32.mrf.mxu0
        %v982 = vadd.f32 %v893, %v981
        %983 = vmatmul.bf16.gmra.mxu0 %v744
        %v984 = vpop.f32.mrf.mxu0
        %v985 = vadd.f32 %v896, %v984
        %v986 = vpop.f32.mrf.mxu0
        %v987 = vadd.f32 %v898, %v986
        %988 = vmatmul.bf16.gmra.mxu0 %v747
        %v989 = vpop.f32.mrf.mxu0
        %v990 = vadd.f32 %v901, %v989
        %v991 = vpop.f32.mrf.mxu0
        %v992 = vadd.f32 %v903, %v991
        %993 = vmatmul.bf16.gmra.mxu0 %v750
        %v994 = vpop.f32.mrf.mxu0
        %v995 = vadd.f32 %v906, %v994
        %v996 = vpop.f32.mrf.mxu0
        %v997 = vadd.f32 %v908, %v996
        %998 = vmatmul.bf16.gmra.mxu0 %v753
        %v999 = vpop.f32.mrf.mxu0
        %v1000 = vadd.f32 %v911, %v999
        %v1001 = vpop.f32.mrf.mxu0
        %v1002 = vadd.f32 %v913, %v1001
        %1003 = vmatmul.bf16.gmra.mxu0 %v756
        %v1004 = vpop.f32.mrf.mxu0
        %v1005 = vadd.f32 %v916, %v1004
        %v1006 = vpop.f32.mrf.mxu0
        %v1007 = vadd.f32 %v918, %v1006
        %1008 = vmatmul.bf16.gmra.mxu0 %v759
        %v1009 = vpop.f32.mrf.mxu0
        %v1010 = vadd.f32 %v921, %v1009
        %v1011 = vpop.f32.mrf.mxu0
        %v1012 = vadd.f32 %v923, %v1011
        %1013 = vmatmul.bf16.gmra.mxu0 %v762
        %v1014 = vpop.f32.mrf.mxu0
        %v1015 = vadd.f32 %v926, %v1014
        %v1016 = vpop.f32.mrf.mxu0
        %v1017 = vadd.f32 %v928, %v1016
        %1018 = vmatmul.bf16.gmra.mxu0 %v765
        %v1019 = vpop.f32.mrf.mxu0
        %v1020 = vadd.f32 %v931, %v1019
        %v1021 = vpop.f32.mrf.mxu0
        %v1022 = vadd.f32 %v933, %v1021
        %1023 = vmatmul.bf16.gmra.mxu0 %v768
        %v1024 = vpop.f32.mrf.mxu0
        %v1025 = vadd.f32 %v936, %v1024
        %v1026 = vpop.f32.mrf.mxu0
        %v1027 = vadd.f32 %v938, %v1026
        %1028 = vmatmul.bf16.gmra.mxu0 %v771
        %v1029 = vpop.f32.mrf.mxu0
        %v1030 = vadd.f32 %v941, %v1029
        %v1031 = vpop.f32.mrf.mxu0
        %v1032 = vadd.f32 %v943, %v1031
        %1033 = vmatmul.bf16.gmra.mxu0 %v774
        %v1034 = vpop.f32.mrf.mxu0
        %v1035 = vadd.f32 %v946, %v1034
        %v1036 = vpop.f32.mrf.mxu0
        %v1037 = vadd.f32 %v948, %v1036
        %1038 = vmatmul.bf16.gmra.mxu0 %v777
        %v1039 = vpop.f32.mrf.mxu0
        %v1040 = vadd.f32 %v951, %v1039
        %v1041 = vpop.f32.mrf.mxu0
        %v1042 = vadd.f32 %v953, %v1041
        %1043 = vmatmul.bf16.gmra.mxu0 %v780
        %v1044 = vpop.f32.mrf.mxu0
        %v1045 = vadd.f32 %v956, %v1044
        %v1046 = vpop.f32.mrf.mxu0
        %v1047 = vadd.f32 %v958, %v1046
        %1048 = vdwg.mxu0
        %v1049 = vld [vmem:[%s277] sm:$0xf]
        %v1050 = vld [vmem:[%s277 + $0x4] sm:$0xf]
        %v1051 = vld [vmem:[%s277 + $0x8] sm:$0xf]
        %v1052 = vld [vmem:[%s277 + $0xc] sm:$0xf]
        %v1053 = vld [vmem:[%s277 + $0x10] sm:$0xf]
        %v1054 = vld [vmem:[%s277 + $0x14] sm:$0xf]
        %v1055 = vld [vmem:[%s277 + $0x18] sm:$0xf]
        %v1056 = vld [vmem:[%s277 + $0x1c] sm:$0xf]
        %v1057 = vld [vmem:[%s277 + $0x20] sm:$0xf]
        %v1058 = vld [vmem:[%s277 + $0x24] sm:$0xf]
        %v1059 = vld [vmem:[%s277 + $0x28] sm:$0xf]
        %v1060 = vld [vmem:[%s277 + $0x2c] sm:$0xf]
        %v1061 = vld [vmem:[%s277 + $0x30] sm:$0xf]
        %v1062 = vld [vmem:[%s277 + $0x34] sm:$0xf]
        %v1063 = vld [vmem:[%s277 + $0x38] sm:$0xf]
        %v1064 = vld [vmem:[%s277 + $0x3c] sm:$0xf]
        %v1065 = vld [vmem:[%s277 + $0x40] sm:$0xf]
        %v1066 = vld [vmem:[%s277 + $0x44] sm:$0xf]
        %v1067 = vld [vmem:[%s277 + $0x48] sm:$0xf]
        %v1068 = vld [vmem:[%s277 + $0x4c] sm:$0xf]
        %v1069 = vld [vmem:[%s277 + $0x50] sm:$0xf]
        %v1070 = vld [vmem:[%s277 + $0x54] sm:$0xf]
        %v1071 = vld [vmem:[%s277 + $0x58] sm:$0xf]
        %v1072 = vld [vmem:[%s277 + $0x5c] sm:$0xf]
        %v1073 = vld [vmem:[%s277 + $0x60] sm:$0xf]
        %v1074 = vld [vmem:[%s277 + $0x64] sm:$0xf]
        %v1075 = vld [vmem:[%s277 + $0x68] sm:$0xf]
        %v1076 = vld [vmem:[%s277 + $0x6c] sm:$0xf]
        %v1077 = vld [vmem:[%s277 + $0x70] sm:$0xf]
        %v1078 = vld [vmem:[%s277 + $0x74] sm:$0xf]
        %v1079 = vld [vmem:[%s277 + $0x78] sm:$0xf]
        %v1080 = vld [vmem:[%s277 + $0x7c] sm:$0xf]
        %v1081 = vunpack.c.l.bf16 %v1049
        %v1082 = vunpack.c.l.bf16 %v1050
        %v1083 = vunpack.c.l.bf16 %v1051
        %v1084 = vunpack.c.l.bf16 %v1052
        %v1085 = vunpack.c.l.bf16 %v1053
        %v1086 = vunpack.c.l.bf16 %v1054
        %v1087 = vunpack.c.l.bf16 %v1055
        %v1088 = vunpack.c.l.bf16 %v1056
        %v1089 = vunpack.c.l.bf16 %v1057
        %v1090 = vunpack.c.l.bf16 %v1058
        %v1091 = vunpack.c.l.bf16 %v1059
        %v1092 = vunpack.c.l.bf16 %v1060
        %v1093 = vunpack.c.l.bf16 %v1061
        %v1094 = vunpack.c.l.bf16 %v1062
        %v1095 = vunpack.c.l.bf16 %v1063
        %v1096 = vunpack.c.l.bf16 %v1064
        %v1097 = vunpack.c.l.bf16 %v1065
        %v1098 = vunpack.c.l.bf16 %v1066
        %v1099 = vunpack.c.l.bf16 %v1067
        %v1100 = vunpack.c.l.bf16 %v1068
        %v1101 = vunpack.c.l.bf16 %v1069
        %v1102 = vunpack.c.l.bf16 %v1070
        %v1103 = vunpack.c.l.bf16 %v1071
        %v1104 = vunpack.c.l.bf16 %v1072
        %v1105 = vunpack.c.l.bf16 %v1073
        %v1106 = vunpack.c.l.bf16 %v1074
        %v1107 = vunpack.c.l.bf16 %v1075
        %v1108 = vunpack.c.l.bf16 %v1076
        %v1109 = vunpack.c.l.bf16 %v1077
        %v1110 = vunpack.c.l.bf16 %v1078
        %v1111 = vunpack.c.l.bf16 %v1079
        %v1112 = vunpack.c.l.bf16 %v1080
        %v1113 = vadd.f32 %v970, %v1081
        %v1114 = vadd.f32 %v972, %v1082
        %v1115 = vadd.f32 %v975, %v1083
        %v1116 = vadd.f32 %v977, %v1084
        %v1117 = vadd.f32 %v980, %v1085
        %v1118 = vadd.f32 %v982, %v1086
        %v1119 = vadd.f32 %v985, %v1087
        %v1120 = vadd.f32 %v987, %v1088
        %v1121 = vadd.f32 %v990, %v1089
        %v1122 = vadd.f32 %v992, %v1090
        %v1123 = vadd.f32 %v995, %v1091
        %v1124 = vadd.f32 %v997, %v1092
        %v1125 = vadd.f32 %v1000, %v1093
        %v1126 = vadd.f32 %v1002, %v1094
        %v1127 = vadd.f32 %v1005, %v1095
        %v1128 = vadd.f32 %v1007, %v1096
        %v1129 = vadd.f32 %v1010, %v1097
        %v1130 = vadd.f32 %v1012, %v1098
        %v1131 = vadd.f32 %v1015, %v1099
        %v1132 = vadd.f32 %v1017, %v1100
        %v1133 = vadd.f32 %v1020, %v1101
        %v1134 = vadd.f32 %v1022, %v1102
        %v1135 = vadd.f32 %v1025, %v1103
        %v1136 = vadd.f32 %v1027, %v1104
        %v1137 = vadd.f32 %v1030, %v1105
        %v1138 = vadd.f32 %v1032, %v1106
        %v1139 = vadd.f32 %v1035, %v1107
        %v1140 = vadd.f32 %v1037, %v1108
        %v1141 = vadd.f32 %v1040, %v1109
        %v1142 = vadd.f32 %v1042, %v1110
        %v1143 = vadd.f32 %v1045, %v1111
        %v1144 = vadd.f32 %v1047, %v1112
        %v1145 = vxor.u32 %v1113, 2147483648
        %v1146 = vxor.u32 %v1114, 2147483648
        %v1147 = vxor.u32 %v1115, 2147483648
        %v1148 = vxor.u32 %v1116, 2147483648
        %v1149 = vxor.u32 %v1117, 2147483648
        %v1150 = vxor.u32 %v1118, 2147483648
        %v1151 = vxor.u32 %v1119, 2147483648
        %v1152 = vxor.u32 %v1120, 2147483648
        %v1153 = vxor.u32 %v1121, 2147483648
        %v1154 = vxor.u32 %v1122, 2147483648
        %v1155 = vxor.u32 %v1123, 2147483648
        %v1156 = vxor.u32 %v1124, 2147483648
        %v1157 = vxor.u32 %v1125, 2147483648
        %v1158 = vxor.u32 %v1126, 2147483648
        %v1159 = vxor.u32 %v1127, 2147483648
        %v1160 = vxor.u32 %v1128, 2147483648
        %v1161 = vxor.u32 %v1129, 2147483648
        %v1162 = vxor.u32 %v1130, 2147483648
        %v1163 = vxor.u32 %v1131, 2147483648
        %v1164 = vxor.u32 %v1132, 2147483648
        %v1165 = vxor.u32 %v1133, 2147483648
        %v1166 = vxor.u32 %v1134, 2147483648
        %v1167 = vxor.u32 %v1135, 2147483648
        %v1168 = vxor.u32 %v1136, 2147483648
        %v1169 = vxor.u32 %v1137, 2147483648
        %v1170 = vxor.u32 %v1138, 2147483648
        %v1171 = vxor.u32 %v1139, 2147483648
        %v1172 = vxor.u32 %v1140, 2147483648
        %v1173 = vxor.u32 %v1141, 2147483648
        %v1174 = vxor.u32 %v1142, 2147483648
        %v1175 = vxor.u32 %v1143, 2147483648
        %v1176 = vxor.u32 %v1144, 2147483648
        %v1177 = vmul.f32 %v1145, 1.442695
        %v1178 = vpow.pop %v1177
        %v1179 = vmul.f32 %v1146, 1.442695
        %v1180 = vpow.pop %v1179
        %v1181 = vmul.f32 %v1147, 1.442695
        %v1182 = vpow.pop %v1181
        %v1183 = vmul.f32 %v1148, 1.442695
        %v1184 = vpow.pop %v1183
        %v1185 = vmul.f32 %v1149, 1.442695
        %v1186 = vpow.pop %v1185
        %v1187 = vmul.f32 %v1150, 1.442695
        %v1188 = vpow.pop %v1187
        %v1189 = vmul.f32 %v1151, 1.442695
        %v1190 = vpow.pop %v1189
        %v1191 = vmul.f32 %v1152, 1.442695
        %v1192 = vpow.pop %v1191
        %v1193 = vmul.f32 %v1153, 1.442695
        %v1194 = vpow.pop %v1193
        %v1195 = vmul.f32 %v1154, 1.442695
        %v1196 = vpow.pop %v1195
        %v1197 = vmul.f32 %v1155, 1.442695
        %v1198 = vpow.pop %v1197
        %v1199 = vmul.f32 %v1156, 1.442695
        %v1200 = vpow.pop %v1199
        %v1201 = vmul.f32 %v1157, 1.442695
        %v1202 = vpow.pop %v1201
        %v1203 = vmul.f32 %v1158, 1.442695
        %v1204 = vpow.pop %v1203
        %v1205 = vmul.f32 %v1159, 1.442695
        %v1206 = vpow.pop %v1205
        %v1207 = vmul.f32 %v1160, 1.442695
        %v1208 = vpow.pop %v1207
        %v1209 = vmul.f32 %v1161, 1.442695
        %v1210 = vpow.pop %v1209
        %v1211 = vmul.f32 %v1162, 1.442695
        %v1212 = vpow.pop %v1211
        %v1213 = vmul.f32 %v1163, 1.442695
        %v1214 = vpow.pop %v1213
        %v1215 = vmul.f32 %v1164, 1.442695
        %v1216 = vpow.pop %v1215
        %v1217 = vmul.f32 %v1165, 1.442695
        %v1218 = vpow.pop %v1217
        %v1219 = vmul.f32 %v1166, 1.442695
        %v1220 = vpow.pop %v1219
        %v1221 = vmul.f32 %v1167, 1.442695
        %v1222 = vpow.pop %v1221
        %v1223 = vmul.f32 %v1168, 1.442695
        %v1224 = vpow.pop %v1223
        %v1225 = vmul.f32 %v1169, 1.442695
        %v1226 = vpow.pop %v1225
        %v1227 = vmul.f32 %v1170, 1.442695
        %v1228 = vpow.pop %v1227
        %v1229 = vmul.f32 %v1171, 1.442695
        %v1230 = vpow.pop %v1229
        %v1231 = vmul.f32 %v1172, 1.442695
        %v1232 = vpow.pop %v1231
        %v1233 = vmul.f32 %v1173, 1.442695
        %v1234 = vpow.pop %v1233
        %v1235 = vmul.f32 %v1174, 1.442695
        %v1236 = vpow.pop %v1235
        %v1237 = vmul.f32 %v1175, 1.442695
        %v1238 = vpow.pop %v1237
        %v1239 = vmul.f32 %v1176, 1.442695
        %v1240 = vpow.pop %v1239
        %v1241 = vadd.f32 %v1178, 1.0
        %v1242 = vadd.f32 %v1180, 1.0
        %v1243 = vadd.f32 %v1182, 1.0
        %v1244 = vadd.f32 %v1184, 1.0
        %v1245 = vadd.f32 %v1186, 1.0
        %v1246 = vadd.f32 %v1188, 1.0
        %v1247 = vadd.f32 %v1190, 1.0
        %v1248 = vadd.f32 %v1192, 1.0
        %v1249 = vadd.f32 %v1194, 1.0
        %v1250 = vadd.f32 %v1196, 1.0
        %v1251 = vadd.f32 %v1198, 1.0
        %v1252 = vadd.f32 %v1200, 1.0
        %v1253 = vadd.f32 %v1202, 1.0
        %v1254 = vadd.f32 %v1204, 1.0
        %v1255 = vadd.f32 %v1206, 1.0
        %v1256 = vadd.f32 %v1208, 1.0
        %v1257 = vadd.f32 %v1210, 1.0
        %v1258 = vadd.f32 %v1212, 1.0
        %v1259 = vadd.f32 %v1214, 1.0
        %v1260 = vadd.f32 %v1216, 1.0
        %v1261 = vadd.f32 %v1218, 1.0
        %v1262 = vadd.f32 %v1220, 1.0
        %v1263 = vadd.f32 %v1222, 1.0
        %v1264 = vadd.f32 %v1224, 1.0
        %v1265 = vadd.f32 %v1226, 1.0
        %v1266 = vadd.f32 %v1228, 1.0
        %v1267 = vadd.f32 %v1230, 1.0
        %v1268 = vadd.f32 %v1232, 1.0
        %v1269 = vadd.f32 %v1234, 1.0
        %v1270 = vadd.f32 %v1236, 1.0
        %v1271 = vadd.f32 %v1238, 1.0
        %v1272 = vadd.f32 %v1240, 1.0
        %v1273 = vrcp.pop %v1241
        %v1274 = vmul.f32 %v1241, %v1273
        %v1275 = vsub.f32 1.0, %v1274
        %v1276 = vmul.f32 %v1273, %v1275
        %v1277 = vadd.f32 %v1273, %v1276
        %vm1278 = vweird.f32 %v1241
        %vm1279 = vweird.f32 %v1273
        %vm1280 = vmor %vm1278, %vm1279
        %v1281 = vsel %vm1280, %v1273, %v1277
        %v1282 = vand.u32 2147483647, %v1241
        %vm1283 = vcmp.eq.f32.partialorder %v1282, 8.507059e+37
        %v1284 = vand.u32 %v1241, 2147483648
        %v1285 = vor.u32 1.1754944e-38, %v1284
        %v1286 = vsel %vm1283, %v1285, %v1281
        %v1287 = vmul.f32 1.0, %v1286
        %v1288 = vrcp.pop %v1242
        %v1289 = vmul.f32 %v1242, %v1288
        %v1290 = vsub.f32 1.0, %v1289
        %v1291 = vmul.f32 %v1288, %v1290
        %v1292 = vadd.f32 %v1288, %v1291
        %vm1293 = vweird.f32 %v1242
        %vm1294 = vweird.f32 %v1288
        %vm1295 = vmor %vm1293, %vm1294
        %v1296 = vsel %vm1295, %v1288, %v1292
        %v1297 = vand.u32 2147483647, %v1242
        %vm1298 = vcmp.eq.f32.partialorder %v1297, 8.507059e+37
        %v1299 = vand.u32 %v1242, 2147483648
        %v1300 = vor.u32 1.1754944e-38, %v1299
        %v1301 = vsel %vm1298, %v1300, %v1296
        %v1302 = vmul.f32 1.0, %v1301
        %v1303 = vrcp.pop %v1243
        %v1304 = vmul.f32 %v1243, %v1303
        %v1305 = vsub.f32 1.0, %v1304
        %v1306 = vmul.f32 %v1303, %v1305
        %v1307 = vadd.f32 %v1303, %v1306
        %vm1308 = vweird.f32 %v1243
        %vm1309 = vweird.f32 %v1303
        %vm1310 = vmor %vm1308, %vm1309
        %v1311 = vsel %vm1310, %v1303, %v1307
        %v1312 = vand.u32 2147483647, %v1243
        %vm1313 = vcmp.eq.f32.partialorder %v1312, 8.507059e+37
        %v1314 = vand.u32 %v1243, 2147483648
        %v1315 = vor.u32 1.1754944e-38, %v1314
        %v1316 = vsel %vm1313, %v1315, %v1311
        %v1317 = vmul.f32 1.0, %v1316
        %v1318 = vrcp.pop %v1244
        %v1319 = vmul.f32 %v1244, %v1318
        %v1320 = vsub.f32 1.0, %v1319
        %v1321 = vmul.f32 %v1318, %v1320
        %v1322 = vadd.f32 %v1318, %v1321
        %vm1323 = vweird.f32 %v1244
        %vm1324 = vweird.f32 %v1318
        %vm1325 = vmor %vm1323, %vm1324
        %v1326 = vsel %vm1325, %v1318, %v1322
        %v1327 = vand.u32 2147483647, %v1244
        %vm1328 = vcmp.eq.f32.partialorder %v1327, 8.507059e+37
        %v1329 = vand.u32 %v1244, 2147483648
        %v1330 = vor.u32 1.1754944e-38, %v1329
        %v1331 = vsel %vm1328, %v1330, %v1326
        %v1332 = vmul.f32 1.0, %v1331
        %v1333 = vrcp.pop %v1245
        %v1334 = vmul.f32 %v1245, %v1333
        %v1335 = vsub.f32 1.0, %v1334
        %v1336 = vmul.f32 %v1333, %v1335
        %v1337 = vadd.f32 %v1333, %v1336
        %vm1338 = vweird.f32 %v1245
        %vm1339 = vweird.f32 %v1333
        %vm1340 = vmor %vm1338, %vm1339
        %v1341 = vsel %vm1340, %v1333, %v1337
        %v1342 = vand.u32 2147483647, %v1245
        %vm1343 = vcmp.eq.f32.partialorder %v1342, 8.507059e+37
        %v1344 = vand.u32 %v1245, 2147483648
        %v1345 = vor.u32 1.1754944e-38, %v1344
        %v1346 = vsel %vm1343, %v1345, %v1341
        %v1347 = vmul.f32 1.0, %v1346
        %v1348 = vrcp.pop %v1246
        %v1349 = vmul.f32 %v1246, %v1348
        %v1350 = vsub.f32 1.0, %v1349
        %v1351 = vmul.f32 %v1348, %v1350
        %v1352 = vadd.f32 %v1348, %v1351
        %vm1353 = vweird.f32 %v1246
        %vm1354 = vweird.f32 %v1348
        %vm1355 = vmor %vm1353, %vm1354
        %v1356 = vsel %vm1355, %v1348, %v1352
        %v1357 = vand.u32 2147483647, %v1246
        %vm1358 = vcmp.eq.f32.partialorder %v1357, 8.507059e+37
        %v1359 = vand.u32 %v1246, 2147483648
        %v1360 = vor.u32 1.1754944e-38, %v1359
        %v1361 = vsel %vm1358, %v1360, %v1356
        %v1362 = vmul.f32 1.0, %v1361
        %v1363 = vrcp.pop %v1247
        %v1364 = vmul.f32 %v1247, %v1363
        %v1365 = vsub.f32 1.0, %v1364
        %v1366 = vmul.f32 %v1363, %v1365
        %v1367 = vadd.f32 %v1363, %v1366
        %vm1368 = vweird.f32 %v1247
        %vm1369 = vweird.f32 %v1363
        %vm1370 = vmor %vm1368, %vm1369
        %v1371 = vsel %vm1370, %v1363, %v1367
        %v1372 = vand.u32 2147483647, %v1247
        %vm1373 = vcmp.eq.f32.partialorder %v1372, 8.507059e+37
        %v1374 = vand.u32 %v1247, 2147483648
        %v1375 = vor.u32 1.1754944e-38, %v1374
        %v1376 = vsel %vm1373, %v1375, %v1371
        %v1377 = vmul.f32 1.0, %v1376
        %v1378 = vrcp.pop %v1248
        %v1379 = vmul.f32 %v1248, %v1378
        %v1380 = vsub.f32 1.0, %v1379
        %v1381 = vmul.f32 %v1378, %v1380
        %v1382 = vadd.f32 %v1378, %v1381
        %vm1383 = vweird.f32 %v1248
        %vm1384 = vweird.f32 %v1378
        %vm1385 = vmor %vm1383, %vm1384
        %v1386 = vsel %vm1385, %v1378, %v1382
        %v1387 = vand.u32 2147483647, %v1248
        %vm1388 = vcmp.eq.f32.partialorder %v1387, 8.507059e+37
        %v1389 = vand.u32 %v1248, 2147483648
        %v1390 = vor.u32 1.1754944e-38, %v1389
        %v1391 = vsel %vm1388, %v1390, %v1386
        %v1392 = vmul.f32 1.0, %v1391
        %v1393 = vrcp.pop %v1249
        %v1394 = vmul.f32 %v1249, %v1393
        %v1395 = vsub.f32 1.0, %v1394
        %v1396 = vmul.f32 %v1393, %v1395
        %v1397 = vadd.f32 %v1393, %v1396
        %vm1398 = vweird.f32 %v1249
        %vm1399 = vweird.f32 %v1393
        %vm1400 = vmor %vm1398, %vm1399
        %v1401 = vsel %vm1400, %v1393, %v1397
        %v1402 = vand.u32 2147483647, %v1249
        %vm1403 = vcmp.eq.f32.partialorder %v1402, 8.507059e+37
        %v1404 = vand.u32 %v1249, 2147483648
        %v1405 = vor.u32 1.1754944e-38, %v1404
        %v1406 = vsel %vm1403, %v1405, %v1401
        %v1407 = vmul.f32 1.0, %v1406
        %v1408 = vrcp.pop %v1250
        %v1409 = vmul.f32 %v1250, %v1408
        %v1410 = vsub.f32 1.0, %v1409
        %v1411 = vmul.f32 %v1408, %v1410
        %v1412 = vadd.f32 %v1408, %v1411
        %vm1413 = vweird.f32 %v1250
        %vm1414 = vweird.f32 %v1408
        %vm1415 = vmor %vm1413, %vm1414
        %v1416 = vsel %vm1415, %v1408, %v1412
        %v1417 = vand.u32 2147483647, %v1250
        %vm1418 = vcmp.eq.f32.partialorder %v1417, 8.507059e+37
        %v1419 = vand.u32 %v1250, 2147483648
        %v1420 = vor.u32 1.1754944e-38, %v1419
        %v1421 = vsel %vm1418, %v1420, %v1416
        %v1422 = vmul.f32 1.0, %v1421
        %v1423 = vrcp.pop %v1251
        %v1424 = vmul.f32 %v1251, %v1423
        %v1425 = vsub.f32 1.0, %v1424
        %v1426 = vmul.f32 %v1423, %v1425
        %v1427 = vadd.f32 %v1423, %v1426
        %vm1428 = vweird.f32 %v1251
        %vm1429 = vweird.f32 %v1423
        %vm1430 = vmor %vm1428, %vm1429
        %v1431 = vsel %vm1430, %v1423, %v1427
        %v1432 = vand.u32 2147483647, %v1251
        %vm1433 = vcmp.eq.f32.partialorder %v1432, 8.507059e+37
        %v1434 = vand.u32 %v1251, 2147483648
        %v1435 = vor.u32 1.1754944e-38, %v1434
        %v1436 = vsel %vm1433, %v1435, %v1431
        %v1437 = vmul.f32 1.0, %v1436
        %v1438 = vrcp.pop %v1252
        %v1439 = vmul.f32 %v1252, %v1438
        %v1440 = vsub.f32 1.0, %v1439
        %v1441 = vmul.f32 %v1438, %v1440
        %v1442 = vadd.f32 %v1438, %v1441
        %vm1443 = vweird.f32 %v1252
        %vm1444 = vweird.f32 %v1438
        %vm1445 = vmor %vm1443, %vm1444
        %v1446 = vsel %vm1445, %v1438, %v1442
        %v1447 = vand.u32 2147483647, %v1252
        %vm1448 = vcmp.eq.f32.partialorder %v1447, 8.507059e+37
        %v1449 = vand.u32 %v1252, 2147483648
        %v1450 = vor.u32 1.1754944e-38, %v1449
        %v1451 = vsel %vm1448, %v1450, %v1446
        %v1452 = vmul.f32 1.0, %v1451
        %v1453 = vrcp.pop %v1253
        %v1454 = vmul.f32 %v1253, %v1453
        %v1455 = vsub.f32 1.0, %v1454
        %v1456 = vmul.f32 %v1453, %v1455
        %v1457 = vadd.f32 %v1453, %v1456
        %vm1458 = vweird.f32 %v1253
        %vm1459 = vweird.f32 %v1453
        %vm1460 = vmor %vm1458, %vm1459
        %v1461 = vsel %vm1460, %v1453, %v1457
        %v1462 = vand.u32 2147483647, %v1253
        %vm1463 = vcmp.eq.f32.partialorder %v1462, 8.507059e+37
        %v1464 = vand.u32 %v1253, 2147483648
        %v1465 = vor.u32 1.1754944e-38, %v1464
        %v1466 = vsel %vm1463, %v1465, %v1461
        %v1467 = vmul.f32 1.0, %v1466
        %v1468 = vrcp.pop %v1254
        %v1469 = vmul.f32 %v1254, %v1468
        %v1470 = vsub.f32 1.0, %v1469
        %v1471 = vmul.f32 %v1468, %v1470
        %v1472 = vadd.f32 %v1468, %v1471
        %vm1473 = vweird.f32 %v1254
        %vm1474 = vweird.f32 %v1468
        %vm1475 = vmor %vm1473, %vm1474
        %v1476 = vsel %vm1475, %v1468, %v1472
        %v1477 = vand.u32 2147483647, %v1254
        %vm1478 = vcmp.eq.f32.partialorder %v1477, 8.507059e+37
        %v1479 = vand.u32 %v1254, 2147483648
        %v1480 = vor.u32 1.1754944e-38, %v1479
        %v1481 = vsel %vm1478, %v1480, %v1476
        %v1482 = vmul.f32 1.0, %v1481
        %v1483 = vrcp.pop %v1255
        %v1484 = vmul.f32 %v1255, %v1483
        %v1485 = vsub.f32 1.0, %v1484
        %v1486 = vmul.f32 %v1483, %v1485
        %v1487 = vadd.f32 %v1483, %v1486
        %vm1488 = vweird.f32 %v1255
        %vm1489 = vweird.f32 %v1483
        %vm1490 = vmor %vm1488, %vm1489
        %v1491 = vsel %vm1490, %v1483, %v1487
        %v1492 = vand.u32 2147483647, %v1255
        %vm1493 = vcmp.eq.f32.partialorder %v1492, 8.507059e+37
        %v1494 = vand.u32 %v1255, 2147483648
        %v1495 = vor.u32 1.1754944e-38, %v1494
        %v1496 = vsel %vm1493, %v1495, %v1491
        %v1497 = vmul.f32 1.0, %v1496
        %v1498 = vrcp.pop %v1256
        %v1499 = vmul.f32 %v1256, %v1498
        %v1500 = vsub.f32 1.0, %v1499
        %v1501 = vmul.f32 %v1498, %v1500
        %v1502 = vadd.f32 %v1498, %v1501
        %vm1503 = vweird.f32 %v1256
        %vm1504 = vweird.f32 %v1498
        %vm1505 = vmor %vm1503, %vm1504
        %v1506 = vsel %vm1505, %v1498, %v1502
        %v1507 = vand.u32 2147483647, %v1256
        %vm1508 = vcmp.eq.f32.partialorder %v1507, 8.507059e+37
        %v1509 = vand.u32 %v1256, 2147483648
        %v1510 = vor.u32 1.1754944e-38, %v1509
        %v1511 = vsel %vm1508, %v1510, %v1506
        %v1512 = vmul.f32 1.0, %v1511
        %v1513 = vrcp.pop %v1257
        %v1514 = vmul.f32 %v1257, %v1513
        %v1515 = vsub.f32 1.0, %v1514
        %v1516 = vmul.f32 %v1513, %v1515
        %v1517 = vadd.f32 %v1513, %v1516
        %vm1518 = vweird.f32 %v1257
        %vm1519 = vweird.f32 %v1513
        %vm1520 = vmor %vm1518, %vm1519
        %v1521 = vsel %vm1520, %v1513, %v1517
        %v1522 = vand.u32 2147483647, %v1257
        %vm1523 = vcmp.eq.f32.partialorder %v1522, 8.507059e+37
        %v1524 = vand.u32 %v1257, 2147483648
        %v1525 = vor.u32 1.1754944e-38, %v1524
        %v1526 = vsel %vm1523, %v1525, %v1521
        %v1527 = vmul.f32 1.0, %v1526
        %v1528 = vrcp.pop %v1258
        %v1529 = vmul.f32 %v1258, %v1528
        %v1530 = vsub.f32 1.0, %v1529
        %v1531 = vmul.f32 %v1528, %v1530
        %v1532 = vadd.f32 %v1528, %v1531
        %vm1533 = vweird.f32 %v1258
        %vm1534 = vweird.f32 %v1528
        %vm1535 = vmor %vm1533, %vm1534
        %v1536 = vsel %vm1535, %v1528, %v1532
        %v1537 = vand.u32 2147483647, %v1258
        %vm1538 = vcmp.eq.f32.partialorder %v1537, 8.507059e+37
        %v1539 = vand.u32 %v1258, 2147483648
        %v1540 = vor.u32 1.1754944e-38, %v1539
        %v1541 = vsel %vm1538, %v1540, %v1536
        %v1542 = vmul.f32 1.0, %v1541
        %v1543 = vrcp.pop %v1259
        %v1544 = vmul.f32 %v1259, %v1543
        %v1545 = vsub.f32 1.0, %v1544
        %v1546 = vmul.f32 %v1543, %v1545
        %v1547 = vadd.f32 %v1543, %v1546
        %vm1548 = vweird.f32 %v1259
        %vm1549 = vweird.f32 %v1543
        %vm1550 = vmor %vm1548, %vm1549
        %v1551 = vsel %vm1550, %v1543, %v1547
        %v1552 = vand.u32 2147483647, %v1259
        %vm1553 = vcmp.eq.f32.partialorder %v1552, 8.507059e+37
        %v1554 = vand.u32 %v1259, 2147483648
        %v1555 = vor.u32 1.1754944e-38, %v1554
        %v1556 = vsel %vm1553, %v1555, %v1551
        %v1557 = vmul.f32 1.0, %v1556
        %v1558 = vrcp.pop %v1260
        %v1559 = vmul.f32 %v1260, %v1558
        %v1560 = vsub.f32 1.0, %v1559
        %v1561 = vmul.f32 %v1558, %v1560
        %v1562 = vadd.f32 %v1558, %v1561
        %vm1563 = vweird.f32 %v1260
        %vm1564 = vweird.f32 %v1558
        %vm1565 = vmor %vm1563, %vm1564
        %v1566 = vsel %vm1565, %v1558, %v1562
        %v1567 = vand.u32 2147483647, %v1260
        %vm1568 = vcmp.eq.f32.partialorder %v1567, 8.507059e+37
        %v1569 = vand.u32 %v1260, 2147483648
        %v1570 = vor.u32 1.1754944e-38, %v1569
        %v1571 = vsel %vm1568, %v1570, %v1566
        %v1572 = vmul.f32 1.0, %v1571
        %v1573 = vrcp.pop %v1261
        %v1574 = vmul.f32 %v1261, %v1573
        %v1575 = vsub.f32 1.0, %v1574
        %v1576 = vmul.f32 %v1573, %v1575
        %v1577 = vadd.f32 %v1573, %v1576
        %vm1578 = vweird.f32 %v1261
        %vm1579 = vweird.f32 %v1573
        %vm1580 = vmor %vm1578, %vm1579
        %v1581 = vsel %vm1580, %v1573, %v1577
        %v1582 = vand.u32 2147483647, %v1261
        %vm1583 = vcmp.eq.f32.partialorder %v1582, 8.507059e+37
        %v1584 = vand.u32 %v1261, 2147483648
        %v1585 = vor.u32 1.1754944e-38, %v1584
        %v1586 = vsel %vm1583, %v1585, %v1581
        %v1587 = vmul.f32 1.0, %v1586
        %v1588 = vrcp.pop %v1262
        %v1589 = vmul.f32 %v1262, %v1588
        %v1590 = vsub.f32 1.0, %v1589
        %v1591 = vmul.f32 %v1588, %v1590
        %v1592 = vadd.f32 %v1588, %v1591
        %vm1593 = vweird.f32 %v1262
        %vm1594 = vweird.f32 %v1588
        %vm1595 = vmor %vm1593, %vm1594
        %v1596 = vsel %vm1595, %v1588, %v1592
        %v1597 = vand.u32 2147483647, %v1262
        %vm1598 = vcmp.eq.f32.partialorder %v1597, 8.507059e+37
        %v1599 = vand.u32 %v1262, 2147483648
        %v1600 = vor.u32 1.1754944e-38, %v1599
        %v1601 = vsel %vm1598, %v1600, %v1596
        %v1602 = vmul.f32 1.0, %v1601
        %v1603 = vrcp.pop %v1263
        %v1604 = vmul.f32 %v1263, %v1603
        %v1605 = vsub.f32 1.0, %v1604
        %v1606 = vmul.f32 %v1603, %v1605
        %v1607 = vadd.f32 %v1603, %v1606
        %vm1608 = vweird.f32 %v1263
        %vm1609 = vweird.f32 %v1603
        %vm1610 = vmor %vm1608, %vm1609
        %v1611 = vsel %vm1610, %v1603, %v1607
        %v1612 = vand.u32 2147483647, %v1263
        %vm1613 = vcmp.eq.f32.partialorder %v1612, 8.507059e+37
        %v1614 = vand.u32 %v1263, 2147483648
        %v1615 = vor.u32 1.1754944e-38, %v1614
        %v1616 = vsel %vm1613, %v1615, %v1611
        %v1617 = vmul.f32 1.0, %v1616
        %v1618 = vrcp.pop %v1264
        %v1619 = vmul.f32 %v1264, %v1618
        %v1620 = vsub.f32 1.0, %v1619
        %v1621 = vmul.f32 %v1618, %v1620
        %v1622 = vadd.f32 %v1618, %v1621
        %vm1623 = vweird.f32 %v1264
        %vm1624 = vweird.f32 %v1618
        %vm1625 = vmor %vm1623, %vm1624
        %v1626 = vsel %vm1625, %v1618, %v1622
        %v1627 = vand.u32 2147483647, %v1264
        %vm1628 = vcmp.eq.f32.partialorder %v1627, 8.507059e+37
        %v1629 = vand.u32 %v1264, 2147483648
        %v1630 = vor.u32 1.1754944e-38, %v1629
        %v1631 = vsel %vm1628, %v1630, %v1626
        %v1632 = vmul.f32 1.0, %v1631
        %v1633 = vrcp.pop %v1265
        %v1634 = vmul.f32 %v1265, %v1633
        %v1635 = vsub.f32 1.0, %v1634
        %v1636 = vmul.f32 %v1633, %v1635
        %v1637 = vadd.f32 %v1633, %v1636
        %vm1638 = vweird.f32 %v1265
        %vm1639 = vweird.f32 %v1633
        %vm1640 = vmor %vm1638, %vm1639
        %v1641 = vsel %vm1640, %v1633, %v1637
        %v1642 = vand.u32 2147483647, %v1265
        %vm1643 = vcmp.eq.f32.partialorder %v1642, 8.507059e+37
        %v1644 = vand.u32 %v1265, 2147483648
        %v1645 = vor.u32 1.1754944e-38, %v1644
        %v1646 = vsel %vm1643, %v1645, %v1641
        %v1647 = vmul.f32 1.0, %v1646
        %v1648 = vrcp.pop %v1266
        %v1649 = vmul.f32 %v1266, %v1648
        %v1650 = vsub.f32 1.0, %v1649
        %v1651 = vmul.f32 %v1648, %v1650
        %v1652 = vadd.f32 %v1648, %v1651
        %vm1653 = vweird.f32 %v1266
        %vm1654 = vweird.f32 %v1648
        %vm1655 = vmor %vm1653, %vm1654
        %v1656 = vsel %vm1655, %v1648, %v1652
        %v1657 = vand.u32 2147483647, %v1266
        %vm1658 = vcmp.eq.f32.partialorder %v1657, 8.507059e+37
        %v1659 = vand.u32 %v1266, 2147483648
        %v1660 = vor.u32 1.1754944e-38, %v1659
        %v1661 = vsel %vm1658, %v1660, %v1656
        %v1662 = vmul.f32 1.0, %v1661
        %v1663 = vrcp.pop %v1267
        %v1664 = vmul.f32 %v1267, %v1663
        %v1665 = vsub.f32 1.0, %v1664
        %v1666 = vmul.f32 %v1663, %v1665
        %v1667 = vadd.f32 %v1663, %v1666
        %vm1668 = vweird.f32 %v1267
        %vm1669 = vweird.f32 %v1663
        %vm1670 = vmor %vm1668, %vm1669
        %v1671 = vsel %vm1670, %v1663, %v1667
        %v1672 = vand.u32 2147483647, %v1267
        %vm1673 = vcmp.eq.f32.partialorder %v1672, 8.507059e+37
        %v1674 = vand.u32 %v1267, 2147483648
        %v1675 = vor.u32 1.1754944e-38, %v1674
        %v1676 = vsel %vm1673, %v1675, %v1671
        %v1677 = vmul.f32 1.0, %v1676
        %v1678 = vrcp.pop %v1268
        %v1679 = vmul.f32 %v1268, %v1678
        %v1680 = vsub.f32 1.0, %v1679
        %v1681 = vmul.f32 %v1678, %v1680
        %v1682 = vadd.f32 %v1678, %v1681
        %vm1683 = vweird.f32 %v1268
        %vm1684 = vweird.f32 %v1678
        %vm1685 = vmor %vm1683, %vm1684
        %v1686 = vsel %vm1685, %v1678, %v1682
        %v1687 = vand.u32 2147483647, %v1268
        %vm1688 = vcmp.eq.f32.partialorder %v1687, 8.507059e+37
        %v1689 = vand.u32 %v1268, 2147483648
        %v1690 = vor.u32 1.1754944e-38, %v1689
        %v1691 = vsel %vm1688, %v1690, %v1686
        %v1692 = vmul.f32 1.0, %v1691
        %v1693 = vrcp.pop %v1269
        %v1694 = vmul.f32 %v1269, %v1693
        %v1695 = vsub.f32 1.0, %v1694
        %v1696 = vmul.f32 %v1693, %v1695
        %v1697 = vadd.f32 %v1693, %v1696
        %vm1698 = vweird.f32 %v1269
        %vm1699 = vweird.f32 %v1693
        %vm1700 = vmor %vm1698, %vm1699
        %v1701 = vsel %vm1700, %v1693, %v1697
        %v1702 = vand.u32 2147483647, %v1269
        %vm1703 = vcmp.eq.f32.partialorder %v1702, 8.507059e+37
        %v1704 = vand.u32 %v1269, 2147483648
        %v1705 = vor.u32 1.1754944e-38, %v1704
        %v1706 = vsel %vm1703, %v1705, %v1701
        %v1707 = vmul.f32 1.0, %v1706
        %v1708 = vrcp.pop %v1270
        %v1709 = vmul.f32 %v1270, %v1708
        %v1710 = vsub.f32 1.0, %v1709
        %v1711 = vmul.f32 %v1708, %v1710
        %v1712 = vadd.f32 %v1708, %v1711
        %vm1713 = vweird.f32 %v1270
        %vm1714 = vweird.f32 %v1708
        %vm1715 = vmor %vm1713, %vm1714
        %v1716 = vsel %vm1715, %v1708, %v1712
        %v1717 = vand.u32 2147483647, %v1270
        %vm1718 = vcmp.eq.f32.partialorder %v1717, 8.507059e+37
        %v1719 = vand.u32 %v1270, 2147483648
        %v1720 = vor.u32 1.1754944e-38, %v1719
        %v1721 = vsel %vm1718, %v1720, %v1716
        %v1722 = vmul.f32 1.0, %v1721
        %v1723 = vrcp.pop %v1271
        %v1724 = vmul.f32 %v1271, %v1723
        %v1725 = vsub.f32 1.0, %v1724
        %v1726 = vmul.f32 %v1723, %v1725
        %v1727 = vadd.f32 %v1723, %v1726
        %vm1728 = vweird.f32 %v1271
        %vm1729 = vweird.f32 %v1723
        %vm1730 = vmor %vm1728, %vm1729
        %v1731 = vsel %vm1730, %v1723, %v1727
        %v1732 = vand.u32 2147483647, %v1271
        %vm1733 = vcmp.eq.f32.partialorder %v1732, 8.507059e+37
        %v1734 = vand.u32 %v1271, 2147483648
        %v1735 = vor.u32 1.1754944e-38, %v1734
        %v1736 = vsel %vm1733, %v1735, %v1731
        %v1737 = vmul.f32 1.0, %v1736
        %v1738 = vrcp.pop %v1272
        %v1739 = vmul.f32 %v1272, %v1738
        %v1740 = vsub.f32 1.0, %v1739
        %v1741 = vmul.f32 %v1738, %v1740
        %v1742 = vadd.f32 %v1738, %v1741
        %vm1743 = vweird.f32 %v1272
        %vm1744 = vweird.f32 %v1738
        %vm1745 = vmor %vm1743, %vm1744
        %v1746 = vsel %vm1745, %v1738, %v1742
        %v1747 = vand.u32 2147483647, %v1272
        %vm1748 = vcmp.eq.f32.partialorder %v1747, 8.507059e+37
        %v1749 = vand.u32 %v1272, 2147483648
        %v1750 = vor.u32 1.1754944e-38, %v1749
        %v1751 = vsel %vm1748, %v1750, %v1746
        %v1752 = vmul.f32 1.0, %v1751
        %v1753 = vmul.f32 %v1113, %v1287
        %v1754 = vmul.f32 %v1114, %v1302
        %v1755 = vmul.f32 %v1115, %v1317
        %v1756 = vmul.f32 %v1116, %v1332
        %v1757 = vmul.f32 %v1117, %v1347
        %v1758 = vmul.f32 %v1118, %v1362
        %v1759 = vmul.f32 %v1119, %v1377
        %v1760 = vmul.f32 %v1120, %v1392
        %v1761 = vmul.f32 %v1121, %v1407
        %v1762 = vmul.f32 %v1122, %v1422
        %v1763 = vmul.f32 %v1123, %v1437
        %v1764 = vmul.f32 %v1124, %v1452
        %v1765 = vmul.f32 %v1125, %v1467
        %v1766 = vmul.f32 %v1126, %v1482
        %v1767 = vmul.f32 %v1127, %v1497
        %v1768 = vmul.f32 %v1128, %v1512
        %v1769 = vmul.f32 %v1129, %v1527
        %v1770 = vmul.f32 %v1130, %v1542
        %v1771 = vmul.f32 %v1131, %v1557
        %v1772 = vmul.f32 %v1132, %v1572
        %v1773 = vmul.f32 %v1133, %v1587
        %v1774 = vmul.f32 %v1134, %v1602
        %v1775 = vmul.f32 %v1135, %v1617
        %v1776 = vmul.f32 %v1136, %v1632
        %v1777 = vmul.f32 %v1137, %v1647
        %v1778 = vmul.f32 %v1138, %v1662
        %v1779 = vmul.f32 %v1139, %v1677
        %v1780 = vmul.f32 %v1140, %v1692
        %v1781 = vmul.f32 %v1141, %v1707
        %v1782 = vmul.f32 %v1142, %v1722
        %v1783 = vmul.f32 %v1143, %v1737
        %v1784 = vmul.f32 %v1144, %v1752
        %1785 = vst.msk [vmem:[%s255] sm:$0xff] %vm733, %v1753
        %1786 = vst.msk [vmem:[%s255 + $0x8] sm:$0xff] %vm733, %v1754
        %1787 = vst.msk [vmem:[%s255 + $0x10] sm:$0xff] %vm733, %v1755
        %1788 = vst.msk [vmem:[%s255 + $0x18] sm:$0xff] %vm733, %v1756
        %1789 = vst.msk [vmem:[%s255 + $0x20] sm:$0xff] %vm733, %v1757
        %1790 = vst.msk [vmem:[%s255 + $0x28] sm:$0xff] %vm733, %v1758
        %1791 = vst.msk [vmem:[%s255 + $0x30] sm:$0xff] %vm733, %v1759
        %1792 = vst.msk [vmem:[%s255 + $0x38] sm:$0xff] %vm733, %v1760
        %1793 = vst.msk [vmem:[%s255 + $0x40] sm:$0xff] %vm733, %v1761
        %1794 = vst.msk [vmem:[%s255 + $0x48] sm:$0xff] %vm733, %v1762
        %1795 = vst.msk [vmem:[%s255 + $0x50] sm:$0xff] %vm733, %v1763
        %1796 = vst.msk [vmem:[%s255 + $0x58] sm:$0xff] %vm733, %v1764
        %1797 = vst.msk [vmem:[%s255 + $0x60] sm:$0xff] %vm733, %v1765
        %1798 = vst.msk [vmem:[%s255 + $0x68] sm:$0xff] %vm733, %v1766
        %1799 = vst.msk [vmem:[%s255 + $0x70] sm:$0xff] %vm733, %v1767
        %1800 = vst.msk [vmem:[%s255 + $0x78] sm:$0xff] %vm733, %v1768
        %1801 = vst.msk [vmem:[%s255 + $0x80] sm:$0xff] %vm733, %v1769
        %1802 = vst.msk [vmem:[%s255 + $0x88] sm:$0xff] %vm733, %v1770
        %1803 = vst.msk [vmem:[%s255 + $0x90] sm:$0xff] %vm733, %v1771
        %1804 = vst.msk [vmem:[%s255 + $0x98] sm:$0xff] %vm733, %v1772
        %1805 = vst.msk [vmem:[%s255 + $0xa0] sm:$0xff] %vm733, %v1773
        %1806 = vst.msk [vmem:[%s255 + $0xa8] sm:$0xff] %vm733, %v1774
        %1807 = vst.msk [vmem:[%s255 + $0xb0] sm:$0xff] %vm733, %v1775
        %1808 = vst.msk [vmem:[%s255 + $0xb8] sm:$0xff] %vm733, %v1776
        %1809 = vst.msk [vmem:[%s255 + $0xc0] sm:$0xff] %vm733, %v1777
        %1810 = vst.msk [vmem:[%s255 + $0xc8] sm:$0xff] %vm733, %v1778
        %1811 = vst.msk [vmem:[%s255 + $0xd0] sm:$0xff] %vm733, %v1779
        %1812 = vst.msk [vmem:[%s255 + $0xd8] sm:$0xff] %vm733, %v1780
        %1813 = vst.msk [vmem:[%s255 + $0xe0] sm:$0xff] %vm733, %v1781
        %1814 = vst.msk [vmem:[%s255 + $0xe8] sm:$0xff] %vm733, %v1782
        %1815 = vst.msk [vmem:[%s255 + $0xf0] sm:$0xff] %vm733, %v1783
        %1816 = vst.msk [vmem:[%s255 + $0xf8] sm:$0xff] %vm733, %v1784
        %s1817 = sand.u32 %s146, 1
        %s1818 = scalar_lea.sflag [#allocation3], %s1817
        %s1819 = sand.u32 %s146, 1
        %s1820 = smul.addr %s1819, 256
        %s1821 = scalar_lea.vmem [#allocation2], %s1820
        // Predicated region
        $region37: #{basic_block_udp_forward.3} parent=35 // pred_check
          %p1822 = pneg %p156
        $region38: #{basic_block_udp_forward.3} parent=35 // pred_check_branch
          %1824 = sbr.rel (%p1822) target = $region40
        $region39: #{basic_block_udp_forward.3} parent=35 // pred_region
          %s1825 = smul.u32 32, %s22
          %1827 = vsyncadd %s1818, 0
          %s1828 = sadd.s32 %s23, %s1825
          %s1829 = smul.addr %s1828, 8
          %s1830 = scalar_lea.hbm %s4, %s1829
          %s1831 = sshll.u32 %s1821, 4
          %s1832 = int_to_ptr.vmem [resolvable:$true] %s1831
          %s1833 = sshll.u32 %s1830, 4
          %s1834 = int_to_ptr.hbm [resolvable:$true] %s1833
          %1839 = dma.vmem_to_hbm [thread:$0]  %s1832, 4096, %s1834, %s1818, 128, 128, 8
        $region40: #{basic_block_udp_forward.3} parent=35 // pred_fallthru
          _
      $region36: #{basic_block_udp_forward.3} parent=5 // pred_fallthru
        _
      %p1840 = scmp.le.s32.totalorder 2, %s13
      // Predicated region
      $region41: #{basic_block_udp_forward.3} parent=5 // pred_check
        %p1841 = pneg %p1840
      $region42: #{basic_block_udp_forward.3} parent=5 // pred_check_branch
        %1843 = sbr.rel (%p1841) target = $region44
      $region43: #{basic_block_udp_forward.3} parent=5 // pred_region
        %s1844 = ssub.s32 %s13, 2
        // Predicated region
        $region45: #{basic_block_udp_forward.3} parent=43 // pred_check
          %p1845 = pneg %p162
        $region46: #{basic_block_udp_forward.3} parent=43 // pred_check_branch
          %1847 = sbr.rel (%p1845) target = $region48
        $region47: #{basic_block_udp_forward.3} parent=43 // pred_region
          %s1848 = sand.u32 %s147, 1
          %s1849 = scalar_lea.sflag [#allocation3], %s1848
          %s1850 = sand.u32 %s147, 1
          %s1851 = smul.addr %s1850, 256
          %s1852 = scalar_lea.vmem [#allocation2], %s1851
          %1854 = dma.done %s1849, 4096
        $region48: #{basic_block_udp_forward.3} parent=43 // pred_fallthru
          _
      $region44: #{basic_block_udp_forward.3} parent=5 // pred_fallthru
        _
    $region6: #{basic_block_udp_forward.3} parent=1 // loop_footer
      %s17 = sadd.s32 1, %s13
    $region7: #{basic_block_udp_forward.3} parent=1 // loop_footer_branch
      %12 = sbr.rel target = $region3
    $region8: #{basic_block_udp_forward.3} parent=1 // loop_exit
      _
    %1855 = vsyncpa [#allocation3], 1
    %s1856 = scalar_lea.sflag [#allocation3], 1
    %1857 = vsyncpa %s1856, 1

</llo_original>
